<compile_context>
chip_gen: v7x
topology: tpu7x:2x2x1
jax: 0.10.0
libtpu: 0.0.40
codegen_flags: <defaults>
</compile_context>

<pallas_src>
import jax
import jax.numpy as jnp
import numpy as np
from jax.experimental import pallas as pl
from jax.experimental.pallas import tpu as pltpu


# rows of the packed bias / LayerNorm blob (single f32 [6 + 6*n_layers, 256] array)
_ROW_B1, _ROW_B2, _ROW_B3, _ROW_BL1, _ROW_BH, _ROW_SCAL, _ROW_LAYER0 = 0, 1, 2, 3, 4, 5, 6


# ---------------------------------------------------------------------------
# math helpers (usable inside Pallas kernels)
# ---------------------------------------------------------------------------
def _erf(x):
    # TODO(synk): exact erf (nn.GELU default) approximated with the A&S 7.1.26
    # polynomial (abs err < 1.5e-7) — avoids relying on an erf lowering in Mosaic.
    a1, a2, a3, a4, a5 = 0.254829592, -0.284496736, 1.421413741, -1.453152027, 1.061405429
    p = 0.3275911
    ax = jnp.abs(x)
    t = 1.0 / (1.0 + p * ax)
    y = 1.0 - ((((a5 * t + a4) * t + a3) * t + a2) * t + a1) * t * jnp.exp(-ax * ax)
    return jnp.where(x < 0, -y, y)


def _gelu(x):
    return 0.5 * x * (1.0 + _erf(x * 0.7071067811865476))


def _layer_norm(x, g, b, eps=1e-6):
    mu = jnp.mean(x, axis=-1, keepdims=True)
    xc = x - mu
    var = jnp.mean(xc * xc, axis=-1, keepdims=True)
    return xc * jax.lax.rsqrt(var + eps) * g + b


# ---------------------------------------------------------------------------
# fused kernel: SE gating + conv1/2/3 + Linear1 + encoder layers + head
# ---------------------------------------------------------------------------
def _fused_forward_kernel(xp_ref, m1_ref, kpool_ref, bsel_ref, bselT_ref,
                          se_elt_ref, se_mat_ref,
                          w1_ref, w2_ref, w3_ref, wl1_ref,
                          wvo_ref, wf1_ref, wf2_ref, bias_ref, wh_ref,
                          feat_ref, cls_ref, y2_ref):
    """xp : [B*18, 45]  rows = (b, w9, r, s), cols = (d, p, q)   (im2col of x)
       y2_ref : VMEM scratch [B*18, 32] holding the conv2 output for the regroup."""
    f32, bf16 = jnp.float32, jnp.bfloat16
    B = xp_ref.shape[0] // 18
    n_layers = wvo_ref.shape[0]
    d_model = wvo_ref.shape[1]
    d_ff = wf1_ref.shape[2]
    n_cls = wh_ref.shape[1]

    def brow(r, w):                       # one row of the packed bias blob
        return bias_ref[r:r + 1, 0:w]

    xp = xp_ref[...]                                                       # [18B, 45]
    cs_b = bias_ref[_ROW_SCAL:_ROW_SCAL + 1, 0:1]
    l2_b = bias_ref[_ROW_SCAL:_ROW_SCAL + 1, 1:2]

    # --- spatial attention gate: sigmoid(Conv3d(1,1,(5,1,1)) over depth), replicated
    #     across the 5 depth column-blocks by the precomputed block matrix m1.
    gate_sp = jax.nn.sigmoid(jnp.dot(xp, m1_ref[...], preferred_element_type=f32) + cs_b)

    # --- channel (SE) gate: adaptive_avg_pool2d -> 1x1 conv(1->5) -> GELU
    #     -> 1x1 conv(5->1) -> sigmoid.  Hidden dim 5 is lane-packed (one GELU).
    pool = jnp.dot(xp, kpool_ref[...], preferred_element_type=f32)         # [18B, 5]
    aa = jnp.dot(bsel_ref[...], pool, preferred_element_type=f32)          # [B, 5] mean/d
    aa25 = jnp.concatenate([aa] * 5, axis=1)                               # [B, 25] (o, d)
    h_se = _gelu(aa25 * se_elt_ref[0:1, :] + se_elt_ref[1:2, :])           # one GELU
    gate_ch_cols = jax.nn.sigmoid(
        jnp.dot(h_se, se_mat_ref[...], preferred_element_type=f32) + l2_b)  # [B, 45]
    gate_ch = jnp.dot(bselT_ref[...], gate_ch_cols, preferred_element_type=f32)  # [18B, 45]

    okp = xp * (gate_sp + gate_ch)                                         # Out_kong_pin

    # --- conv1 (block-diagonal over depth) + ReLU, conv2 + ReLU (bf16 weights)
    y1 = jnp.maximum(jnp.dot(okp.astype(bf16), w1_ref[...], preferred_element_type=f32)
                     + brow(_ROW_B1, 80), 0.0)                             # [18B, 80]
    y2 = jnp.maximum(jnp.dot(y1.astype(bf16), w2_ref[...], preferred_element_type=f32)
                     + brow(_ROW_B2, 32), 0.0)                             # [18B, 32]
    y2_ref[...] = y2

    # --- in-VMEM regroup (b, w9, r, s) x c2 -> (b) x (r, s, c2) per w9 slab.
    #     rows with a fixed (r, s) live at sublane stride 18 in the scratch.
    z0 = jnp.concatenate([y2_ref[pl.ds(k, B, stride=18), :] for k in range(9)], axis=1)
    z1 = jnp.concatenate([y2_ref[pl.ds(9 + k, B, stride=18), :] for k in range(9)], axis=1)

    # --- conv3 + ReLU on both w9 slabs, then flatten in torch (c3, w9) order +
    #     Linear1 as a single matmul on the lane-concatenated [B, 128].
    b3 = brow(_ROW_B3, 64)
    o30 = jnp.maximum(jnp.dot(z0.astype(bf16), w3_ref[...], preferred_element_type=f32) + b3, 0.0)
    o31 = jnp.maximum(jnp.dot(z1.astype(bf16), w3_ref[...], preferred_element_type=f32) + b3, 0.0)
    o3 = jnp.concatenate([o30, o31], axis=1)                               # [B, 128]
    x = (jnp.dot(o3.astype(bf16), wl1_ref[...], preferred_element_type=f32)
         + brow(_ROW_BL1, d_model))                                        # [B, 128]

    # --- encoder layers, batch folded into the matmul M dim.  L == 1 -> softmax
    #     over the single key is exactly 1 -> MHA(x) == x @ (Wv.T Wo.T) (pre-folded).
    for l in range(n_layers):
        base = _ROW_LAYER0 + 6 * l
        attn_out = jnp.dot(x.astype(bf16), wvo_ref[l], preferred_element_type=f32)
        x = _layer_norm(attn_out + x, brow(base + 0, d_model), brow(base + 1, d_model))
        hh = _gelu(jnp.dot(x.astype(bf16), wf1_ref[l], preferred_element_type=f32)
                   + brow(base + 2, d_ff))
        x = _layer_norm(jnp.dot(hh.astype(bf16), wf2_ref[l], preferred_element_type=f32)
                        + brow(base + 3, d_model) + x,
                        brow(base + 4, d_model), brow(base + 5, d_model))
    feat_ref[...] = x                                                      # [B, 128]

    # --- head: max over seq (L == 1 -> identity) + Linear(128, 3) + softmax
    logits = jnp.dot(x, wh_ref[...], preferred_element_type=f32) + brow(_ROW_BH, n_cls)
    logits = logits - jnp.max(logits, axis=-1, keepdims=True)
    e = jnp.exp(logits)
    cls_ref[...] = e * pl.reciprocal(jnp.sum(e, axis=-1, keepdims=True), approx=True)


# ---------------------------------------------------------------------------
# one-time parameter re-layout (PyTorch layouts -> matmul-friendly kernel layouts)
# ---------------------------------------------------------------------------
def prepare_params(p):
    bf16 = jnp.bfloat16
    layers = p["layers"]
    n_l = len(layers)
    d_model = int(np.asarray(layers[0]["wo"]).shape[0])
    d_ff = int(np.asarray(layers[0]["b1"]).shape[0])

    cs_w = np.asarray(p["cs_w"], np.float32).reshape(5)
    l1_w = np.asarray(p["l1_w"], np.float32).reshape(5)
    l1_b = np.asarray(p["l1_b"], np.float32).reshape(5)
    l2_w = np.asarray(p["l2_w"], np.float32).reshape(5)

    prep = {}
    # spatial-gate matrix: (xp @ m1) replicates att1 across the 5 depth column-blocks
    prep["m1"] = jnp.asarray(
        np.kron(np.broadcast_to(cs_w[:, None], (5, 5)).copy(), np.eye(9, dtype=np.float32)))
    # pooling matrix: (xp @ kpool) summed over a sample's 18 rows = mean over 162 (h,w)
    prep["kpool"] = jnp.asarray(
        np.kron(np.eye(5, dtype=np.float32), np.ones((9, 1), np.float32)) / 162.0)   # [45, 5]
    # SE MLP (hidden o=5) lane-packed as (o, d) -> 25 lanes; se_mat folds linear2 and
    # the per-depth -> per-column broadcast into one [25, 45] matmul.
    prep["se_elt"] = jnp.asarray(np.stack([np.repeat(l1_w, 5), np.repeat(l1_b, 5)]))  # [2, 25]
    prep["se_mat"] = jnp.asarray(
        np.kron(l2_w[:, None],
                np.kron(np.eye(5, dtype=np.float32), np.ones((1, 9), np.float32))))  # [25, 45]

    # conv1 as a block-diagonal [45, 80] matmul (no cross-depth mixing), bf16
    w1k = np.asarray(p["conv1_w"], np.float32).reshape(16, 9).T                       # [(p,q), c1]
    prep["w1big"] = jnp.asarray(np.kron(np.eye(5, dtype=np.float32), w1k)).astype(bf16)
    # conv2: contract over (d, c1)
    prep["w2m"] = jnp.asarray(np.asarray(p["conv2_w"], np.float32)
                              .reshape(32, 16, 5).transpose(2, 1, 0).reshape(80, 32)).astype(bf16)
    # conv3: contract over (r, s, c2)
    prep["w3flat"] = jnp.asarray(np.asarray(p["conv3_w"], np.float32)
                                 .reshape(64, 32, 3, 3).transpose(2, 3, 1, 0)
                                 .reshape(288, 64)).astype(bf16)
    # Linear1 on the lane-concatenated (w9=0 | w9=1) conv3 outputs; torch flattens (c3, w9)
    lin1 = np.asarray(p["Lin1_w"], np.float32)
    prep["wl1cat"] = jnp.asarray(
        np.concatenate([lin1[:, 0::2].T, lin1[:, 1::2].T], axis=0)).astype(bf16)      # [128, 128]

    # encoder layers: Wv.T @ Wo.T folded once (q/k are dead work with L == 1)
    prep["wvo"] = jnp.asarray(np.stack(
        [np.dot(np.asarray(lp["wv"], np.float32).T, np.asarray(lp["wo"], np.float32).T)
         for lp in layers])).astype(bf16)                                             # [n_l,128,128]
    prep["wf1"] = jnp.asarray(np.stack(
        [np.asarray(lp["w1"], np.float32).T for lp in layers])).astype(bf16)          # [n_l,128,256]
    prep["wf2"] = jnp.asarray(np.stack(
        [np.asarray(lp["w2"], np.float32).T for lp in layers])).astype(bf16)          # [n_l,256,128]
    prep["wh"] = jnp.asarray(np.asarray(p["head_w"], np.float32).T)                   # [128, 3] f32

    # all biases / LayerNorm params / stray scalars in one f32 blob (one DMA)
    blob = np.zeros((_ROW_LAYER0 + 6 * n_l, max(256, d_ff)), np.float32)
    blob[_ROW_B1, :80] = np.tile(np.asarray(p["conv1_b"], np.float32), 5)
    blob[_ROW_B2, :32] = np.asarray(p["conv2_b"], np.float32)
    blob[_ROW_B3, :64] = np.asarray(p["conv3_b"], np.float32)
    blob[_ROW_BL1, :d_model] = np.asarray(p["Lin1_b"], np.float32)
    blob[_ROW_BH, :3] = np.asarray(p["head_b"], np.float32)
    blob[_ROW_SCAL, 0] = float(np.asarray(p["cs_b"]).reshape(-1)[0])
    blob[_ROW_SCAL, 1] = float(np.asarray(p["l2_b"]).reshape(-1)[0])
    for l, lp in enumerate(layers):
        base = _ROW_LAYER0 + 6 * l
        blob[base + 0, :d_model] = np.asarray(lp["ln1_g"], np.float32)
        blob[base + 1, :d_model] = np.asarray(lp["ln1_b"], np.float32)
        blob[base + 2, :d_ff] = np.asarray(lp["b1"], np.float32)
        blob[base + 3, :d_model] = np.asarray(lp["b2"], np.float32)
        blob[base + 4, :d_model] = np.asarray(lp["ln2_g"], np.float32)
        blob[base + 5, :d_model] = np.asarray(lp["ln2_b"], np.float32)
    prep["bias"] = jnp.asarray(blob)
    return prep


# ---------------------------------------------------------------------------
# full forward: exactly ONE pallas_call launch
# ---------------------------------------------------------------------------
def transformer_encoder_forward(src_seq, prep):
    x = src_seq[:, 0].astype(jnp.float32)            # squeeze Conv3d in-channel: [B, 5, 9, 18]
    B, D, H, W = x.shape
    assert (D, H, W) == (5, 9, 18), "front-end specialised to the 128-feature geometry"

    # im2col (one tiny XLA transpose): rows (b, w9, r, s), cols (d, p, q)
    xp = x.reshape(B, 5, 3, 3, 2, 3, 3).transpose(0, 4, 2, 5, 1, 3, 6).reshape(B * 18, 45)

    # per-batch fold / broadcast selection matrices (compile-time constants, < 1 KiB)
    bsel = jnp.asarray(np.kron(np.eye(B, dtype=np.float32), np.ones((1, 18), np.float32)) / 1.0)
    bselT = jnp.asarray(np.kron(np.eye(B, dtype=np.float32), np.ones((18, 1), np.float32)))

    d_model = prep["wvo"].shape[1]
    n_cls = prep["wh"].shape[1]
    vmem = pl.BlockSpec(memory_space=pltpu.MemorySpace.VMEM)

    # NOTE(v7x): gridless kernel runs on a single TensorCore; at B=2 splitting the
    # batch across cores would only add overhead (see perf review).
    feat, cls = pl.pallas_call(
        _fused_forward_kernel,
        out_shape=(jax.ShapeDtypeStruct((B, d_model), jnp.float32),
                   jax.ShapeDtypeStruct((B, n_cls), jnp.float32)),
        in_specs=[vmem] * 16,
        out_specs=(vmem, vmem),
        scratch_shapes=[pltpu.VMEM((B * 18, 32), jnp.float32)],
        compiler_params=pltpu.CompilerParams(vmem_limit_bytes=32 * 1024 * 1024),
    )(xp, prep["m1"], prep["kpool"], bsel, bselT, prep["se_elt"], prep["se_mat"],
      prep["w1big"], prep["w2m"], prep["w3flat"], prep["wl1cat"],
      prep["wvo"], prep["wf1"], prep["wf2"], prep["bias"], prep["wh"])

    outputs_feature = feat[:, None, :]               # [B, 1, 128]
    return outputs_feature, cls, None                # Attention is always None


# ---------------------------------------------------------------------------
# pure-JAX reference (mirrors the PyTorch forward op-by-op) — used for the check
# ---------------------------------------------------------------------------
def _reference_encoder_layer(x, lp, n_head):
    B, L, Dm = x.shape
    d_k = Dm // n_head
    q = (x @ lp["wq"].T).reshape(B, L, n_head, d_k).transpose(0, 2, 1, 3)
    k = (x @ lp["wk"].T).reshape(B, L, n_head, d_k).transpose(0, 2, 1, 3)
    v = (x @ lp["wv"].T).reshape(B, L, n_head, d_k).transpose(0, 2, 1, 3)
    attn = jax.nn.softmax(jnp.einsum("bhqd,bhkd->bhqk", q / (d_k ** 0.5), k), axis=-1)
    o = jnp.einsum("bhqk,bhkd->bhqd", attn, v).transpose(0, 2, 1, 3).reshape(B, L, Dm)
    o = o @ lp["wo"].T
    x = _layer_norm(o + x, lp["ln1_g"], lp["ln1_b"])
    h = jax.nn.gelu(x @ lp["w1"].T + lp["b1"], approximate=False)
    x = _layer_norm(h @ lp["w2"].T + lp["b2"] + x, lp["ln2_g"], lp["ln2_b"])
    return x


def reference_forward(src_seq, p, n_head=4):
    x = src_seq[:, 0].astype(jnp.float32)                                 # [B, 5, 9, 18]
    B = x.shape[0]
    att1 = jnp.einsum("bdhw,d->bhw", x, p["cs_w"].reshape(5)) + p["cs_b"][0]
    out1 = x * jax.nn.sigmoid(att1)[:, None, :, :]
    aa = jnp.mean(x, axis=(2, 3))                                         # [B, 5]
    zz = aa[:, :, None] * p["l1_w"].reshape(5)[None, None, :] + p["l1_b"][None, None, :]
    s = jnp.sum(jax.nn.gelu(zz, approximate=False) * p["l2_w"].reshape(5)[None, None, :],
                axis=-1) + p["l2_b"][0]
    out2 = x * jax.nn.sigmoid(s)[:, :, None, None]
    okp = out1 + out2
    pt = okp.reshape(B, 5, 3, 3, 6, 3)                                    # (b, d, r, p, w6, q)
    y1 = jax.nn.relu(jnp.einsum("bdrpwq,cpq->bdrwc", pt, p["conv1_w"].reshape(16, 3, 3))
                     + p["conv1_b"])
    y2 = jax.nn.relu(jnp.einsum("bdrwc,ocd->brwo", y1, p["conv2_w"].reshape(32, 16, 5))
                     + p["conv2_b"])
    y2r = y2.reshape(B, 3, 2, 3, 32)                                      # (b, kh, w9, kw, c2)
    y3 = jax.nn.relu(jnp.einsum("bhwkc,ochk->bwo", y2r, p["conv3_w"].reshape(64, 32, 3, 3))
                     + p["conv3_b"])
    feat = y3.transpose(0, 2, 1).reshape(B, 128)                          # (c3, w9) flatten order
    feat = feat @ p["Lin1_w"].T + p["Lin1_b"]
    enc = feat[:, None, :]
    for lp in p["layers"]:
        enc = _reference_encoder_layer(enc, lp, n_head)
    out = jnp.max(enc, axis=1)
    cls = jax.nn.softmax(out @ p["head_w"].T + p["head_b"], axis=-1)
    return enc, cls


# ---------------------------------------------------------------------------
# deterministic parameter init (PyTorch tensor layouts, synthetic values)
# ---------------------------------------------------------------------------
def init_params(key, d_model=128, n_head=4, d_ff=256, n_layers=2):
    keys = iter(jax.random.split(key, 64))

    def rnd(shape, scale=0.1):
        return scale * jax.random.normal(next(keys), shape, jnp.float32)

    p = {}
    # Conv3d weights: [out_c, in_c, kd, kh, kw]; Linear weights: [out, in]
    p["cs_w"], p["cs_b"] = rnd((1, 1, 5, 1, 1)), rnd((1,))
    p["l1_w"], p["l1_b"] = rnd((5, 1, 1, 1, 1)), rnd((5,))
    p["l2_w"], p["l2_b"] = rnd((1, 5, 1, 1, 1)), rnd((1,))
    p["conv1_w"], p["conv1_b"] = rnd((16, 1, 1, 3, 3)), rnd((16,))
    p["conv2_w"], p["conv2_b"] = rnd((32, 16, 5, 1, 1)), rnd((32,))
    p["conv3_w"], p["conv3_b"] = rnd((64, 32, 1, 3, 3)), rnd((64,))
    p["Lin1_w"], p["Lin1_b"] = rnd((128, 128)), rnd((128,))

    d_k = d_v = d_model // n_head
    layers = []
    for _ in range(n_layers):
        layers.append(dict(
            wq=rnd((n_head * d_k, d_model)), wk=rnd((n_head * d_k, d_model)),
            wv=rnd((n_head * d_v, d_model)), wo=rnd((d_model, n_head * d_v)),
            ln1_g=jnp.ones((d_model,), jnp.float32), ln1_b=jnp.zeros((d_model,), jnp.float32),
            w1=rnd((d_ff, d_model)), b1=rnd((d_ff,)),
            w2=rnd((d_model, d_ff)), b2=rnd((d_model,)),
            ln2_g=jnp.ones((d_model,), jnp.float32), ln2_b=jnp.zeros((d_model,), jnp.float32)))
    p["layers"] = layers
    p["head_w"], p["head_b"] = rnd((3, d_model)), rnd((3,))
    return p


if __name__ == "__main__":
    # TransformerEncoder(sentence_len=2, d_feature=128, n_layers=2, n_heads=4, d_ff=256)
    # input: [B=2, C=1, D=5, H=9, W=18]  ->  64 * (9//9) * (18//9) = 128 features/sample
    B, D, H, W = 2, 5, 9, 18
    src_seq = jax.random.normal(jax.random.PRNGKey(0), (B, 1, D, H, W), jnp.float32)
    params = init_params(jax.random.PRNGKey(1), d_model=128, n_head=4, d_ff=256, n_layers=2)
    prep = prepare_params(params)                    # one-time weight re-layout

    fwd = jax.jit(transformer_encoder_forward)
    feats, cls, attn = fwd(src_seq, prep)
    jax.block_until_ready((feats, cls))
    assert feats.shape == (B, 1, 128) and cls.shape == (B, 3) and attn is None

    # correctness check against a pure-JAX op-by-op mirror of the PyTorch forward
    with jax.default_matmul_precision("highest"):
        ref_feats, ref_cls = reference_forward(src_seq, params, n_head=4)
    np.testing.assert_allclose(np.asarray(feats), np.asarray(ref_feats), rtol=2e-2, atol=2e-2)
    np.testing.assert_allclose(np.asarray(cls), np.asarray(ref_cls), rtol=2e-2, atol=2e-2)
    print("KERNEL_OK")
</pallas_src>

<mosaic_0001>
module attributes {stable_mosaic.version = 11 : i64} {
  func.func @_fused_forward_kernel(%arg0: memref<36x45xf32, #tpu.memory_space<vmem>>, %arg1: memref<45x45xf32, #tpu.memory_space<vmem>>, %arg2: memref<45x5xf32, #tpu.memory_space<vmem>>, %arg3: memref<2x36xf32, #tpu.memory_space<vmem>>, %arg4: memref<36x2xf32, #tpu.memory_space<vmem>>, %arg5: memref<2x25xf32, #tpu.memory_space<vmem>>, %arg6: memref<25x45xf32, #tpu.memory_space<vmem>>, %arg7: memref<45x80xbf16, #tpu.memory_space<vmem>>, %arg8: memref<80x32xbf16, #tpu.memory_space<vmem>>, %arg9: memref<288x64xbf16, #tpu.memory_space<vmem>>, %arg10: memref<128x128xbf16, #tpu.memory_space<vmem>>, %arg11: memref<2x128x128xbf16, #tpu.memory_space<vmem>>, %arg12: memref<2x128x256xbf16, #tpu.memory_space<vmem>>, %arg13: memref<2x256x128xbf16, #tpu.memory_space<vmem>>, %arg14: memref<18x256xf32, #tpu.memory_space<vmem>>, %arg15: memref<128x3xf32, #tpu.memory_space<vmem>>, %arg16: memref<2x128xf32, #tpu.memory_space<vmem>>, %arg17: memref<2x3xf32, #tpu.memory_space<vmem>>, %arg18: memref<36x32xf32, #tpu.memory_space<vmem>>) attributes {dimension_semantics = [], scalar_prefetch = 0 : i64, scratch_operands = 1 : i64, tpu.core_type = #tpu.core_type<tc>} {
    %c0 = arith.constant 0 : index
    %c0_0 = arith.constant 0 : index
    %0 = vector.load %arg0[%c0, %c0_0] : memref<36x45xf32, #tpu.memory_space<vmem>>, vector<36x45xf32>
    %c5 = arith.constant 5 : index
    %c0_1 = arith.constant 0 : index
    %1 = vector.load %arg14[%c5, %c0_1] : memref<18x256xf32, #tpu.memory_space<vmem>>, vector<1x1xf32>
    %c5_2 = arith.constant 5 : index
    %c1 = arith.constant 1 : index
    %2 = vector.load %arg14[%c5_2, %c1] : memref<18x256xf32, #tpu.memory_space<vmem>>, vector<1x1xf32>
    %c0_3 = arith.constant 0 : index
    %c0_4 = arith.constant 0 : index
    %3 = vector.load %arg1[%c0_3, %c0_4] : memref<45x45xf32, #tpu.memory_space<vmem>>, vector<45x45xf32>
    %cst = arith.constant dense<0.000000e+00> : vector<36x45xf32>
    %4 = tpu.matmul %0, %3, %cst {dimension_numbers = #tpu.dot_dimension_numbers<[1], [0], [0], [1], [0, 0, 1, 1], [], []>} : vector<36x45xf32>, vector<45x45xf32>, vector<36x45xf32> -> vector<36x45xf32>
    %5 = vector.broadcast %1 : vector<1x1xf32> to vector<36x45xf32>
    %6 = arith.addf %4, %5 : vector<36x45xf32>
    %7 = arith.negf %6 : vector<36x45xf32>
    %8 = math.exp %7 : vector<36x45xf32>
    %cst_5 = arith.constant 1.000000e+00 : f32
    %9 = vector.broadcast %cst_5 : f32 to vector<36x45xf32>
    %10 = arith.addf %9, %8 : vector<36x45xf32>
    %11 = arith.divf %9, %10 : vector<36x45xf32>
    %c0_6 = arith.constant 0 : index
    %c0_7 = arith.constant 0 : index
    %12 = vector.load %arg2[%c0_6, %c0_7] : memref<45x5xf32, #tpu.memory_space<vmem>>, vector<45x5xf32>
    %cst_8 = arith.constant dense<0.000000e+00> : vector<36x5xf32>
    %13 = tpu.matmul %0, %12, %cst_8 {dimension_numbers = #tpu.dot_dimension_numbers<[1], [0], [0], [1], [0, 0, 1, 1], [], []>} : vector<36x45xf32>, vector<45x5xf32>, vector<36x5xf32> -> vector<36x5xf32>
    %c0_9 = arith.constant 0 : index
    %c0_10 = arith.constant 0 : index
    %14 = vector.load %arg3[%c0_9, %c0_10] : memref<2x36xf32, #tpu.memory_space<vmem>>, vector<2x36xf32>
    %cst_11 = arith.constant dense<0.000000e+00> : vector<2x5xf32>
    %15 = tpu.matmul %14, %13, %cst_11 {dimension_numbers = #tpu.dot_dimension_numbers<[1], [0], [0], [1], [0, 0, 1, 1], [], []>} : vector<2x36xf32>, vector<36x5xf32>, vector<2x5xf32> -> vector<2x5xf32>
    %16 = tpu.concatenate %15, %15, %15, %15, %15 in 1 : vector<2x5xf32>, vector<2x5xf32>, vector<2x5xf32>, vector<2x5xf32>, vector<2x5xf32> -> vector<2x25xf32>
    %c0_12 = arith.constant 0 : index
    %c0_13 = arith.constant 0 : index
    %17 = vector.load %arg5[%c0_12, %c0_13] : memref<2x25xf32, #tpu.memory_space<vmem>>, vector<1x25xf32>
    %18 = vector.broadcast %17 : vector<1x25xf32> to vector<2x25xf32>
    %19 = arith.mulf %16, %18 : vector<2x25xf32>
    %c1_14 = arith.constant 1 : index
    %c0_15 = arith.constant 0 : index
    %20 = vector.load %arg5[%c1_14, %c0_15] : memref<2x25xf32, #tpu.memory_space<vmem>>, vector<1x25xf32>
    %21 = vector.broadcast %20 : vector<1x25xf32> to vector<2x25xf32>
    %22 = arith.addf %19, %21 : vector<2x25xf32>
    %cst_16 = arith.constant 5.000000e-01 : f32
    %23 = vector.broadcast %cst_16 : f32 to vector<2x25xf32>
    %24 = arith.mulf %23, %22 : vector<2x25xf32>
    %cst_17 = arith.constant 0.707106769 : f32
    %25 = vector.broadcast %cst_17 : f32 to vector<2x25xf32>
    %26 = arith.mulf %22, %25 : vector<2x25xf32>
    %27 = math.absf %26 : vector<2x25xf32>
    %cst_18 = arith.constant 0.327591091 : f32
    %28 = vector.broadcast %cst_18 : f32 to vector<2x25xf32>
    %29 = arith.mulf %28, %27 : vector<2x25xf32>
    %cst_19 = arith.constant 1.000000e+00 : f32
    %30 = vector.broadcast %cst_19 : f32 to vector<2x25xf32>
    %31 = arith.addf %30, %29 : vector<2x25xf32>
    %cst_20 = arith.constant 1.000000e+00 : f32
    %32 = vector.broadcast %cst_20 : f32 to vector<2x25xf32>
    %33 = arith.divf %32, %31 : vector<2x25xf32>
    %cst_21 = arith.constant 1.06140542 : f32
    %34 = vector.broadcast %cst_21 : f32 to vector<2x25xf32>
    %35 = arith.mulf %34, %33 : vector<2x25xf32>
    %cst_22 = arith.constant -1.45315206 : f32
    %36 = vector.broadcast %cst_22 : f32 to vector<2x25xf32>
    %37 = arith.addf %35, %36 : vector<2x25xf32>
    %38 = arith.mulf %37, %33 : vector<2x25xf32>
    %cst_23 = arith.constant 1.42141378 : f32
    %39 = vector.broadcast %cst_23 : f32 to vector<2x25xf32>
    %40 = arith.addf %38, %39 : vector<2x25xf32>
    %41 = arith.mulf %40, %33 : vector<2x25xf32>
    %cst_24 = arith.constant -0.284496725 : f32
    %42 = vector.broadcast %cst_24 : f32 to vector<2x25xf32>
    %43 = arith.addf %41, %42 : vector<2x25xf32>
    %44 = arith.mulf %43, %33 : vector<2x25xf32>
    %cst_25 = arith.constant 0.254829586 : f32
    %45 = vector.broadcast %cst_25 : f32 to vector<2x25xf32>
    %46 = arith.addf %44, %45 : vector<2x25xf32>
    %47 = arith.mulf %46, %33 : vector<2x25xf32>
    %cst_26 = arith.constant 0.000000e+00 : f32
    %48 = vector.broadcast %cst_26 : f32 to vector<2x25xf32>
    %49 = arith.subf %48, %27 : vector<2x25xf32>
    %50 = arith.mulf %49, %27 : vector<2x25xf32>
    %51 = math.exp %50 : vector<2x25xf32>
    %52 = arith.mulf %47, %51 : vector<2x25xf32>
    %cst_27 = arith.constant 1.000000e+00 : f32
    %53 = vector.broadcast %cst_27 : f32 to vector<2x25xf32>
    %54 = arith.subf %53, %52 : vector<2x25xf32>
    %cst_28 = arith.constant 0.000000e+00 : f32
    %55 = vector.broadcast %cst_28 : f32 to vector<2x25xf32>
    %56 = arith.cmpf olt, %26, %55 : vector<2x25xf32>
    %cst_29 = arith.constant 0.000000e+00 : f32
    %57 = vector.broadcast %cst_29 : f32 to vector<2x25xf32>
    %58 = arith.subf %57, %54 : vector<2x25xf32>
    %59 = arith.select %56, %58, %54 : vector<2x25xi1>, vector<2x25xf32>
    %cst_30 = arith.constant 1.000000e+00 : f32
    %60 = vector.broadcast %cst_30 : f32 to vector<2x25xf32>
    %61 = arith.addf %60, %59 : vector<2x25xf32>
    %62 = arith.mulf %24, %61 : vector<2x25xf32>
    %c0_31 = arith.constant 0 : index
    %c0_32 = arith.constant 0 : index
    %63 = vector.load %arg6[%c0_31, %c0_32] : memref<25x45xf32, #tpu.memory_space<vmem>>, vector<25x45xf32>
    %cst_33 = arith.constant dense<0.000000e+00> : vector<2x45xf32>
    %64 = tpu.matmul %62, %63, %cst_33 {dimension_numbers = #tpu.dot_dimension_numbers<[1], [0], [0], [1], [0, 0, 1, 1], [], []>} : vector<2x25xf32>, vector<25x45xf32>, vector<2x45xf32> -> vector<2x45xf32>
    %65 = vector.broadcast %2 : vector<1x1xf32> to vector<2x45xf32>
    %66 = arith.addf %64, %65 : vector<2x45xf32>
    %67 = arith.negf %66 : vector<2x45xf32>
    %68 = math.exp %67 : vector<2x45xf32>
    %cst_34 = arith.constant 1.000000e+00 : f32
    %69 = vector.broadcast %cst_34 : f32 to vector<2x45xf32>
    %70 = arith.addf %69, %68 : vector<2x45xf32>
    %71 = arith.divf %69, %70 : vector<2x45xf32>
    %c0_35 = arith.constant 0 : index
    %c0_36 = arith.constant 0 : index
    %72 = vector.load %arg4[%c0_35, %c0_36] : memref<36x2xf32, #tpu.memory_space<vmem>>, vector<36x2xf32>
    %cst_37 = arith.constant dense<0.000000e+00> : vector<36x45xf32>
    %73 = tpu.matmul %72, %71, %cst_37 {dimension_numbers = #tpu.dot_dimension_numbers<[1], [0], [0], [1], [0, 0, 1, 1], [], []>} : vector<36x2xf32>, vector<2x45xf32>, vector<36x45xf32> -> vector<36x45xf32>
    %74 = arith.addf %11, %73 : vector<36x45xf32>
    %75 = arith.mulf %0, %74 : vector<36x45xf32>
    %76 = arith.truncf %75 : vector<36x45xf32> to vector<36x45xbf16>
    %c0_38 = arith.constant 0 : index
    %c0_39 = arith.constant 0 : index
    %77 = vector.load %arg7[%c0_38, %c0_39] : memref<45x80xbf16, #tpu.memory_space<vmem>>, vector<45x80xbf16>
    %cst_40 = arith.constant dense<0.000000e+00> : vector<36x80xf32>
    %78 = tpu.matmul %76, %77, %cst_40 {dimension_numbers = #tpu.dot_dimension_numbers<[1], [0], [0], [1], [0, 0, 1, 1], [], []>} : vector<36x45xbf16>, vector<45x80xbf16>, vector<36x80xf32> -> vector<36x80xf32>
    %c0_41 = arith.constant 0 : index
    %c0_42 = arith.constant 0 : index
    %79 = vector.load %arg14[%c0_41, %c0_42] : memref<18x256xf32, #tpu.memory_space<vmem>>, vector<1x80xf32>
    %80 = vector.broadcast %79 : vector<1x80xf32> to vector<36x80xf32>
    %81 = arith.addf %78, %80 : vector<36x80xf32>
    %cst_43 = arith.constant 0.000000e+00 : f32
    %82 = vector.broadcast %cst_43 : f32 to vector<36x80xf32>
    %83 = arith.maximumf %81, %82 : vector<36x80xf32>
    %84 = arith.truncf %83 : vector<36x80xf32> to vector<36x80xbf16>
    %c0_44 = arith.constant 0 : index
    %c0_45 = arith.constant 0 : index
    %85 = vector.load %arg8[%c0_44, %c0_45] : memref<80x32xbf16, #tpu.memory_space<vmem>>, vector<80x32xbf16>
    %cst_46 = arith.constant dense<0.000000e+00> : vector<36x32xf32>
    %86 = tpu.matmul %84, %85, %cst_46 {dimension_numbers = #tpu.dot_dimension_numbers<[1], [0], [0], [1], [0, 0, 1, 1], [], []>} : vector<36x80xbf16>, vector<80x32xbf16>, vector<36x32xf32> -> vector<36x32xf32>
    %c1_47 = arith.constant 1 : index
    %c0_48 = arith.constant 0 : index
    %87 = vector.load %arg14[%c1_47, %c0_48] : memref<18x256xf32, #tpu.memory_space<vmem>>, vector<1x32xf32>
    %88 = vector.broadcast %87 : vector<1x32xf32> to vector<36x32xf32>
    %89 = arith.addf %86, %88 : vector<36x32xf32>
    %cst_49 = arith.constant 0.000000e+00 : f32
    %90 = vector.broadcast %cst_49 : f32 to vector<36x32xf32>
    %91 = arith.maximumf %89, %90 : vector<36x32xf32>
    %c0_50 = arith.constant 0 : index
    %c0_51 = arith.constant 0 : index
    %92 = vector.load %arg18[%c0_50, %c0_51] : memref<36x32xf32, #tpu.memory_space<vmem>>, vector<36x32xf32>
    tpu.vector_store %arg18[%c0_50, %c0_51], %91 {strides = array<i32>} : memref<36x32xf32, #tpu.memory_space<vmem>>, vector<36x32xf32>,
    %c0_52 = arith.constant 0 : index
    %c0_53 = arith.constant 0 : index
    %93 = tpu.strided_load %arg18[%c0_52, %c0_53] {strides = array<i32: 18, 1>} : memref<36x32xf32, #tpu.memory_space<vmem>>, vector<2x32xf32>
    %c1_54 = arith.constant 1 : index
    %c0_55 = arith.constant 0 : index
    %94 = tpu.strided_load %arg18[%c1_54, %c0_55] {strides = array<i32: 18, 1>} : memref<36x32xf32, #tpu.memory_space<vmem>>, vector<2x32xf32>
    %c2 = arith.constant 2 : index
    %c0_56 = arith.constant 0 : index
    %95 = tpu.strided_load %arg18[%c2, %c0_56] {strides = array<i32: 18, 1>} : memref<36x32xf32, #tpu.memory_space<vmem>>, vector<2x32xf32>
    %c3 = arith.constant 3 : index
    %c0_57 = arith.constant 0 : index
    %96 = tpu.strided_load %arg18[%c3, %c0_57] {strides = array<i32: 18, 1>} : memref<36x32xf32, #tpu.memory_space<vmem>>, vector<2x32xf32>
    %c4 = arith.constant 4 : index
    %c0_58 = arith.constant 0 : index
    %97 = tpu.strided_load %arg18[%c4, %c0_58] {strides = array<i32: 18, 1>} : memref<36x32xf32, #tpu.memory_space<vmem>>, vector<2x32xf32>
    %c5_59 = arith.constant 5 : index
    %c0_60 = arith.constant 0 : index
    %98 = tpu.strided_load %arg18[%c5_59, %c0_60] {strides = array<i32: 18, 1>} : memref<36x32xf32, #tpu.memory_space<vmem>>, vector<2x32xf32>
    %c6 = arith.constant 6 : index
    %c0_61 = arith.constant 0 : index
    %99 = tpu.strided_load %arg18[%c6, %c0_61] {strides = array<i32: 18, 1>} : memref<36x32xf32, #tpu.memory_space<vmem>>, vector<2x32xf32>
    %c7 = arith.constant 7 : index
    %c0_62 = arith.constant 0 : index
    %100 = tpu.strided_load %arg18[%c7, %c0_62] {strides = array<i32: 18, 1>} : memref<36x32xf32, #tpu.memory_space<vmem>>, vector<2x32xf32>
    %c8 = arith.constant 8 : index
    %c0_63 = arith.constant 0 : index
    %101 = tpu.strided_load %arg18[%c8, %c0_63] {strides = array<i32: 18, 1>} : memref<36x32xf32, #tpu.memory_space<vmem>>, vector<2x32xf32>
    %102 = tpu.concatenate %93, %94, %95, %96, %97, %98, %99, %100, %101 in 1 : vector<2x32xf32>, vector<2x32xf32>, vector<2x32xf32>, vector<2x32xf32>, vector<2x32xf32>, vector<2x32xf32>, vector<2x32xf32>, vector<2x32xf32>, vector<2x32xf32> -> vector<2x288xf32>
    %c9 = arith.constant 9 : index
    %c0_64 = arith.constant 0 : index
    %103 = tpu.strided_load %arg18[%c9, %c0_64] {strides = array<i32: 18, 1>} : memref<36x32xf32, #tpu.memory_space<vmem>>, vector<2x32xf32>
    %c10 = arith.constant 10 : index
    %c0_65 = arith.constant 0 : index
    %104 = tpu.strided_load %arg18[%c10, %c0_65] {strides = array<i32: 18, 1>} : memref<36x32xf32, #tpu.memory_space<vmem>>, vector<2x32xf32>
    %c11 = arith.constant 11 : index
    %c0_66 = arith.constant 0 : index
    %105 = tpu.strided_load %arg18[%c11, %c0_66] {strides = array<i32: 18, 1>} : memref<36x32xf32, #tpu.memory_space<vmem>>, vector<2x32xf32>
    %c12 = arith.constant 12 : index
    %c0_67 = arith.constant 0 : index
    %106 = tpu.strided_load %arg18[%c12, %c0_67] {strides = array<i32: 18, 1>} : memref<36x32xf32, #tpu.memory_space<vmem>>, vector<2x32xf32>
    %c13 = arith.constant 13 : index
    %c0_68 = arith.constant 0 : index
    %107 = tpu.strided_load %arg18[%c13, %c0_68] {strides = array<i32: 18, 1>} : memref<36x32xf32, #tpu.memory_space<vmem>>, vector<2x32xf32>
    %c14 = arith.constant 14 : index
    %c0_69 = arith.constant 0 : index
    %108 = tpu.strided_load %arg18[%c14, %c0_69] {strides = array<i32: 18, 1>} : memref<36x32xf32, #tpu.memory_space<vmem>>, vector<2x32xf32>
    %c15 = arith.constant 15 : index
    %c0_70 = arith.constant 0 : index
    %109 = tpu.strided_load %arg18[%c15, %c0_70] {strides = array<i32: 18, 1>} : memref<36x32xf32, #tpu.memory_space<vmem>>, vector<2x32xf32>
    %c16 = arith.constant 16 : index
    %c0_71 = arith.constant 0 : index
    %110 = tpu.strided_load %arg18[%c16, %c0_71] {strides = array<i32: 18, 1>} : memref<36x32xf32, #tpu.memory_space<vmem>>, vector<2x32xf32>
    %c17 = arith.constant 17 : index
    %c0_72 = arith.constant 0 : index
    %111 = tpu.strided_load %arg18[%c17, %c0_72] {strides = array<i32: 18, 1>} : memref<36x32xf32, #tpu.memory_space<vmem>>, vector<2x32xf32>
    %112 = tpu.concatenate %103, %104, %105, %106, %107, %108, %109, %110, %111 in 1 : vector<2x32xf32>, vector<2x32xf32>, vector<2x32xf32>, vector<2x32xf32>, vector<2x32xf32>, vector<2x32xf32>, vector<2x32xf32>, vector<2x32xf32>, vector<2x32xf32> -> vector<2x288xf32>
    %c2_73 = arith.constant 2 : index
    %c0_74 = arith.constant 0 : index
    %113 = vector.load %arg14[%c2_73, %c0_74] : memref<18x256xf32, #tpu.memory_space<vmem>>, vector<1x64xf32>
    %114 = arith.truncf %102 : vector<2x288xf32> to vector<2x288xbf16>
    %c0_75 = arith.constant 0 : index
    %c0_76 = arith.constant 0 : index
    %115 = vector.load %arg9[%c0_75, %c0_76] : memref<288x64xbf16, #tpu.memory_space<vmem>>, vector<288x64xbf16>
    %cst_77 = arith.constant dense<0.000000e+00> : vector<2x64xf32>
    %116 = tpu.matmul %114, %115, %cst_77 {dimension_numbers = #tpu.dot_dimension_numbers<[1], [0], [0], [1], [0, 0, 1, 1], [], []>} : vector<2x288xbf16>, vector<288x64xbf16>, vector<2x64xf32> -> vector<2x64xf32>
    %117 = vector.broadcast %113 : vector<1x64xf32> to vector<2x64xf32>
    %118 = arith.addf %116, %117 : vector<2x64xf32>
    %cst_78 = arith.constant 0.000000e+00 : f32
    %119 = vector.broadcast %cst_78 : f32 to vector<2x64xf32>
    %120 = arith.maximumf %118, %119 : vector<2x64xf32>
    %121 = arith.truncf %112 : vector<2x288xf32> to vector<2x288xbf16>
    %c0_79 = arith.constant 0 : index
    %c0_80 = arith.constant 0 : index
    %122 = vector.load %arg9[%c0_79, %c0_80] : memref<288x64xbf16, #tpu.memory_space<vmem>>, vector<288x64xbf16>
    %cst_81 = arith.constant dense<0.000000e+00> : vector<2x64xf32>
    %123 = tpu.matmul %121, %122, %cst_81 {dimension_numbers = #tpu.dot_dimension_numbers<[1], [0], [0], [1], [0, 0, 1, 1], [], []>} : vector<2x288xbf16>, vector<288x64xbf16>, vector<2x64xf32> -> vector<2x64xf32>
    %124 = vector.broadcast %113 : vector<1x64xf32> to vector<2x64xf32>
    %125 = arith.addf %123, %124 : vector<2x64xf32>
    %cst_82 = arith.constant 0.000000e+00 : f32
    %126 = vector.broadcast %cst_82 : f32 to vector<2x64xf32>
    %127 = arith.maximumf %125, %126 : vector<2x64xf32>
    %128 = tpu.concatenate %120, %127 in 1 : vector<2x64xf32>, vector<2x64xf32> -> vector<2x128xf32>
    %129 = arith.truncf %128 : vector<2x128xf32> to vector<2x128xbf16>
    %c0_83 = arith.constant 0 : index
    %c0_84 = arith.constant 0 : index
    %130 = vector.load %arg10[%c0_83, %c0_84] : memref<128x128xbf16, #tpu.memory_space<vmem>>, vector<128x128xbf16>
    %cst_85 = arith.constant dense<0.000000e+00> : vector<2x128xf32>
    %131 = tpu.matmul %129, %130, %cst_85 {dimension_numbers = #tpu.dot_dimension_numbers<[1], [0], [0], [1], [0, 0, 1, 1], [], []>} : vector<2x128xbf16>, vector<128x128xbf16>, vector<2x128xf32> -> vector<2x128xf32>
    %c3_86 = arith.constant 3 : index
    %c0_87 = arith.constant 0 : index
    %132 = vector.load %arg14[%c3_86, %c0_87] : memref<18x256xf32, #tpu.memory_space<vmem>>, vector<1x128xf32>
    %133 = vector.broadcast %132 : vector<1x128xf32> to vector<2x128xf32>
    %134 = arith.addf %131, %133 : vector<2x128xf32>
    %135 = arith.truncf %134 : vector<2x128xf32> to vector<2x128xbf16>
    %c0_88 = arith.constant 0 : index
    %c0_89 = arith.constant 0 : index
    %c0_90 = arith.constant 0 : index
    %136 = vector.load %arg11[%c0_88, %c0_89, %c0_90] : memref<2x128x128xbf16, #tpu.memory_space<vmem>>, vector<1x128x128xbf16>
    %137 = vector.shape_cast %136 : vector<1x128x128xbf16> to vector<128x128xbf16>
    %cst_91 = arith.constant dense<0.000000e+00> : vector<2x128xf32>
    %138 = tpu.matmul %135, %137, %cst_91 {dimension_numbers = #tpu.dot_dimension_numbers<[1], [0], [0], [1], [0, 0, 1, 1], [], []>} : vector<2x128xbf16>, vector<128x128xbf16>, vector<2x128xf32> -> vector<2x128xf32>
    %139 = arith.addf %138, %134 : vector<2x128xf32>
    %c6_92 = arith.constant 6 : index
    %c0_93 = arith.constant 0 : index
    %140 = vector.load %arg14[%c6_92, %c0_93] : memref<18x256xf32, #tpu.memory_space<vmem>>, vector<1x128xf32>
    %c7_94 = arith.constant 7 : index
    %c0_95 = arith.constant 0 : index
    %141 = vector.load %arg14[%c7_94, %c0_95] : memref<18x256xf32, #tpu.memory_space<vmem>>, vector<1x128xf32>
    %cst_96 = arith.constant dense<0.000000e+00> : vector<2xf32>
    %142 = vector.multi_reduction <add>, %139, %cst_96 [1] : vector<2x128xf32> to vector<2xf32>
    %143 = vector.shape_cast %142 : vector<2xf32> to vector<2x1xf32>
    %cst_97 = arith.constant 1.280000e+02 : f32
    %144 = vector.broadcast %cst_97 : f32 to vector<2x1xf32>
    %145 = arith.divf %143, %144 : vector<2x1xf32>
    %146 = vector.broadcast %145 : vector<2x1xf32> to vector<2x128xf32>
    %147 = arith.subf %139, %146 : vector<2x128xf32>
    %148 = arith.mulf %147, %147 : vector<2x128xf32>
    %cst_98 = arith.constant dense<0.000000e+00> : vector<2xf32>
    %149 = vector.multi_reduction <add>, %148, %cst_98 [1] : vector<2x128xf32> to vector<2xf32>
    %150 = vector.shape_cast %149 : vector<2xf32> to vector<2x1xf32>
    %cst_99 = arith.constant 1.280000e+02 : f32
    %151 = vector.broadcast %cst_99 : f32 to vector<2x1xf32>
    %152 = arith.divf %150, %151 : vector<2x1xf32>
    %cst_100 = arith.constant 9.99999997E-7 : f32
    %153 = vector.broadcast %cst_100 : f32 to vector<2x1xf32>
    %154 = arith.addf %152, %153 : vector<2x1xf32>
    %155 = math.rsqrt %154 : vector<2x1xf32>
    %156 = vector.broadcast %155 : vector<2x1xf32> to vector<2x128xf32>
    %157 = arith.mulf %147, %156 : vector<2x128xf32>
    %158 = vector.broadcast %140 : vector<1x128xf32> to vector<2x128xf32>
    %159 = arith.mulf %157, %158 : vector<2x128xf32>
    %160 = vector.broadcast %141 : vector<1x128xf32> to vector<2x128xf32>
    %161 = arith.addf %159, %160 : vector<2x128xf32>
    %162 = arith.truncf %161 : vector<2x128xf32> to vector<2x128xbf16>
    %c0_101 = arith.constant 0 : index
    %c0_102 = arith.constant 0 : index
    %c0_103 = arith.constant 0 : index
    %163 = vector.load %arg12[%c0_101, %c0_102, %c0_103] : memref<2x128x256xbf16, #tpu.memory_space<vmem>>, vector<1x128x256xbf16>
    %164 = vector.shape_cast %163 : vector<1x128x256xbf16> to vector<128x256xbf16>
    %cst_104 = arith.constant dense<0.000000e+00> : vector<2x256xf32>
    %165 = tpu.matmul %162, %164, %cst_104 {dimension_numbers = #tpu.dot_dimension_numbers<[1], [0], [0], [1], [0, 0, 1, 1], [], []>} : vector<2x128xbf16>, vector<128x256xbf16>, vector<2x256xf32> -> vector<2x256xf32>
    %c8_105 = arith.constant 8 : index
    %c0_106 = arith.constant 0 : index
    %166 = vector.load %arg14[%c8_105, %c0_106] : memref<18x256xf32, #tpu.memory_space<vmem>>, vector<1x256xf32>
    %167 = vector.broadcast %166 : vector<1x256xf32> to vector<2x256xf32>
    %168 = arith.addf %165, %167 : vector<2x256xf32>
    %cst_107 = arith.constant 5.000000e-01 : f32
    %169 = vector.broadcast %cst_107 : f32 to vector<2x256xf32>
    %170 = arith.mulf %169, %168 : vector<2x256xf32>
    %cst_108 = arith.constant 0.707106769 : f32
    %171 = vector.broadcast %cst_108 : f32 to vector<2x256xf32>
    %172 = arith.mulf %168, %171 : vector<2x256xf32>
    %173 = math.absf %172 : vector<2x256xf32>
    %cst_109 = arith.constant 0.327591091 : f32
    %174 = vector.broadcast %cst_109 : f32 to vector<2x256xf32>
    %175 = arith.mulf %174, %173 : vector<2x256xf32>
    %cst_110 = arith.constant 1.000000e+00 : f32
    %176 = vector.broadcast %cst_110 : f32 to vector<2x256xf32>
    %177 = arith.addf %176, %175 : vector<2x256xf32>
    %cst_111 = arith.constant 1.000000e+00 : f32
    %178 = vector.broadcast %cst_111 : f32 to vector<2x256xf32>
    %179 = arith.divf %178, %177 : vector<2x256xf32>
    %cst_112 = arith.constant 1.06140542 : f32
    %180 = vector.broadcast %cst_112 : f32 to vector<2x256xf32>
    %181 = arith.mulf %180, %179 : vector<2x256xf32>
    %cst_113 = arith.constant -1.45315206 : f32
    %182 = vector.broadcast %cst_113 : f32 to vector<2x256xf32>
    %183 = arith.addf %181, %182 : vector<2x256xf32>
    %184 = arith.mulf %183, %179 : vector<2x256xf32>
    %cst_114 = arith.constant 1.42141378 : f32
    %185 = vector.broadcast %cst_114 : f32 to vector<2x256xf32>
    %186 = arith.addf %184, %185 : vector<2x256xf32>
    %187 = arith.mulf %186, %179 : vector<2x256xf32>
    %cst_115 = arith.constant -0.284496725 : f32
    %188 = vector.broadcast %cst_115 : f32 to vector<2x256xf32>
    %189 = arith.addf %187, %188 : vector<2x256xf32>
    %190 = arith.mulf %189, %179 : vector<2x256xf32>
    %cst_116 = arith.constant 0.254829586 : f32
    %191 = vector.broadcast %cst_116 : f32 to vector<2x256xf32>
    %192 = arith.addf %190, %191 : vector<2x256xf32>
    %193 = arith.mulf %192, %179 : vector<2x256xf32>
    %cst_117 = arith.constant 0.000000e+00 : f32
    %194 = vector.broadcast %cst_117 : f32 to vector<2x256xf32>
    %195 = arith.subf %194, %173 : vector<2x256xf32>
    %196 = arith.mulf %195, %173 : vector<2x256xf32>
    %197 = math.exp %196 : vector<2x256xf32>
    %198 = arith.mulf %193, %197 : vector<2x256xf32>
    %cst_118 = arith.constant 1.000000e+00 : f32
    %199 = vector.broadcast %cst_118 : f32 to vector<2x256xf32>
    %200 = arith.subf %199, %198 : vector<2x256xf32>
    %cst_119 = arith.constant 0.000000e+00 : f32
    %201 = vector.broadcast %cst_119 : f32 to vector<2x256xf32>
    %202 = arith.cmpf olt, %172, %201 : vector<2x256xf32>
    %cst_120 = arith.constant 0.000000e+00 : f32
    %203 = vector.broadcast %cst_120 : f32 to vector<2x256xf32>
    %204 = arith.subf %203, %200 : vector<2x256xf32>
    %205 = arith.select %202, %204, %200 : vector<2x256xi1>, vector<2x256xf32>
    %cst_121 = arith.constant 1.000000e+00 : f32
    %206 = vector.broadcast %cst_121 : f32 to vector<2x256xf32>
    %207 = arith.addf %206, %205 : vector<2x256xf32>
    %208 = arith.mulf %170, %207 : vector<2x256xf32>
    %209 = arith.truncf %208 : vector<2x256xf32> to vector<2x256xbf16>
    %c0_122 = arith.constant 0 : index
    %c0_123 = arith.constant 0 : index
    %c0_124 = arith.constant 0 : index
    %210 = vector.load %arg13[%c0_122, %c0_123, %c0_124] : memref<2x256x128xbf16, #tpu.memory_space<vmem>>, vector<1x256x128xbf16>
    %211 = vector.shape_cast %210 : vector<1x256x128xbf16> to vector<256x128xbf16>
    %cst_125 = arith.constant dense<0.000000e+00> : vector<2x128xf32>
    %212 = tpu.matmul %209, %211, %cst_125 {dimension_numbers = #tpu.dot_dimension_numbers<[1], [0], [0], [1], [0, 0, 1, 1], [], []>} : vector<2x256xbf16>, vector<256x128xbf16>, vector<2x128xf32> -> vector<2x128xf32>
    %c9_126 = arith.constant 9 : index
    %c0_127 = arith.constant 0 : index
    %213 = vector.load %arg14[%c9_126, %c0_127] : memref<18x256xf32, #tpu.memory_space<vmem>>, vector<1x128xf32>
    %214 = vector.broadcast %213 : vector<1x128xf32> to vector<2x128xf32>
    %215 = arith.addf %212, %214 : vector<2x128xf32>
    %216 = arith.addf %215, %161 : vector<2x128xf32>
    %c10_128 = arith.constant 10 : index
    %c0_129 = arith.constant 0 : index
    %217 = vector.load %arg14[%c10_128, %c0_129] : memref<18x256xf32, #tpu.memory_space<vmem>>, vector<1x128xf32>
    %c11_130 = arith.constant 11 : index
    %c0_131 = arith.constant 0 : index
    %218 = vector.load %arg14[%c11_130, %c0_131] : memref<18x256xf32, #tpu.memory_space<vmem>>, vector<1x128xf32>
    %cst_132 = arith.constant dense<0.000000e+00> : vector<2xf32>
    %219 = vector.multi_reduction <add>, %216, %cst_132 [1] : vector<2x128xf32> to vector<2xf32>
    %220 = vector.shape_cast %219 : vector<2xf32> to vector<2x1xf32>
    %cst_133 = arith.constant 1.280000e+02 : f32
    %221 = vector.broadcast %cst_133 : f32 to vector<2x1xf32>
    %222 = arith.divf %220, %221 : vector<2x1xf32>
    %223 = vector.broadcast %222 : vector<2x1xf32> to vector<2x128xf32>
    %224 = arith.subf %216, %223 : vector<2x128xf32>
    %225 = arith.mulf %224, %224 : vector<2x128xf32>
    %cst_134 = arith.constant dense<0.000000e+00> : vector<2xf32>
    %226 = vector.multi_reduction <add>, %225, %cst_134 [1] : vector<2x128xf32> to vector<2xf32>
    %227 = vector.shape_cast %226 : vector<2xf32> to vector<2x1xf32>
    %cst_135 = arith.constant 1.280000e+02 : f32
    %228 = vector.broadcast %cst_135 : f32 to vector<2x1xf32>
    %229 = arith.divf %227, %228 : vector<2x1xf32>
    %cst_136 = arith.constant 9.99999997E-7 : f32
    %230 = vector.broadcast %cst_136 : f32 to vector<2x1xf32>
    %231 = arith.addf %229, %230 : vector<2x1xf32>
    %232 = math.rsqrt %231 : vector<2x1xf32>
    %233 = vector.broadcast %232 : vector<2x1xf32> to vector<2x128xf32>
    %234 = arith.mulf %224, %233 : vector<2x128xf32>
    %235 = vector.broadcast %217 : vector<1x128xf32> to vector<2x128xf32>
    %236 = arith.mulf %234, %235 : vector<2x128xf32>
    %237 = vector.broadcast %218 : vector<1x128xf32> to vector<2x128xf32>
    %238 = arith.addf %236, %237 : vector<2x128xf32>
    %239 = arith.truncf %238 : vector<2x128xf32> to vector<2x128xbf16>
    %c1_137 = arith.constant 1 : index
    %c0_138 = arith.constant 0 : index
    %c0_139 = arith.constant 0 : index
    %240 = vector.load %arg11[%c1_137, %c0_138, %c0_139] : memref<2x128x128xbf16, #tpu.memory_space<vmem>>, vector<1x128x128xbf16>
    %241 = vector.shape_cast %240 : vector<1x128x128xbf16> to vector<128x128xbf16>
    %cst_140 = arith.constant dense<0.000000e+00> : vector<2x128xf32>
    %242 = tpu.matmul %239, %241, %cst_140 {dimension_numbers = #tpu.dot_dimension_numbers<[1], [0], [0], [1], [0, 0, 1, 1], [], []>} : vector<2x128xbf16>, vector<128x128xbf16>, vector<2x128xf32> -> vector<2x128xf32>
    %243 = arith.addf %242, %238 : vector<2x128xf32>
    %c12_141 = arith.constant 12 : index
    %c0_142 = arith.constant 0 : index
    %244 = vector.load %arg14[%c12_141, %c0_142] : memref<18x256xf32, #tpu.memory_space<vmem>>, vector<1x128xf32>
    %c13_143 = arith.constant 13 : index
    %c0_144 = arith.constant 0 : index
    %245 = vector.load %arg14[%c13_143, %c0_144] : memref<18x256xf32, #tpu.memory_space<vmem>>, vector<1x128xf32>
    %cst_145 = arith.constant dense<0.000000e+00> : vector<2xf32>
    %246 = vector.multi_reduction <add>, %243, %cst_145 [1] : vector<2x128xf32> to vector<2xf32>
    %247 = vector.shape_cast %246 : vector<2xf32> to vector<2x1xf32>
    %cst_146 = arith.constant 1.280000e+02 : f32
    %248 = vector.broadcast %cst_146 : f32 to vector<2x1xf32>
    %249 = arith.divf %247, %248 : vector<2x1xf32>
    %250 = vector.broadcast %249 : vector<2x1xf32> to vector<2x128xf32>
    %251 = arith.subf %243, %250 : vector<2x128xf32>
    %252 = arith.mulf %251, %251 : vector<2x128xf32>
    %cst_147 = arith.constant dense<0.000000e+00> : vector<2xf32>
    %253 = vector.multi_reduction <add>, %252, %cst_147 [1] : vector<2x128xf32> to vector<2xf32>
    %254 = vector.shape_cast %253 : vector<2xf32> to vector<2x1xf32>
    %cst_148 = arith.constant 1.280000e+02 : f32
    %255 = vector.broadcast %cst_148 : f32 to vector<2x1xf32>
    %256 = arith.divf %254, %255 : vector<2x1xf32>
    %cst_149 = arith.constant 9.99999997E-7 : f32
    %257 = vector.broadcast %cst_149 : f32 to vector<2x1xf32>
    %258 = arith.addf %256, %257 : vector<2x1xf32>
    %259 = math.rsqrt %258 : vector<2x1xf32>
    %260 = vector.broadcast %259 : vector<2x1xf32> to vector<2x128xf32>
    %261 = arith.mulf %251, %260 : vector<2x128xf32>
    %262 = vector.broadcast %244 : vector<1x128xf32> to vector<2x128xf32>
    %263 = arith.mulf %261, %262 : vector<2x128xf32>
    %264 = vector.broadcast %245 : vector<1x128xf32> to vector<2x128xf32>
    %265 = arith.addf %263, %264 : vector<2x128xf32>
    %266 = arith.truncf %265 : vector<2x128xf32> to vector<2x128xbf16>
    %c1_150 = arith.constant 1 : index
    %c0_151 = arith.constant 0 : index
    %c0_152 = arith.constant 0 : index
    %267 = vector.load %arg12[%c1_150, %c0_151, %c0_152] : memref<2x128x256xbf16, #tpu.memory_space<vmem>>, vector<1x128x256xbf16>
    %268 = vector.shape_cast %267 : vector<1x128x256xbf16> to vector<128x256xbf16>
    %cst_153 = arith.constant dense<0.000000e+00> : vector<2x256xf32>
    %269 = tpu.matmul %266, %268, %cst_153 {dimension_numbers = #tpu.dot_dimension_numbers<[1], [0], [0], [1], [0, 0, 1, 1], [], []>} : vector<2x128xbf16>, vector<128x256xbf16>, vector<2x256xf32> -> vector<2x256xf32>
    %c14_154 = arith.constant 14 : index
    %c0_155 = arith.constant 0 : index
    %270 = vector.load %arg14[%c14_154, %c0_155] : memref<18x256xf32, #tpu.memory_space<vmem>>, vector<1x256xf32>
    %271 = vector.broadcast %270 : vector<1x256xf32> to vector<2x256xf32>
    %272 = arith.addf %269, %271 : vector<2x256xf32>
    %cst_156 = arith.constant 5.000000e-01 : f32
    %273 = vector.broadcast %cst_156 : f32 to vector<2x256xf32>
    %274 = arith.mulf %273, %272 : vector<2x256xf32>
    %cst_157 = arith.constant 0.707106769 : f32
    %275 = vector.broadcast %cst_157 : f32 to vector<2x256xf32>
    %276 = arith.mulf %272, %275 : vector<2x256xf32>
    %277 = math.absf %276 : vector<2x256xf32>
    %cst_158 = arith.constant 0.327591091 : f32
    %278 = vector.broadcast %cst_158 : f32 to vector<2x256xf32>
    %279 = arith.mulf %278, %277 : vector<2x256xf32>
    %cst_159 = arith.constant 1.000000e+00 : f32
    %280 = vector.broadcast %cst_159 : f32 to vector<2x256xf32>
    %281 = arith.addf %280, %279 : vector<2x256xf32>
    %cst_160 = arith.constant 1.000000e+00 : f32
    %282 = vector.broadcast %cst_160 : f32 to vector<2x256xf32>
    %283 = arith.divf %282, %281 : vector<2x256xf32>
    %cst_161 = arith.constant 1.06140542 : f32
    %284 = vector.broadcast %cst_161 : f32 to vector<2x256xf32>
    %285 = arith.mulf %284, %283 : vector<2x256xf32>
    %cst_162 = arith.constant -1.45315206 : f32
    %286 = vector.broadcast %cst_162 : f32 to vector<2x256xf32>
    %287 = arith.addf %285, %286 : vector<2x256xf32>
    %288 = arith.mulf %287, %283 : vector<2x256xf32>
    %cst_163 = arith.constant 1.42141378 : f32
    %289 = vector.broadcast %cst_163 : f32 to vector<2x256xf32>
    %290 = arith.addf %288, %289 : vector<2x256xf32>
    %291 = arith.mulf %290, %283 : vector<2x256xf32>
    %cst_164 = arith.constant -0.284496725 : f32
    %292 = vector.broadcast %cst_164 : f32 to vector<2x256xf32>
    %293 = arith.addf %291, %292 : vector<2x256xf32>
    %294 = arith.mulf %293, %283 : vector<2x256xf32>
    %cst_165 = arith.constant 0.254829586 : f32
    %295 = vector.broadcast %cst_165 : f32 to vector<2x256xf32>
    %296 = arith.addf %294, %295 : vector<2x256xf32>
    %297 = arith.mulf %296, %283 : vector<2x256xf32>
    %cst_166 = arith.constant 0.000000e+00 : f32
    %298 = vector.broadcast %cst_166 : f32 to vector<2x256xf32>
    %299 = arith.subf %298, %277 : vector<2x256xf32>
    %300 = arith.mulf %299, %277 : vector<2x256xf32>
    %301 = math.exp %300 : vector<2x256xf32>
    %302 = arith.mulf %297, %301 : vector<2x256xf32>
    %cst_167 = arith.constant 1.000000e+00 : f32
    %303 = vector.broadcast %cst_167 : f32 to vector<2x256xf32>
    %304 = arith.subf %303, %302 : vector<2x256xf32>
    %cst_168 = arith.constant 0.000000e+00 : f32
    %305 = vector.broadcast %cst_168 : f32 to vector<2x256xf32>
    %306 = arith.cmpf olt, %276, %305 : vector<2x256xf32>
    %cst_169 = arith.constant 0.000000e+00 : f32
    %307 = vector.broadcast %cst_169 : f32 to vector<2x256xf32>
    %308 = arith.subf %307, %304 : vector<2x256xf32>
    %309 = arith.select %306, %308, %304 : vector<2x256xi1>, vector<2x256xf32>
    %cst_170 = arith.constant 1.000000e+00 : f32
    %310 = vector.broadcast %cst_170 : f32 to vector<2x256xf32>
    %311 = arith.addf %310, %309 : vector<2x256xf32>
    %312 = arith.mulf %274, %311 : vector<2x256xf32>
    %313 = arith.truncf %312 : vector<2x256xf32> to vector<2x256xbf16>
    %c1_171 = arith.constant 1 : index
    %c0_172 = arith.constant 0 : index
    %c0_173 = arith.constant 0 : index
    %314 = vector.load %arg13[%c1_171, %c0_172, %c0_173] : memref<2x256x128xbf16, #tpu.memory_space<vmem>>, vector<1x256x128xbf16>
    %315 = vector.shape_cast %314 : vector<1x256x128xbf16> to vector<256x128xbf16>
    %cst_174 = arith.constant dense<0.000000e+00> : vector<2x128xf32>
    %316 = tpu.matmul %313, %315, %cst_174 {dimension_numbers = #tpu.dot_dimension_numbers<[1], [0], [0], [1], [0, 0, 1, 1], [], []>} : vector<2x256xbf16>, vector<256x128xbf16>, vector<2x128xf32> -> vector<2x128xf32>
    %c15_175 = arith.constant 15 : index
    %c0_176 = arith.constant 0 : index
    %317 = vector.load %arg14[%c15_175, %c0_176] : memref<18x256xf32, #tpu.memory_space<vmem>>, vector<1x128xf32>
    %318 = vector.broadcast %317 : vector<1x128xf32> to vector<2x128xf32>
    %319 = arith.addf %316, %318 : vector<2x128xf32>
    %320 = arith.addf %319, %265 : vector<2x128xf32>
    %c16_177 = arith.constant 16 : index
    %c0_178 = arith.constant 0 : index
    %321 = vector.load %arg14[%c16_177, %c0_178] : memref<18x256xf32, #tpu.memory_space<vmem>>, vector<1x128xf32>
    %c17_179 = arith.constant 17 : index
    %c0_180 = arith.constant 0 : index
    %322 = vector.load %arg14[%c17_179, %c0_180] : memref<18x256xf32, #tpu.memory_space<vmem>>, vector<1x128xf32>
    %cst_181 = arith.constant dense<0.000000e+00> : vector<2xf32>
    %323 = vector.multi_reduction <add>, %320, %cst_181 [1] : vector<2x128xf32> to vector<2xf32>
    %324 = vector.shape_cast %323 : vector<2xf32> to vector<2x1xf32>
    %cst_182 = arith.constant 1.280000e+02 : f32
    %325 = vector.broadcast %cst_182 : f32 to vector<2x1xf32>
    %326 = arith.divf %324, %325 : vector<2x1xf32>
    %327 = vector.broadcast %326 : vector<2x1xf32> to vector<2x128xf32>
    %328 = arith.subf %320, %327 : vector<2x128xf32>
    %329 = arith.mulf %328, %328 : vector<2x128xf32>
    %cst_183 = arith.constant dense<0.000000e+00> : vector<2xf32>
    %330 = vector.multi_reduction <add>, %329, %cst_183 [1] : vector<2x128xf32> to vector<2xf32>
    %331 = vector.shape_cast %330 : vector<2xf32> to vector<2x1xf32>
    %cst_184 = arith.constant 1.280000e+02 : f32
    %332 = vector.broadcast %cst_184 : f32 to vector<2x1xf32>
    %333 = arith.divf %331, %332 : vector<2x1xf32>
    %cst_185 = arith.constant 9.99999997E-7 : f32
    %334 = vector.broadcast %cst_185 : f32 to vector<2x1xf32>
    %335 = arith.addf %333, %334 : vector<2x1xf32>
    %336 = math.rsqrt %335 : vector<2x1xf32>
    %337 = vector.broadcast %336 : vector<2x1xf32> to vector<2x128xf32>
    %338 = arith.mulf %328, %337 : vector<2x128xf32>
    %339 = vector.broadcast %321 : vector<1x128xf32> to vector<2x128xf32>
    %340 = arith.mulf %338, %339 : vector<2x128xf32>
    %341 = vector.broadcast %322 : vector<1x128xf32> to vector<2x128xf32>
    %342 = arith.addf %340, %341 : vector<2x128xf32>
    %c0_186 = arith.constant 0 : index
    %c0_187 = arith.constant 0 : index
    %343 = vector.load %arg16[%c0_186, %c0_187] : memref<2x128xf32, #tpu.memory_space<vmem>>, vector<2x128xf32>
    tpu.vector_store %arg16[%c0_186, %c0_187], %342 {strides = array<i32>} : memref<2x128xf32, #tpu.memory_space<vmem>>, vector<2x128xf32>,
    %c0_188 = arith.constant 0 : index
    %c0_189 = arith.constant 0 : index
    %344 = vector.load %arg15[%c0_188, %c0_189] : memref<128x3xf32, #tpu.memory_space<vmem>>, vector<128x3xf32>
    %cst_190 = arith.constant dense<0.000000e+00> : vector<2x3xf32>
    %345 = tpu.matmul %342, %344, %cst_190 {dimension_numbers = #tpu.dot_dimension_numbers<[1], [0], [0], [1], [0, 0, 1, 1], [], []>} : vector<2x128xf32>, vector<128x3xf32>, vector<2x3xf32> -> vector<2x3xf32>
    %c4_191 = arith.constant 4 : index
    %c0_192 = arith.constant 0 : index
    %346 = vector.load %arg14[%c4_191, %c0_192] : memref<18x256xf32, #tpu.memory_space<vmem>>, vector<1x3xf32>
    %347 = vector.broadcast %346 : vector<1x3xf32> to vector<2x3xf32>
    %348 = arith.addf %345, %347 : vector<2x3xf32>
    %cst_193 = arith.constant dense<0xFF800000> : vector<2xf32>
    %349 = vector.multi_reduction <maximumf>, %348, %cst_193 [1] : vector<2x3xf32> to vector<2xf32>
    %350 = vector.shape_cast %349 : vector<2xf32> to vector<2x1xf32>
    %351 = vector.broadcast %350 : vector<2x1xf32> to vector<2x3xf32>
    %352 = arith.subf %348, %351 : vector<2x3xf32>
    %353 = math.exp %352 : vector<2x3xf32>
    %cst_194 = arith.constant dense<0.000000e+00> : vector<2xf32>
    %354 = vector.multi_reduction <add>, %353, %cst_194 [1] : vector<2x3xf32> to vector<2xf32>
    %355 = vector.shape_cast %354 : vector<2xf32> to vector<2x1xf32>
    %356 = tpu.reciprocal %355 {approx = true} : vector<2x1xf32> -> vector<2x1xf32>
    %357 = vector.broadcast %356 : vector<2x1xf32> to vector<2x3xf32>
    %358 = arith.mulf %353, %357 : vector<2x3xf32>
    %c0_195 = arith.constant 0 : index
    %c0_196 = arith.constant 0 : index
    %359 = vector.load %arg17[%c0_195, %c0_196] : memref<2x3xf32, #tpu.memory_space<vmem>>, vector<2x3xf32>
    tpu.vector_store %arg17[%c0_195, %c0_196], %358 {strides = array<i32>} : memref<2x3xf32, #tpu.memory_space<vmem>>, vector<2x3xf32>,
    return
  }
}

</mosaic_0001>

<llo_original>
// kernel: transformer_encoder_forward.1
$region0: #{transformer_encoder_forward.1}
  #allocation0 [shape = 'u32[]', space=smem, size = 0x4, offset = 0x4, fixed_abs, tag = 'smem constant byte address 0x4 - core index']
  #allocation1 [shape = 'u32[144,128]{1,0:T(1,128)}', space=vmem, size = 0x12000, scoped, tag = 'internal scratch']
  #allocation2 [shape = 'f32[36,32]{1,0:T(8,128)}', space=vmem, size = 0x5000, scoped, tag = 'scratch operand']
  %s0 = inlined_call_operand.vmem [shape: f32[36,45], index: 0, kind: input, shape index: {}]
  %s1 = inlined_call_operand.vmem [shape: f32[45,45], index: 1, kind: input, shape index: {}]
  %s2 = inlined_call_operand.vmem [shape: f32[45,5], index: 2, kind: input, shape index: {}]
  %s3 = inlined_call_operand.vmem [shape: f32[2,36], index: 3, kind: input, shape index: {}]
  %s4 = inlined_call_operand.vmem [shape: f32[36,2], index: 4, kind: input, shape index: {}]
  %s5 = inlined_call_operand.vmem [shape: f32[2,25], index: 5, kind: input, shape index: {}]
  %s6 = inlined_call_operand.vmem [shape: f32[25,45], index: 6, kind: input, shape index: {}]
  %s7 = inlined_call_operand.vmem [shape: bf16[45,80], index: 7, kind: input, shape index: {}]
  %s8 = inlined_call_operand.vmem [shape: bf16[80,32], index: 8, kind: input, shape index: {}]
  %s9 = inlined_call_operand.vmem [shape: bf16[288,64], index: 9, kind: input, shape index: {}]
  %s10 = inlined_call_operand.vmem [shape: bf16[128,128], index: 10, kind: input, shape index: {}]
  %s11 = inlined_call_operand.vmem [shape: bf16[2,128,128], index: 11, kind: input, shape index: {}]
  %s12 = inlined_call_operand.vmem [shape: bf16[2,128,256], index: 12, kind: input, shape index: {}]
  %s13 = inlined_call_operand.vmem [shape: bf16[2,256,128], index: 13, kind: input, shape index: {}]
  %s14 = inlined_call_operand.vmem [shape: f32[18,256], index: 14, kind: input, shape index: {}]
  %s15 = inlined_call_operand.vmem [shape: f32[128,3], index: 15, kind: input, shape index: {}]
  %s16 = inlined_call_operand.hbm [shape: f32[2,128], index: 16, kind: output, shape index: {0}]
  %s17 = inlined_call_operand.hbm [shape: f32[2,3], index: 17, kind: output, shape index: {1}]
  %18 = xla_tuple %s16, %s17
  %s19 = sld [smem:[#allocation0]]
  $region82: #{transformer_encoder_forward.1} parent=0
    _
  %s21 = ssub.s32 1, %s19
  %s22 = scalar_select 0, %s21, %s19
  $region1: #{transformer_encoder_forward.1} parent=0
    #allocation3 [shape = 'u8[1024]{0}', space=vmem, size = 0x400, scoped, tag = 'output window, operand 0, single buffered']
    #allocation4 [shape = 's32[1]{0}', space=sflag, size = 0x4, scoped, tag = 'scoped memory for transformer_encoder_forward.1']
    #allocation5 [shape = 'u8[1024]{0}', space=vmem, size = 0x400, scoped, tag = 'output window, operand 1, single buffered']
    #allocation6 [shape = 's32[1]{0}', space=sflag, size = 0x4, scoped, tag = 'scoped memory for transformer_encoder_forward.1']
    %23 = vsyncpa [#allocation4], 0
    %24 = vsyncpa [#allocation6], 0
    // Predicated region
    $region2: #{transformer_encoder_forward.1} parent=1 // pred_check
      _
    $region3: #{transformer_encoder_forward.1} parent=1 // pred_check_branch
      %26 = sbr.rel (0) target = $region5
    $region4: #{transformer_encoder_forward.1} parent=1 // pred_region
      _
    $region5: #{transformer_encoder_forward.1} parent=1 // pred_fallthru
      _
    // Predicated region
    $region6: #{transformer_encoder_forward.1} parent=1 // pred_check
      _
    $region7: #{transformer_encoder_forward.1} parent=1 // pred_check_branch
      %28 = sbr.rel (0) target = $region9
    $region8: #{transformer_encoder_forward.1} parent=1 // pred_region
      _
    $region9: #{transformer_encoder_forward.1} parent=1 // pred_fallthru
      _
    // Predicated region
    $region10: #{transformer_encoder_forward.1} parent=1 // pred_check
      _
    $region11: #{transformer_encoder_forward.1} parent=1 // pred_check_branch
      %30 = sbr.rel (0) target = $region13
    $region12: #{transformer_encoder_forward.1} parent=1 // pred_region
      _
    $region13: #{transformer_encoder_forward.1} parent=1 // pred_fallthru
      _
    // Predicated region
    $region14: #{transformer_encoder_forward.1} parent=1 // pred_check
      _
    $region15: #{transformer_encoder_forward.1} parent=1 // pred_check_branch
      %32 = sbr.rel (0) target = $region17
    $region16: #{transformer_encoder_forward.1} parent=1 // pred_region
      _
    $region17: #{transformer_encoder_forward.1} parent=1 // pred_fallthru
      _
    // Predicated region
    $region18: #{transformer_encoder_forward.1} parent=1 // pred_check
      _
    $region19: #{transformer_encoder_forward.1} parent=1 // pred_check_branch
      %34 = sbr.rel (0) target = $region21
    $region20: #{transformer_encoder_forward.1} parent=1 // pred_region
      _
    $region21: #{transformer_encoder_forward.1} parent=1 // pred_fallthru
      _
    // Predicated region
    $region22: #{transformer_encoder_forward.1} parent=1 // pred_check
      _
    $region23: #{transformer_encoder_forward.1} parent=1 // pred_check_branch
      %36 = sbr.rel (0) target = $region25
    $region24: #{transformer_encoder_forward.1} parent=1 // pred_region
      _
    $region25: #{transformer_encoder_forward.1} parent=1 // pred_fallthru
      _
    // Predicated region
    $region26: #{transformer_encoder_forward.1} parent=1 // pred_check
      _
    $region27: #{transformer_encoder_forward.1} parent=1 // pred_check_branch
      %38 = sbr.rel (0) target = $region29
    $region28: #{transformer_encoder_forward.1} parent=1 // pred_region
      _
    $region29: #{transformer_encoder_forward.1} parent=1 // pred_fallthru
      _
    // Predicated region
    $region30: #{transformer_encoder_forward.1} parent=1 // pred_check
      _
    $region31: #{transformer_encoder_forward.1} parent=1 // pred_check_branch
      %40 = sbr.rel (0) target = $region33
    $region32: #{transformer_encoder_forward.1} parent=1 // pred_region
      _
    $region33: #{transformer_encoder_forward.1} parent=1 // pred_fallthru
      _
    // Predicated region
    $region34: #{transformer_encoder_forward.1} parent=1 // pred_check
      _
    $region35: #{transformer_encoder_forward.1} parent=1 // pred_check_branch
      %42 = sbr.rel (0) target = $region37
    $region36: #{transformer_encoder_forward.1} parent=1 // pred_region
      _
    $region37: #{transformer_encoder_forward.1} parent=1 // pred_fallthru
      _
    // Predicated region
    $region38: #{transformer_encoder_forward.1} parent=1 // pred_check
      _
    $region39: #{transformer_encoder_forward.1} parent=1 // pred_check_branch
      %44 = sbr.rel (0) target = $region41
    $region40: #{transformer_encoder_forward.1} parent=1 // pred_region
      _
    $region41: #{transformer_encoder_forward.1} parent=1 // pred_fallthru
      _
    // Predicated region
    $region42: #{transformer_encoder_forward.1} parent=1 // pred_check
      _
    $region43: #{transformer_encoder_forward.1} parent=1 // pred_check_branch
      %46 = sbr.rel (0) target = $region45
    $region44: #{transformer_encoder_forward.1} parent=1 // pred_region
      _
    $region45: #{transformer_encoder_forward.1} parent=1 // pred_fallthru
      _
    // Predicated region
    $region46: #{transformer_encoder_forward.1} parent=1 // pred_check
      _
    $region47: #{transformer_encoder_forward.1} parent=1 // pred_check_branch
      %48 = sbr.rel (0) target = $region49
    $region48: #{transformer_encoder_forward.1} parent=1 // pred_region
      _
    $region49: #{transformer_encoder_forward.1} parent=1 // pred_fallthru
      _
    // Predicated region
    $region50: #{transformer_encoder_forward.1} parent=1 // pred_check
      _
    $region51: #{transformer_encoder_forward.1} parent=1 // pred_check_branch
      %50 = sbr.rel (0) target = $region53
    $region52: #{transformer_encoder_forward.1} parent=1 // pred_region
      _
    $region53: #{transformer_encoder_forward.1} parent=1 // pred_fallthru
      _
    // Predicated region
    $region54: #{transformer_encoder_forward.1} parent=1 // pred_check
      _
    $region55: #{transformer_encoder_forward.1} parent=1 // pred_check_branch
      %52 = sbr.rel (0) target = $region57
    $region56: #{transformer_encoder_forward.1} parent=1 // pred_region
      _
    $region57: #{transformer_encoder_forward.1} parent=1 // pred_fallthru
      _
    // Predicated region
    $region58: #{transformer_encoder_forward.1} parent=1 // pred_check
      _
    $region59: #{transformer_encoder_forward.1} parent=1 // pred_check_branch
      %54 = sbr.rel (0) target = $region61
    $region60: #{transformer_encoder_forward.1} parent=1 // pred_region
      _
    $region61: #{transformer_encoder_forward.1} parent=1 // pred_fallthru
      _
    // Predicated region
    $region62: #{transformer_encoder_forward.1} parent=1 // pred_check
      _
    $region63: #{transformer_encoder_forward.1} parent=1 // pred_check_branch
      %56 = sbr.rel (0) target = $region65
    $region64: #{transformer_encoder_forward.1} parent=1 // pred_region
      _
    $region65: #{transformer_encoder_forward.1} parent=1 // pred_fallthru
      _
    %v58 = vld [vmem:[%s0] sm:$0xff]
    %v59 = vld [vmem:[%s0 + $0x8] sm:$0xff]
    %v60 = vld [vmem:[%s0 + $0x10] sm:$0xff]
    %v61 = vld [vmem:[%s0 + $0x18] sm:$0xff]
    %v62 = vld [vmem:[%s0 + $0x20] sm:$0xf]
    %v63 = vld [vmem:[%s14 + $0x5] ss:$0 sm:$0xff]
    %v64 = vld [vmem:[%s1] sm:$0xff]
    %v65 = vld [vmem:[%s1 + $0x8] sm:$0xff]
    %v66 = vld [vmem:[%s1 + $0x10] sm:$0xff]
    %v67 = vld [vmem:[%s1 + $0x18] sm:$0xff]
    %v68 = vld [vmem:[%s1 + $0x20] sm:$0xff]
    %v69 = vld [vmem:[%s1 + $0x28] sm:$0x1f]
    %71 = vset.pattern.permute.xlu0 0
    %72 = vperm.xlu0 %71, %v63
    %v73 = vpop.permute.xlu0 %72
    %vm75 = vcmask 367616
    %v77 = vsel %vm75, %v58, 0
    %v80 = vsel %vm75, %v59, 0
    %v83 = vsel %vm75, %v60, 0
    %v86 = vsel %vm75, %v61, 0
    %v89 = vsel %vm75, %v62, 0
    %vm91 = vcmask 1044480
    %v93 = vsel %vm91, %v69, 0
    %95 = vmatprep.subr.mxu0 0.0
    %96 = vmatpush1.msra.mxu0 %v64
    %97 = vmatprep.subr.mxu0 0.0
    %98 = vmatpush1.msra.mxu0 %v65
    %99 = vmatprep.subr.mxu0 0.0
    %100 = vmatpush1.msra.mxu0 %v66
    %101 = vmatprep.subr.mxu0 0.0
    %102 = vmatpush1.msra.mxu0 %v67
    %103 = vmatprep.subr.mxu0 0.0
    %104 = vmatpush1.msra.mxu0 %v68
    %105 = vmatprep.subr.mxu0 0.0
    %106 = vmatpush1.msra.mxu0 %v93
    %107 = vmatprep.subr.mxu0 0.0
    %108 = vmatpush1.msra.mxu0 0.0
    %109 = vmatprep.subr.mxu0 0.0
    %110 = vmatpush1.msra.mxu0 0.0
    %111 = vmatprep.subr.mxu0 0.0
    %112 = vmatpush1.msra.mxu0 0.0
    %113 = vmatprep.subr.mxu0 0.0
    %114 = vmatpush1.msra.mxu0 0.0
    %115 = vmatprep.subr.mxu0 0.0
    %116 = vmatpush1.msra.mxu0 0.0
    %117 = vmatprep.subr.mxu0 0.0
    %118 = vmatpush1.msra.mxu0 0.0
    %119 = vmatprep.subr.mxu0 0.0
    %120 = vmatpush1.msra.mxu0 0.0
    %121 = vmatprep.subr.mxu0 0.0
    %122 = vmatpush1.msra.mxu0 0.0
    %123 = vmatprep.subr.mxu0 0.0
    %124 = vmatpush1.msra.mxu0 0.0
    %125 = vmatprep.subr.mxu0 0.0
    %126 = vmatpush1.msra.mxu0 0.0
    %127 = vmatprep.subr.mxu0 0.0
    %128 = vmatpush1.msra.mxu0 0.0
    %129 = vmatprep.subr.mxu0 0.0
    %130 = vmatpush1.msra.mxu0 0.0
    %131 = vmatprep.subr.mxu0 0.0
    %132 = vmatpush1.msra.mxu0 0.0
    %133 = vmatprep.subr.mxu0 0.0
    %134 = vmatpush1.msra.mxu0 0.0
    %135 = vmatprep.subr.mxu0 0.0
    %136 = vmatpush1.msra.mxu0 0.0
    %137 = vmatprep.subr.mxu0 0.0
    %138 = vmatpush1.msra.mxu0 0.0
    %139 = vmatprep.subr.mxu0 0.0
    %140 = vmatpush1.msra.mxu0 0.0
    %141 = vmatprep.subr.mxu0 0.0
    %142 = vmatpush1.msra.mxu0 0.0
    %143 = vmatprep.subr.mxu0 0.0
    %144 = vmatpush1.msra.mxu0 0.0
    %145 = vmatprep.subr.mxu0 0.0
    %146 = vmatpush1.msra.mxu0 0.0
    %147 = vmatprep.subr.mxu0 0.0
    %148 = vmatpush1.msra.mxu0 0.0
    %149 = vmatprep.subr.mxu0 0.0
    %150 = vmatpush1.msra.mxu0 0.0
    %151 = vmatprep.subr.mxu0 0.0
    %152 = vmatpush1.msra.mxu0 0.0
    %153 = vmatprep.subr.mxu0 0.0
    %154 = vmatpush1.msra.mxu0 0.0
    %155 = vmatprep.subr.mxu0 0.0
    %156 = vmatpush1.msra.mxu0 0.0
    %157 = vmatprep.subr.mxu0 0.0
    %158 = vmatpush1.msra.mxu0 0.0
    %159 = vmatprep.mubr.f32.mxu0 0.0
    %160 = vmatmul.mubr.f32.gmra.mrb[0].mxu0 %v77
    %v161 = vpop.f32.mrb[0].mxu0
    %v162 = vadd.f32 %v73, %v161
    %v163 = vpop.f32.mrb[0].mxu0
    %164 = vmatprep.mubr.f32.mxu0 0.0
    %165 = vmatmul.mubr.f32.gmra.mrb[0].mxu0 %v80
    %v166 = vpop.f32.mrb[0].mxu0
    %v167 = vadd.f32 %v73, %v166
    %v168 = vpop.f32.mrb[0].mxu0
    %169 = vmatprep.mubr.f32.mxu0 0.0
    %170 = vmatmul.mubr.f32.gmra.mrb[0].mxu0 %v83
    %v171 = vpop.f32.mrb[0].mxu0
    %v172 = vadd.f32 %v73, %v171
    %v173 = vpop.f32.mrb[0].mxu0
    %174 = vmatprep.mubr.f32.mxu0 0.0
    %175 = vmatmul.mubr.f32.gmra.mrb[0].mxu0 %v86
    %v176 = vpop.f32.mrb[0].mxu0
    %v177 = vadd.f32 %v73, %v176
    %v178 = vpop.f32.mrb[0].mxu0
    %179 = vmatprep.mubr.f32.mxu0 0.0
    %180 = vmatmul.mubr.f32.gmra.mrb[0].mxu0 %v89
    %v181 = vpop.f32.mrb[0].mxu0
    %v182 = vadd.f32 %v73, %v181
    %v183 = vpop.f32.mrb[0].mxu0
    %184 = vdwg.mxu0
    %v185 = vxor.u32 %v162, 2147483648
    %v186 = vxor.u32 %v167, 2147483648
    %v187 = vxor.u32 %v172, 2147483648
    %v188 = vxor.u32 %v177, 2147483648
    %v189 = vxor.u32 %v182, 2147483648
    %v190 = vmul.f32 %v185, 1.442695
    %v191 = vpow.pop %v190
    %v192 = vmul.f32 %v186, 1.442695
    %v193 = vpow.pop %v192
    %v194 = vmul.f32 %v187, 1.442695
    %v195 = vpow.pop %v194
    %v196 = vmul.f32 %v188, 1.442695
    %v197 = vpow.pop %v196
    %v198 = vmul.f32 %v189, 1.442695
    %v199 = vpow.pop %v198
    %v200 = vadd.f32 %v191, 1.0
    %v201 = vadd.f32 %v193, 1.0
    %v202 = vadd.f32 %v195, 1.0
    %v203 = vadd.f32 %v197, 1.0
    %v204 = vadd.f32 %v199, 1.0
    %v205 = vrcp.pop %v200
    %v206 = vmul.f32 1.0, %v205
    %v207 = vrcp.pop %v201
    %v208 = vmul.f32 1.0, %v207
    %v209 = vrcp.pop %v202
    %v210 = vmul.f32 1.0, %v209
    %v211 = vrcp.pop %v203
    %v212 = vmul.f32 1.0, %v211
    %v213 = vrcp.pop %v204
    %v214 = vmul.f32 1.0, %v213
    %v215 = vld [vmem:[%s2] sm:$0xff]
    %v216 = vld [vmem:[%s2 + $0x8] sm:$0xff]
    %v217 = vld [vmem:[%s2 + $0x10] sm:$0xff]
    %v218 = vld [vmem:[%s2 + $0x18] sm:$0xff]
    %v219 = vld [vmem:[%s2 + $0x20] sm:$0xff]
    %v220 = vld [vmem:[%s2 + $0x28] sm:$0x1f]
    %v222 = vsel %vm91, %v220, 0
    %224 = vmatprep.subr.mxu0 0.0
    %225 = vmatpush1.msra.mxu0 %v215
    %226 = vmatprep.subr.mxu0 0.0
    %227 = vmatpush1.msra.mxu0 %v216
    %228 = vmatprep.subr.mxu0 0.0
    %229 = vmatpush1.msra.mxu0 %v217
    %230 = vmatprep.subr.mxu0 0.0
    %231 = vmatpush1.msra.mxu0 %v218
    %232 = vmatprep.subr.mxu0 0.0
    %233 = vmatpush1.msra.mxu0 %v219
    %234 = vmatprep.subr.mxu0 0.0
    %235 = vmatpush1.msra.mxu0 %v222
    %236 = vmatprep.subr.mxu0 0.0
    %237 = vmatpush1.msra.mxu0 0.0
    %238 = vmatprep.subr.mxu0 0.0
    %239 = vmatpush1.msra.mxu0 0.0
    %240 = vmatprep.subr.mxu0 0.0
    %241 = vmatpush1.msra.mxu0 0.0
    %242 = vmatprep.subr.mxu0 0.0
    %243 = vmatpush1.msra.mxu0 0.0
    %244 = vmatprep.subr.mxu0 0.0
    %245 = vmatpush1.msra.mxu0 0.0
    %246 = vmatprep.subr.mxu0 0.0
    %247 = vmatpush1.msra.mxu0 0.0
    %248 = vmatprep.subr.mxu0 0.0
    %249 = vmatpush1.msra.mxu0 0.0
    %250 = vmatprep.subr.mxu0 0.0
    %251 = vmatpush1.msra.mxu0 0.0
    %252 = vmatprep.subr.mxu0 0.0
    %253 = vmatpush1.msra.mxu0 0.0
    %254 = vmatprep.subr.mxu0 0.0
    %255 = vmatpush1.msra.mxu0 0.0
    %256 = vmatprep.subr.mxu0 0.0
    %257 = vmatpush1.msra.mxu0 0.0
    %258 = vmatprep.subr.mxu0 0.0
    %259 = vmatpush1.msra.mxu0 0.0
    %260 = vmatprep.subr.mxu0 0.0
    %261 = vmatpush1.msra.mxu0 0.0
    %262 = vmatprep.subr.mxu0 0.0
    %263 = vmatpush1.msra.mxu0 0.0
    %264 = vmatprep.subr.mxu0 0.0
    %265 = vmatpush1.msra.mxu0 0.0
    %266 = vmatprep.subr.mxu0 0.0
    %267 = vmatpush1.msra.mxu0 0.0
    %268 = vmatprep.subr.mxu0 0.0
    %269 = vmatpush1.msra.mxu0 0.0
    %270 = vmatprep.subr.mxu0 0.0
    %271 = vmatpush1.msra.mxu0 0.0
    %272 = vmatprep.subr.mxu0 0.0
    %273 = vmatpush1.msra.mxu0 0.0
    %274 = vmatprep.subr.mxu0 0.0
    %275 = vmatpush1.msra.mxu0 0.0
    %276 = vmatprep.subr.mxu0 0.0
    %277 = vmatpush1.msra.mxu0 0.0
    %278 = vmatprep.subr.mxu0 0.0
    %279 = vmatpush1.msra.mxu0 0.0
    %280 = vmatprep.subr.mxu0 0.0
    %281 = vmatpush1.msra.mxu0 0.0
    %282 = vmatprep.subr.mxu0 0.0
    %283 = vmatpush1.msra.mxu0 0.0
    %284 = vmatprep.subr.mxu0 0.0
    %285 = vmatpush1.msra.mxu0 0.0
    %286 = vmatprep.subr.mxu0 0.0
    %287 = vmatpush1.msra.mxu0 0.0
    %288 = vmatprep.mubr.f32.mxu0 0.0
    %289 = vmatmul.mubr.f32.gmra.mrb[0].mxu0 %v77
    %v290 = vpop.f32.mrb[0].mxu0
    %v291 = vadd.f32 0.0, %v290
    %v292 = vpop.f32.mrb[0].mxu0
    %293 = vmatprep.mubr.f32.mxu0 0.0
    %294 = vmatmul.mubr.f32.gmra.mrb[0].mxu0 %v80
    %v295 = vpop.f32.mrb[0].mxu0
    %v296 = vadd.f32 0.0, %v295
    %v297 = vpop.f32.mrb[0].mxu0
    %298 = vmatprep.mubr.f32.mxu0 0.0
    %299 = vmatmul.mubr.f32.gmra.mrb[0].mxu0 %v83
    %v300 = vpop.f32.mrb[0].mxu0
    %v301 = vadd.f32 0.0, %v300
    %v302 = vpop.f32.mrb[0].mxu0
    %303 = vmatprep.mubr.f32.mxu0 0.0
    %304 = vmatmul.mubr.f32.gmra.mrb[0].mxu0 %v86
    %v305 = vpop.f32.mrb[0].mxu0
    %v306 = vadd.f32 0.0, %v305
    %v307 = vpop.f32.mrb[0].mxu0
    %308 = vmatprep.mubr.f32.mxu0 0.0
    %309 = vmatmul.mubr.f32.gmra.mrb[0].mxu0 %v89
    %v310 = vpop.f32.mrb[0].mxu0
    %v311 = vadd.f32 0.0, %v310
    %v312 = vpop.f32.mrb[0].mxu0
    %313 = vdwg.mxu0
    %v314 = vld [vmem:[%s3] sm:$0x3]
    %vm315 = vcmask 293888
    %v317 = vsel %vm315, %v314, 0
    %vm319 = vcmask 1043456
    %v321 = vsel %vm319, %v311, 0
    %323 = vmatprep.subr.mxu0 0.0
    %324 = vmatpush1.msra.mxu0 %v291
    %325 = vmatprep.subr.mxu0 0.0
    %326 = vmatpush1.msra.mxu0 %v296
    %327 = vmatprep.subr.mxu0 0.0
    %328 = vmatpush1.msra.mxu0 %v301
    %329 = vmatprep.subr.mxu0 0.0
    %330 = vmatpush1.msra.mxu0 %v306
    %331 = vmatprep.subr.mxu0 0.0
    %332 = vmatpush1.msra.mxu0 %v321
    %333 = vmatprep.subr.mxu0 0.0
    %334 = vmatpush1.msra.mxu0 0.0
    %335 = vmatprep.subr.mxu0 0.0
    %336 = vmatpush1.msra.mxu0 0.0
    %337 = vmatprep.subr.mxu0 0.0
    %338 = vmatpush1.msra.mxu0 0.0
    %339 = vmatprep.subr.mxu0 0.0
    %340 = vmatpush1.msra.mxu0 0.0
    %341 = vmatprep.subr.mxu0 0.0
    %342 = vmatpush1.msra.mxu0 0.0
    %343 = vmatprep.subr.mxu0 0.0
    %344 = vmatpush1.msra.mxu0 0.0
    %345 = vmatprep.subr.mxu0 0.0
    %346 = vmatpush1.msra.mxu0 0.0
    %347 = vmatprep.subr.mxu0 0.0
    %348 = vmatpush1.msra.mxu0 0.0
    %349 = vmatprep.subr.mxu0 0.0
    %350 = vmatpush1.msra.mxu0 0.0
    %351 = vmatprep.subr.mxu0 0.0
    %352 = vmatpush1.msra.mxu0 0.0
    %353 = vmatprep.subr.mxu0 0.0
    %354 = vmatpush1.msra.mxu0 0.0
    %355 = vmatprep.subr.mxu0 0.0
    %356 = vmatpush1.msra.mxu0 0.0
    %357 = vmatprep.subr.mxu0 0.0
    %358 = vmatpush1.msra.mxu0 0.0
    %359 = vmatprep.subr.mxu0 0.0
    %360 = vmatpush1.msra.mxu0 0.0
    %361 = vmatprep.subr.mxu0 0.0
    %362 = vmatpush1.msra.mxu0 0.0
    %363 = vmatprep.subr.mxu0 0.0
    %364 = vmatpush1.msra.mxu0 0.0
    %365 = vmatprep.subr.mxu0 0.0
    %366 = vmatpush1.msra.mxu0 0.0
    %367 = vmatprep.subr.mxu0 0.0
    %368 = vmatpush1.msra.mxu0 0.0
    %369 = vmatprep.subr.mxu0 0.0
    %370 = vmatpush1.msra.mxu0 0.0
    %371 = vmatprep.subr.mxu0 0.0
    %372 = vmatpush1.msra.mxu0 0.0
    %373 = vmatprep.subr.mxu0 0.0
    %374 = vmatpush1.msra.mxu0 0.0
    %375 = vmatprep.subr.mxu0 0.0
    %376 = vmatpush1.msra.mxu0 0.0
    %377 = vmatprep.subr.mxu0 0.0
    %378 = vmatpush1.msra.mxu0 0.0
    %379 = vmatprep.subr.mxu0 0.0
    %380 = vmatpush1.msra.mxu0 0.0
    %381 = vmatprep.subr.mxu0 0.0
    %382 = vmatpush1.msra.mxu0 0.0
    %383 = vmatprep.subr.mxu0 0.0
    %384 = vmatpush1.msra.mxu0 0.0
    %385 = vmatprep.subr.mxu0 0.0
    %386 = vmatpush1.msra.mxu0 0.0
    %387 = vmatprep.mubr.f32.mxu0 0.0
    %388 = vmatmul.mubr.f32.gmra.mrb[0].mxu0 %v317
    %v389 = vpop.f32.mrb[0].mxu0
    %v390 = vadd.f32 0.0, %v389
    %v391 = vpop.f32.mrb[0].mxu0
    %392 = vdwg.mxu0
    %394 = vrot.lane.b32.xlu0 %v390, 5
    %v395 = vpop.permute.xlu0 %394
    %397 = vrot.lane.b32.xlu0 %v390, 10
    %v398 = vpop.permute.xlu0 %397
    %400 = vrot.lane.b32.xlu0 %v390, 15
    %v401 = vpop.permute.xlu0 %400
    %403 = vrot.lane.b32.xlu0 %v390, 20
    %v404 = vpop.permute.xlu0 %403
    %vm406 = vcmask 39936
    %v407 = vsel %vm406, %v390, %v395
    %vm408 = vcmask 80896
    %v409 = vsel %vm408, %v407, %v398
    %vm410 = vcmask 121856
    %v411 = vsel %vm410, %v409, %v401
    %vm412 = vcmask 162816
    %v413 = vsel %vm412, %v411, %v404
    %v414 = vld [vmem:[%s5] sm:$0x1]
    %v415 = vlaneseq
    %v416 = vshrl.u32 %v415, 7
    %v417 = vsub.s32 0, %v416
    %v418 = vrot.slane %v414, %v417
    %v419 = vmul.f32 %v413, %v418
    %v420 = vld [vmem:[%s5 + $0x1] sm:$0x1]
    %v421 = vlaneseq
    %v422 = vshrl.u32 %v421, 7
    %v423 = vsub.s32 0, %v422
    %v424 = vrot.slane %v420, %v423
    %v425 = vadd.f32 %v419, %v424
    %v426 = vmul.f32 %v425, 0.5
    %v427 = vmul.f32 %v425, 0.70710677
    %v428 = vand.u32 2147483647, %v427
    %v429 = vmul.f32 %v428, 0.3275911
    %v430 = vadd.f32 %v429, 1.0
    %v431 = vrcp.pop %v430
    %v432 = vmul.f32 1.0, %v431
    %v433 = vmul.f32 %v432, 1.0614054
    %v434 = vadd.f32 %v433, -1.4531521
    %v435 = vmul.f32 %v434, %v432
    %v436 = vadd.f32 %v435, 1.4214138
    %v437 = vmul.f32 %v436, %v432
    %v438 = vadd.f32 %v437, -0.28449672
    %v439 = vmul.f32 %v438, %v432
    %v440 = vadd.f32 %v439, 0.2548296
    %v441 = vmul.f32 %v440, %v432
    %v442 = vsub.f32 0.0, %v428
    %v443 = vmul.f32 %v442, %v428
    %v444 = vmul.f32 %v443, 1.442695
    %v445 = vpow.pop %v444
    %v446 = vmul.f32 %v441, %v445
    %v447 = vsub.f32 1.0, %v446
    %vm448 = vcmp.lt.f32.partialorder %v427, 0.0
    %v449 = vsub.f32 0.0, %v447
    %v450 = vsel %vm448, %v449, %v447
    %v451 = vadd.f32 %v450, 1.0
    %v452 = vmul.f32 %v426, %v451
    %v453 = vld [vmem:[%s6] sm:$0xff]
    %v454 = vld [vmem:[%s6 + $0x8] sm:$0xff]
    %v455 = vld [vmem:[%s6 + $0x10] sm:$0xff]
    %v456 = vld [vmem:[%s6 + $0x18] sm:$0x1]
    %457 = vset.pattern.permute.xlu0 1
    %458 = vperm.xlu0 %457, %v63
    %v459 = vpop.permute.xlu0 %458
    %vm461 = vcmask 203776
    %v463 = vsel %vm461, %v452, 0
    %vm465 = vcmask 1040384
    %v467 = vsel %vm465, %v456, 0
    %469 = vmatprep.subr.mxu0 0.0
    %470 = vmatpush1.msra.mxu0 %v453
    %471 = vmatprep.subr.mxu0 0.0
    %472 = vmatpush1.msra.mxu0 %v454
    %473 = vmatprep.subr.mxu0 0.0
    %474 = vmatpush1.msra.mxu0 %v455
    %475 = vmatprep.subr.mxu0 0.0
    %476 = vmatpush1.msra.mxu0 %v467
    %477 = vmatprep.subr.mxu0 0.0
    %478 = vmatpush1.msra.mxu0 0.0
    %479 = vmatprep.subr.mxu0 0.0
    %480 = vmatpush1.msra.mxu0 0.0
    %481 = vmatprep.subr.mxu0 0.0
    %482 = vmatpush1.msra.mxu0 0.0
    %483 = vmatprep.subr.mxu0 0.0
    %484 = vmatpush1.msra.mxu0 0.0
    %485 = vmatprep.subr.mxu0 0.0
    %486 = vmatpush1.msra.mxu0 0.0
    %487 = vmatprep.subr.mxu0 0.0
    %488 = vmatpush1.msra.mxu0 0.0
    %489 = vmatprep.subr.mxu0 0.0
    %490 = vmatpush1.msra.mxu0 0.0
    %491 = vmatprep.subr.mxu0 0.0
    %492 = vmatpush1.msra.mxu0 0.0
    %493 = vmatprep.subr.mxu0 0.0
    %494 = vmatpush1.msra.mxu0 0.0
    %495 = vmatprep.subr.mxu0 0.0
    %496 = vmatpush1.msra.mxu0 0.0
    %497 = vmatprep.subr.mxu0 0.0
    %498 = vmatpush1.msra.mxu0 0.0
    %499 = vmatprep.subr.mxu0 0.0
    %500 = vmatpush1.msra.mxu0 0.0
    %501 = vmatprep.subr.mxu0 0.0
    %502 = vmatpush1.msra.mxu0 0.0
    %503 = vmatprep.subr.mxu0 0.0
    %504 = vmatpush1.msra.mxu0 0.0
    %505 = vmatprep.subr.mxu0 0.0
    %506 = vmatpush1.msra.mxu0 0.0
    %507 = vmatprep.subr.mxu0 0.0
    %508 = vmatpush1.msra.mxu0 0.0
    %509 = vmatprep.subr.mxu0 0.0
    %510 = vmatpush1.msra.mxu0 0.0
    %511 = vmatprep.subr.mxu0 0.0
    %512 = vmatpush1.msra.mxu0 0.0
    %513 = vmatprep.subr.mxu0 0.0
    %514 = vmatpush1.msra.mxu0 0.0
    %515 = vmatprep.subr.mxu0 0.0
    %516 = vmatpush1.msra.mxu0 0.0
    %517 = vmatprep.subr.mxu0 0.0
    %518 = vmatpush1.msra.mxu0 0.0
    %519 = vmatprep.subr.mxu0 0.0
    %520 = vmatpush1.msra.mxu0 0.0
    %521 = vmatprep.subr.mxu0 0.0
    %522 = vmatpush1.msra.mxu0 0.0
    %523 = vmatprep.subr.mxu0 0.0
    %524 = vmatpush1.msra.mxu0 0.0
    %525 = vmatprep.subr.mxu0 0.0
    %526 = vmatpush1.msra.mxu0 0.0
    %527 = vmatprep.subr.mxu0 0.0
    %528 = vmatpush1.msra.mxu0 0.0
    %529 = vmatprep.subr.mxu0 0.0
    %530 = vmatpush1.msra.mxu0 0.0
    %531 = vmatprep.subr.mxu0 0.0
    %532 = vmatpush1.msra.mxu0 0.0
    %533 = vmatprep.mubr.f32.mxu0 0.0
    %534 = vmatmul.mubr.f32.gmra.mrb[0].mxu0 %v463
    %v535 = vpop.f32.mrb[0].mxu0
    %v536 = vadd.f32 %v459, %v535
    %v537 = vpop.f32.mrb[0].mxu0
    %538 = vdwg.mxu0
    %v539 = vxor.u32 %v536, 2147483648
    %v540 = vmul.f32 %v539, 1.442695
    %v541 = vpow.pop %v540
    %v542 = vadd.f32 %v541, 1.0
    %v543 = vrcp.pop %v542
    %v544 = vmul.f32 1.0, %v543
    %v545 = vld [vmem:[%s4] sm:$0xff]
    %v546 = vld [vmem:[%s4 + $0x8] sm:$0xff]
    %v547 = vld [vmem:[%s4 + $0x10] sm:$0xff]
    %v548 = vld [vmem:[%s4 + $0x18] sm:$0xff]
    %v549 = vld [vmem:[%s4 + $0x20] sm:$0xf]
    %vm550 = vcmask 15360
    %v552 = vsel %vm550, %v545, 0
    %v555 = vsel %vm550, %v546, 0
    %v558 = vsel %vm550, %v547, 0
    %v561 = vsel %vm550, %v548, 0
    %v564 = vsel %vm550, %v549, 0
    %vm566 = vcmask 1041408
    %v568 = vsel %vm566, %v544, 0
    %570 = vmatprep.subr.mxu0 0.0
    %571 = vmatpush1.msra.mxu0 %v568
    %572 = vmatprep.subr.mxu0 0.0
    %573 = vmatpush1.msra.mxu0 0.0
    %574 = vmatprep.subr.mxu0 0.0
    %575 = vmatpush1.msra.mxu0 0.0
    %576 = vmatprep.subr.mxu0 0.0
    %577 = vmatpush1.msra.mxu0 0.0
    %578 = vmatprep.subr.mxu0 0.0
    %579 = vmatpush1.msra.mxu0 0.0
    %580 = vmatprep.subr.mxu0 0.0
    %581 = vmatpush1.msra.mxu0 0.0
    %582 = vmatprep.subr.mxu0 0.0
    %583 = vmatpush1.msra.mxu0 0.0
    %584 = vmatprep.subr.mxu0 0.0
    %585 = vmatpush1.msra.mxu0 0.0
    %586 = vmatprep.subr.mxu0 0.0
    %587 = vmatpush1.msra.mxu0 0.0
    %588 = vmatprep.subr.mxu0 0.0
    %589 = vmatpush1.msra.mxu0 0.0
    %590 = vmatprep.subr.mxu0 0.0
    %591 = vmatpush1.msra.mxu0 0.0
    %592 = vmatprep.subr.mxu0 0.0
    %593 = vmatpush1.msra.mxu0 0.0
    %594 = vmatprep.subr.mxu0 0.0
    %595 = vmatpush1.msra.mxu0 0.0
    %596 = vmatprep.subr.mxu0 0.0
    %597 = vmatpush1.msra.mxu0 0.0
    %598 = vmatprep.subr.mxu0 0.0
    %599 = vmatpush1.msra.mxu0 0.0
    %600 = vmatprep.subr.mxu0 0.0
    %601 = vmatpush1.msra.mxu0 0.0
    %602 = vmatprep.subr.mxu0 0.0
    %603 = vmatpush1.msra.mxu0 0.0
    %604 = vmatprep.subr.mxu0 0.0
    %605 = vmatpush1.msra.mxu0 0.0
    %606 = vmatprep.subr.mxu0 0.0
    %607 = vmatpush1.msra.mxu0 0.0
    %608 = vmatprep.subr.mxu0 0.0
    %609 = vmatpush1.msra.mxu0 0.0
    %610 = vmatprep.subr.mxu0 0.0
    %611 = vmatpush1.msra.mxu0 0.0
    %612 = vmatprep.subr.mxu0 0.0
    %613 = vmatpush1.msra.mxu0 0.0
    %614 = vmatprep.subr.mxu0 0.0
    %615 = vmatpush1.msra.mxu0 0.0
    %616 = vmatprep.subr.mxu0 0.0
    %617 = vmatpush1.msra.mxu0 0.0
    %618 = vmatprep.subr.mxu0 0.0
    %619 = vmatpush1.msra.mxu0 0.0
    %620 = vmatprep.subr.mxu0 0.0
    %621 = vmatpush1.msra.mxu0 0.0
    %622 = vmatprep.subr.mxu0 0.0
    %623 = vmatpush1.msra.mxu0 0.0
    %624 = vmatprep.subr.mxu0 0.0
    %625 = vmatpush1.msra.mxu0 0.0
    %626 = vmatprep.subr.mxu0 0.0
    %627 = vmatpush1.msra.mxu0 0.0
    %628 = vmatprep.subr.mxu0 0.0
    %629 = vmatpush1.msra.mxu0 0.0
    %630 = vmatprep.subr.mxu0 0.0
    %631 = vmatpush1.msra.mxu0 0.0
    %632 = vmatprep.subr.mxu0 0.0
    %633 = vmatpush1.msra.mxu0 0.0
    %634 = vmatprep.mubr.f32.mxu0 0.0
    %635 = vmatmul.mubr.f32.gmra.mrb[0].mxu0 %v552
    %v636 = vpop.f32.mrb[0].mxu0
    %v637 = vadd.f32 0.0, %v636
    %v638 = vpop.f32.mrb[0].mxu0
    %639 = vmatprep.mubr.f32.mxu0 0.0
    %640 = vmatmul.mubr.f32.gmra.mrb[0].mxu0 %v555
    %v641 = vpop.f32.mrb[0].mxu0
    %v642 = vadd.f32 0.0, %v641
    %v643 = vpop.f32.mrb[0].mxu0
    %644 = vmatprep.mubr.f32.mxu0 0.0
    %645 = vmatmul.mubr.f32.gmra.mrb[0].mxu0 %v558
    %v646 = vpop.f32.mrb[0].mxu0
    %v647 = vadd.f32 0.0, %v646
    %v648 = vpop.f32.mrb[0].mxu0
    %649 = vmatprep.mubr.f32.mxu0 0.0
    %650 = vmatmul.mubr.f32.gmra.mrb[0].mxu0 %v561
    %v651 = vpop.f32.mrb[0].mxu0
    %v652 = vadd.f32 0.0, %v651
    %v653 = vpop.f32.mrb[0].mxu0
    %654 = vmatprep.mubr.f32.mxu0 0.0
    %655 = vmatmul.mubr.f32.gmra.mrb[0].mxu0 %v564
    %v656 = vpop.f32.mrb[0].mxu0
    %v657 = vadd.f32 0.0, %v656
    %v658 = vpop.f32.mrb[0].mxu0
    %659 = vdwg.mxu0
    %v660 = vadd.f32 %v206, %v637
    %v661 = vadd.f32 %v208, %v642
    %v662 = vadd.f32 %v210, %v647
    %v663 = vadd.f32 %v212, %v652
    %v664 = vadd.f32 %v214, %v657
    %v665 = vmul.f32 %v58, %v660
    %v666 = vmul.f32 %v59, %v661
    %v667 = vmul.f32 %v60, %v662
    %v668 = vmul.f32 %v61, %v663
    %v669 = vmul.f32 %v62, %v664
    %v670 = vpack.c.bf16 %v666, %v665
    %v671 = vpack.c.bf16 %v668, %v667
    %v672 = vpack.c.bf16 %v669, %v669
    %v673 = vld [vmem:[%s7] sm:$0xf]
    %v674 = vld [vmem:[%s7 + $0x4] sm:$0xf]
    %v675 = vld [vmem:[%s7 + $0x8] sm:$0xf]
    %v676 = vld [vmem:[%s7 + $0xc] sm:$0xf]
    %v677 = vld [vmem:[%s7 + $0x10] sm:$0xf]
    %v678 = vld [vmem:[%s7 + $0x14] sm:$0x7]
    %v679 = vld [vmem:[%s14] ss:$0 sm:$0xff]
    %v686 = vunpack.c.l.b16 %v673
    %v687 = vunpack.c.l.b16 %v674
    %v688 = vunpack.c.l.b16 %v675
    %v689 = vunpack.c.l.b16 %v676
    %v690 = vunpack.c.l.b16 %v677
    %v691 = vunpack.c.l.b16 %v678
    %v692 = vpack.c.b16 %v687, %v686
    %v693 = vpack.c.b16 %v689, %v688
    %v694 = vpack.c.b16 %v691, %v690
    %v698 = vsel %vm75, %v670, 0
    %v701 = vsel %vm75, %v671, 0
    %v704 = vsel %vm75, %v672, 0
    %vm706 = vcmask 1045504
    %vm707 = vcmask 1046528
    %v708 = vsel %vm706, 4294967295, 65535
    %v709 = vsel %vm707, %v708, 0
    %v711 = vand.u32 %v694, %v709
    %713 = vmatprep.subr.bf16.mxu0 0
    %714 = vmatpush1.bf16.msra.mxu0 %v692
    %715 = vmatprep.subr.bf16.mxu0 0
    %716 = vmatpush1.bf16.msra.mxu0 %v693
    %717 = vmatprep.subr.bf16.mxu0 0
    %718 = vmatpush1.bf16.msra.mxu0 %v711
    %719 = vmatprep.subr.bf16.mxu0 0
    %720 = vmatpush1.bf16.msra.mxu0 0
    %721 = vmatprep.subr.bf16.mxu0 0
    %722 = vmatpush1.bf16.msra.mxu0 0
    %723 = vmatprep.subr.bf16.mxu0 0
    %724 = vmatpush1.bf16.msra.mxu0 0
    %725 = vmatprep.subr.bf16.mxu0 0
    %726 = vmatpush1.bf16.msra.mxu0 0
    %727 = vmatprep.subr.bf16.mxu0 0
    %728 = vmatpush1.bf16.msra.mxu0 0
    %729 = vmatprep.subr.bf16.mxu0 0
    %730 = vmatpush1.bf16.msra.mxu0 0
    %731 = vmatprep.subr.bf16.mxu0 0
    %732 = vmatpush1.bf16.msra.mxu0 0
    %733 = vmatprep.subr.bf16.mxu0 0
    %734 = vmatpush1.bf16.msra.mxu0 0
    %735 = vmatprep.subr.bf16.mxu0 0
    %736 = vmatpush1.bf16.msra.mxu0 0
    %737 = vmatprep.subr.bf16.mxu0 0
    %738 = vmatpush1.bf16.msra.mxu0 0
    %739 = vmatprep.subr.bf16.mxu0 0
    %740 = vmatpush1.bf16.msra.mxu0 0
    %741 = vmatprep.subr.bf16.mxu0 0
    %742 = vmatpush1.bf16.msra.mxu0 0
    %743 = vmatprep.subr.bf16.mxu0 0
    %744 = vmatpush1.bf16.msra.mxu0 0
    %745 = vmatprep.mubr.bf16.mxu0 0
    %746 = vmatmul.mubr.bf16.gmra.mrb[0].mxu0 %v698
    %v747 = vpop.f32.mrb[0].mxu0
    %v748 = vadd.f32 %v679, %v747
    %v749 = vpop.f32.mrb[0].mxu0
    %v750 = vpop.f32.mrb[0].mxu0
    %v751 = vadd.f32 %v679, %v750
    %v752 = vpop.f32.mrb[0].mxu0
    %753 = vmatprep.mubr.bf16.mxu0 0
    %754 = vmatmul.mubr.bf16.gmra.mrb[0].mxu0 %v701
    %v755 = vpop.f32.mrb[0].mxu0
    %v756 = vadd.f32 %v679, %v755
    %v757 = vpop.f32.mrb[0].mxu0
    %v758 = vpop.f32.mrb[0].mxu0
    %v759 = vadd.f32 %v679, %v758
    %v760 = vpop.f32.mrb[0].mxu0
    %761 = vmatprep.mubr.bf16.mxu0 0
    %762 = vmatmul.mubr.bf16.gmra.mrb[0].mxu0 %v704
    %v763 = vpop.f32.mrb[0].mxu0
    %v764 = vadd.f32 %v679, %v763
    %v765 = vpop.f32.mrb[0].mxu0
    %v766 = vpop.f32.mrb[0].mxu0
    %v767 = vpop.f32.mrb[0].mxu0
    %768 = vdwg.mxu0
    %v769 = vmax.f32 %v748, 0.0
    %v770 = vmax.f32 %v751, 0.0
    %v771 = vmax.f32 %v756, 0.0
    %v772 = vmax.f32 %v759, 0.0
    %v773 = vmax.f32 %v764, 0.0
    %v774 = vpack.c.bf16 %v770, %v769
    %v775 = vpack.c.bf16 %v772, %v771
    %v776 = vpack.c.bf16 %v773, %v773
    %v777 = vld [vmem:[%s8] sm:$0xf]
    %v778 = vld [vmem:[%s8 + $0x4] sm:$0xf]
    %v779 = vld [vmem:[%s8 + $0x8] sm:$0xf]
    %v780 = vld [vmem:[%s8 + $0xc] sm:$0xf]
    %v781 = vld [vmem:[%s8 + $0x10] sm:$0xf]
    %v782 = vld [vmem:[%s8 + $0x14] sm:$0xf]
    %v783 = vld [vmem:[%s8 + $0x18] sm:$0xf]
    %v784 = vld [vmem:[%s8 + $0x1c] sm:$0xf]
    %v785 = vld [vmem:[%s8 + $0x20] sm:$0xf]
    %v786 = vld [vmem:[%s8 + $0x24] sm:$0xf]
    %v787 = vld [vmem:[%s14 + $0x1] ss:$0 sm:$0xff]
    %v798 = vunpack.c.l.b16 %v777
    %v799 = vunpack.c.l.b16 %v778
    %v800 = vunpack.c.l.b16 %v779
    %v801 = vunpack.c.l.b16 %v780
    %v802 = vunpack.c.l.b16 %v781
    %v803 = vunpack.c.l.b16 %v782
    %v804 = vunpack.c.l.b16 %v783
    %v805 = vunpack.c.l.b16 %v784
    %v806 = vunpack.c.l.b16 %v785
    %v807 = vunpack.c.l.b16 %v786
    %v808 = vpack.c.b16 %v799, %v798
    %v809 = vpack.c.b16 %v801, %v800
    %v810 = vpack.c.b16 %v803, %v802
    %v811 = vpack.c.b16 %v805, %v804
    %v812 = vpack.c.b16 %v807, %v806
    %vm818 = vcmask 654336
    %v820 = vsel %vm818, %v774, 0
    %v823 = vsel %vm818, %v775, 0
    %v826 = vsel %vm818, %v776, 0
    %828 = vmatprep.subr.bf16.mxu0 0
    %829 = vmatpush1.bf16.msra.mxu0 %v808
    %830 = vmatprep.subr.bf16.mxu0 0
    %831 = vmatpush1.bf16.msra.mxu0 %v809
    %832 = vmatprep.subr.bf16.mxu0 0
    %833 = vmatpush1.bf16.msra.mxu0 %v810
    %834 = vmatprep.subr.bf16.mxu0 0
    %835 = vmatpush1.bf16.msra.mxu0 %v811
    %836 = vmatprep.subr.bf16.mxu0 0
    %837 = vmatpush1.bf16.msra.mxu0 %v812
    %838 = vmatprep.subr.bf16.mxu0 0
    %839 = vmatpush1.bf16.msra.mxu0 0
    %840 = vmatprep.subr.bf16.mxu0 0
    %841 = vmatpush1.bf16.msra.mxu0 0
    %842 = vmatprep.subr.bf16.mxu0 0
    %843 = vmatpush1.bf16.msra.mxu0 0
    %844 = vmatprep.subr.bf16.mxu0 0
    %845 = vmatpush1.bf16.msra.mxu0 0
    %846 = vmatprep.subr.bf16.mxu0 0
    %847 = vmatpush1.bf16.msra.mxu0 0
    %848 = vmatprep.subr.bf16.mxu0 0
    %849 = vmatpush1.bf16.msra.mxu0 0
    %850 = vmatprep.subr.bf16.mxu0 0
    %851 = vmatpush1.bf16.msra.mxu0 0
    %852 = vmatprep.subr.bf16.mxu0 0
    %853 = vmatpush1.bf16.msra.mxu0 0
    %854 = vmatprep.subr.bf16.mxu0 0
    %855 = vmatpush1.bf16.msra.mxu0 0
    %856 = vmatprep.subr.bf16.mxu0 0
    %857 = vmatpush1.bf16.msra.mxu0 0
    %858 = vmatprep.subr.bf16.mxu0 0
    %859 = vmatpush1.bf16.msra.mxu0 0
    %860 = vmatprep.mubr.bf16.mxu0 0
    %861 = vmatmul.mubr.bf16.gmra.mrb[0].mxu0 %v820
    %v862 = vpop.f32.mrb[0].mxu0
    %v863 = vadd.f32 %v787, %v862
    %v864 = vpop.f32.mrb[0].mxu0
    %v865 = vpop.f32.mrb[0].mxu0
    %v866 = vadd.f32 %v787, %v865
    %v867 = vpop.f32.mrb[0].mxu0
    %868 = vmatprep.mubr.bf16.mxu0 0
    %869 = vmatmul.mubr.bf16.gmra.mrb[0].mxu0 %v823
    %v870 = vpop.f32.mrb[0].mxu0
    %v871 = vadd.f32 %v787, %v870
    %v872 = vpop.f32.mrb[0].mxu0
    %v873 = vpop.f32.mrb[0].mxu0
    %v874 = vadd.f32 %v787, %v873
    %v875 = vpop.f32.mrb[0].mxu0
    %876 = vmatprep.mubr.bf16.mxu0 0
    %877 = vmatmul.mubr.bf16.gmra.mrb[0].mxu0 %v826
    %v878 = vpop.f32.mrb[0].mxu0
    %v879 = vadd.f32 %v787, %v878
    %v880 = vpop.f32.mrb[0].mxu0
    %v881 = vpop.f32.mrb[0].mxu0
    %v882 = vpop.f32.mrb[0].mxu0
    %883 = vdwg.mxu0
    %v884 = vmax.f32 %v863, 0.0
    %v885 = vmax.f32 %v866, 0.0
    %v886 = vmax.f32 %v871, 0.0
    %v887 = vmax.f32 %v874, 0.0
    %v888 = vmax.f32 %v879, 0.0
    %vm889 = vcmask 261120
    %890 = vst.msk [vmem:[#allocation2] sm:$0xff] %vm889, %v884
    %891 = vst.msk [vmem:[#allocation2 + $0x8] sm:$0xff] %vm889, %v885
    %892 = vst.msk [vmem:[#allocation2 + $0x10] sm:$0xff] %vm889, %v886
    %893 = vst.msk [vmem:[#allocation2 + $0x18] sm:$0xff] %vm889, %v887
    %vm894 = vcmask 257024
    %895 = vst.msk [vmem:[#allocation2 + $0x20] sm:$0xf] %vm894, %v888
    %v896 = vld [vmem:[#allocation2] ss:$18 sm:$0x3]
    %s897 = scalar_lea.vmem [#allocation2], 1
    %v898 = vld [vmem:[%s897] ss:$18 sm:$0x3]
    %s899 = scalar_lea.vmem [#allocation2], 2
    %v900 = vld [vmem:[%s899] ss:$18 sm:$0x3]
    %s901 = scalar_lea.vmem [#allocation2], 3
    %v902 = vld [vmem:[%s901] ss:$18 sm:$0x3]
    %s903 = scalar_lea.vmem [#allocation2], 4
    %v904 = vld [vmem:[%s903] ss:$18 sm:$0x3]
    %s905 = scalar_lea.vmem [#allocation2], 5
    %v906 = vld [vmem:[%s905] ss:$18 sm:$0x3]
    %s907 = scalar_lea.vmem [#allocation2], 6
    %v908 = vld [vmem:[%s907] ss:$18 sm:$0x3]
    %s909 = scalar_lea.vmem [#allocation2], 7
    %v910 = vld [vmem:[%s909] ss:$18 sm:$0x3]
    %s911 = scalar_lea.vmem [#allocation2], 8
    %v912 = vld [vmem:[%s911] ss:$18 sm:$0x3]
    %914 = vrot.lane.b32.xlu0 %v898, 32
    %v915 = vpop.permute.xlu0 %914
    %918 = vrot.lane.b32.xlu0 %v900, 64
    %v919 = vpop.permute.xlu0 %918
    %922 = vrot.lane.b32.xlu0 %v902, 96
    %v923 = vpop.permute.xlu0 %922
    %926 = vrot.lane.b32.xlu0 %v906, 32
    %v927 = vpop.permute.xlu0 %926
    %930 = vrot.lane.b32.xlu0 %v908, 64
    %v931 = vpop.permute.xlu0 %930
    %934 = vrot.lane.b32.xlu0 %v910, 96
    %v935 = vpop.permute.xlu0 %934
    %v937 = vsel %vm889, %v896, %v915
    %vm938 = vcmask 523264
    %v939 = vsel %vm938, %v937, %v919
    %vm940 = vcmask 785408
    %v941 = vsel %vm940, %v939, %v923
    %v942 = vsel %vm889, %v904, %v927
    %v943 = vsel %vm938, %v942, %v931
    %v944 = vsel %vm940, %v943, %v935
    %s945 = scalar_lea.vmem [#allocation2], 9
    %v946 = vld [vmem:[%s945] ss:$18 sm:$0x3]
    %s947 = scalar_lea.vmem [#allocation2], 10
    %v948 = vld [vmem:[%s947] ss:$18 sm:$0x3]
    %s949 = scalar_lea.vmem [#allocation2], 11
    %v950 = vld [vmem:[%s949] ss:$18 sm:$0x3]
    %s951 = scalar_lea.vmem [#allocation2], 12
    %v952 = vld [vmem:[%s951] ss:$18 sm:$0x3]
    %s953 = scalar_lea.vmem [#allocation2], 13
    %v954 = vld [vmem:[%s953] ss:$18 sm:$0x3]
    %s955 = scalar_lea.vmem [#allocation2], 14
    %v956 = vld [vmem:[%s955] ss:$18 sm:$0x3]
    %s957 = scalar_lea.vmem [#allocation2], 15
    %v958 = vld [vmem:[%s957] ss:$18 sm:$0x3]
    %s959 = scalar_lea.vmem [#allocation2], 16
    %v960 = vld [vmem:[%s959] ss:$18 sm:$0x3]
    %s961 = scalar_lea.vmem [#allocation2], 17
    %v962 = vld [vmem:[%s961] ss:$18 sm:$0x3]
    %964 = vrot.lane.b32.xlu0 %v948, 32
    %v965 = vpop.permute.xlu0 %964
    %968 = vrot.lane.b32.xlu0 %v950, 64
    %v969 = vpop.permute.xlu0 %968
    %972 = vrot.lane.b32.xlu0 %v952, 96
    %v973 = vpop.permute.xlu0 %972
    %976 = vrot.lane.b32.xlu0 %v956, 32
    %v977 = vpop.permute.xlu0 %976
    %980 = vrot.lane.b32.xlu0 %v958, 64
    %v981 = vpop.permute.xlu0 %980
    %984 = vrot.lane.b32.xlu0 %v960, 96
    %v985 = vpop.permute.xlu0 %984
    %v987 = vsel %vm889, %v946, %v965
    %v988 = vsel %vm938, %v987, %v969
    %v989 = vsel %vm940, %v988, %v973
    %v990 = vsel %vm889, %v954, %v977
    %v991 = vsel %vm938, %v990, %v981
    %v992 = vsel %vm940, %v991, %v985
    %v993 = vld [vmem:[%s14 + $0x2] ss:$0 sm:$0xff]
    %v994 = vpack.c.bf16 %v941, %v941
    %v995 = vpack.c.bf16 %v944, %v944
    %v996 = vpack.c.bf16 %v912, %v912
    %v997 = vld [vmem:[%s9] sm:$0xf]
    %v998 = vld [vmem:[%s9 + $0x4] sm:$0xf]
    %v999 = vld [vmem:[%s9 + $0x8] sm:$0xf]
    %v1000 = vld [vmem:[%s9 + $0xc] sm:$0xf]
    %v1001 = vld [vmem:[%s9 + $0x10] sm:$0xf]
    %v1002 = vld [vmem:[%s9 + $0x14] sm:$0xf]
    %v1003 = vld [vmem:[%s9 + $0x18] sm:$0xf]
    %v1004 = vld [vmem:[%s9 + $0x1c] sm:$0xf]
    %v1005 = vld [vmem:[%s9 + $0x20] sm:$0xf]
    %v1006 = vld [vmem:[%s9 + $0x24] sm:$0xf]
    %v1007 = vld [vmem:[%s9 + $0x28] sm:$0xf]
    %v1008 = vld [vmem:[%s9 + $0x2c] sm:$0xf]
    %v1009 = vld [vmem:[%s9 + $0x30] sm:$0xf]
    %v1010 = vld [vmem:[%s9 + $0x34] sm:$0xf]
    %v1011 = vld [vmem:[%s9 + $0x38] sm:$0xf]
    %v1012 = vld [vmem:[%s9 + $0x3c] sm:$0xf]
    %v1013 = vld [vmem:[%s9 + $0x40] sm:$0xf]
    %v1014 = vld [vmem:[%s9 + $0x44] sm:$0xf]
    %v1015 = vld [vmem:[%s9 + $0x48] sm:$0xf]
    %v1016 = vld [vmem:[%s9 + $0x4c] sm:$0xf]
    %v1017 = vld [vmem:[%s9 + $0x50] sm:$0xf]
    %v1018 = vld [vmem:[%s9 + $0x54] sm:$0xf]
    %v1019 = vld [vmem:[%s9 + $0x58] sm:$0xf]
    %v1020 = vld [vmem:[%s9 + $0x5c] sm:$0xf]
    %v1021 = vld [vmem:[%s9 + $0x60] sm:$0xf]
    %v1022 = vld [vmem:[%s9 + $0x64] sm:$0xf]
    %v1023 = vld [vmem:[%s9 + $0x68] sm:$0xf]
    %v1024 = vld [vmem:[%s9 + $0x6c] sm:$0xf]
    %v1025 = vld [vmem:[%s9 + $0x70] sm:$0xf]
    %v1026 = vld [vmem:[%s9 + $0x74] sm:$0xf]
    %v1027 = vld [vmem:[%s9 + $0x78] sm:$0xf]
    %v1028 = vld [vmem:[%s9 + $0x7c] sm:$0xf]
    %v1029 = vld [vmem:[%s9 + $0x80] sm:$0xf]
    %v1030 = vld [vmem:[%s9 + $0x84] sm:$0xf]
    %v1031 = vld [vmem:[%s9 + $0x88] sm:$0xf]
    %v1032 = vld [vmem:[%s9 + $0x8c] sm:$0xf]
    %v1069 = vunpack.c.l.b16 %v997
    %v1070 = vunpack.c.l.b16 %v998
    %v1071 = vunpack.c.l.b16 %v999
    %v1072 = vunpack.c.l.b16 %v1000
    %v1073 = vunpack.c.l.b16 %v1001
    %v1074 = vunpack.c.l.b16 %v1002
    %v1075 = vunpack.c.l.b16 %v1003
    %v1076 = vunpack.c.l.b16 %v1004
    %v1077 = vunpack.c.l.b16 %v1005
    %v1078 = vunpack.c.l.b16 %v1006
    %v1079 = vunpack.c.l.b16 %v1007
    %v1080 = vunpack.c.l.b16 %v1008
    %v1081 = vunpack.c.l.b16 %v1009
    %v1082 = vunpack.c.l.b16 %v1010
    %v1083 = vunpack.c.l.b16 %v1011
    %v1084 = vunpack.c.l.b16 %v1012
    %v1085 = vunpack.c.l.b16 %v1013
    %v1086 = vunpack.c.l.b16 %v1014
    %v1087 = vunpack.c.l.b16 %v1015
    %v1088 = vunpack.c.l.b16 %v1016
    %v1089 = vunpack.c.l.b16 %v1017
    %v1090 = vunpack.c.l.b16 %v1018
    %v1091 = vunpack.c.l.b16 %v1019
    %v1092 = vunpack.c.l.b16 %v1020
    %v1093 = vunpack.c.l.b16 %v1021
    %v1094 = vunpack.c.l.b16 %v1022
    %v1095 = vunpack.c.l.b16 %v1023
    %v1096 = vunpack.c.l.b16 %v1024
    %v1097 = vunpack.c.l.b16 %v1025
    %v1098 = vunpack.c.l.b16 %v1026
    %v1099 = vunpack.c.l.b16 %v1027
    %v1100 = vunpack.c.l.b16 %v1028
    %v1101 = vunpack.c.l.b16 %v1029
    %v1102 = vunpack.c.l.b16 %v1030
    %v1103 = vunpack.c.l.b16 %v1031
    %v1104 = vunpack.c.l.b16 %v1032
    %v1105 = vpack.c.b16 %v1070, %v1069
    %v1106 = vpack.c.b16 %v1072, %v1071
    %v1107 = vpack.c.b16 %v1074, %v1073
    %v1108 = vpack.c.b16 %v1076, %v1075
    %v1109 = vpack.c.b16 %v1078, %v1077
    %v1110 = vpack.c.b16 %v1080, %v1079
    %v1111 = vpack.c.b16 %v1082, %v1081
    %v1112 = vpack.c.b16 %v1084, %v1083
    %v1113 = vpack.c.b16 %v1086, %v1085
    %v1114 = vpack.c.b16 %v1088, %v1087
    %v1115 = vpack.c.b16 %v1090, %v1089
    %v1116 = vpack.c.b16 %v1092, %v1091
    %v1117 = vpack.c.b16 %v1094, %v1093
    %v1118 = vpack.c.b16 %v1096, %v1095
    %v1119 = vpack.c.b16 %v1098, %v1097
    %v1120 = vpack.c.b16 %v1100, %v1099
    %v1121 = vpack.c.b16 %v1102, %v1101
    %v1122 = vpack.c.b16 %v1104, %v1103
    %v1142 = vsel %vm889, %v996, 0
    %1144 = vmatprep.subr.bf16.mxu0 0
    %1145 = vmatpush1.bf16.msra.mxu0 %v1105
    %1146 = vmatprep.subr.bf16.mxu0 0
    %1147 = vmatpush1.bf16.msra.mxu0 %v1106
    %1148 = vmatprep.subr.bf16.mxu0 0
    %1149 = vmatpush1.bf16.msra.mxu0 %v1107
    %1150 = vmatprep.subr.bf16.mxu0 0
    %1151 = vmatpush1.bf16.msra.mxu0 %v1108
    %1152 = vmatprep.subr.bf16.mxu0 0
    %1153 = vmatpush1.bf16.msra.mxu0 %v1109
    %1154 = vmatprep.subr.bf16.mxu0 0
    %1155 = vmatpush1.bf16.msra.mxu0 %v1110
    %1156 = vmatprep.subr.bf16.mxu0 0
    %1157 = vmatpush1.bf16.msra.mxu0 %v1111
    %1158 = vmatprep.subr.bf16.mxu0 0
    %1159 = vmatpush1.bf16.msra.mxu0 %v1112
    %1160 = vmatprep.subr.bf16.mxu0 0
    %1161 = vmatpush1.bf16.msra.mxu0 %v1113
    %1162 = vmatprep.subr.bf16.mxu0 0
    %1163 = vmatpush1.bf16.msra.mxu0 %v1114
    %1164 = vmatprep.subr.bf16.mxu0 0
    %1165 = vmatpush1.bf16.msra.mxu0 %v1115
    %1166 = vmatprep.subr.bf16.mxu0 0
    %1167 = vmatpush1.bf16.msra.mxu0 %v1116
    %1168 = vmatprep.subr.bf16.mxu0 0
    %1169 = vmatpush1.bf16.msra.mxu0 %v1117
    %1170 = vmatprep.subr.bf16.mxu0 0
    %1171 = vmatpush1.bf16.msra.mxu0 %v1118
    %1172 = vmatprep.subr.bf16.mxu0 0
    %1173 = vmatpush1.bf16.msra.mxu0 %v1119
    %1174 = vmatprep.subr.bf16.mxu0 0
    %1175 = vmatpush1.bf16.msra.mxu0 %v1120
    %1176 = vmatprep.mubr.bf16.mxu0 %v995
    %1177 = vmatmul.mubr.bf16.gmra.mrb[0].mxu0 %v994
    %v1178 = vpop.f32.mrb[0].mxu0
    %v1179 = vadd.f32 %v993, %v1178
    %v1180 = vpop.f32.mrb[0].mxu0
    %v1181 = vpop.f32.mrb[0].mxu0
    %v1182 = vpop.f32.mrb[0].mxu0
    %1183 = vdwg.mxu0
    %1184 = vmatprep.subr.bf16.mxu0 0
    %1185 = vmatpush1.bf16.msra.mxu0 %v1121
    %1186 = vmatprep.subr.bf16.mxu0 0
    %1187 = vmatpush1.bf16.msra.mxu0 %v1122
    %1188 = vmatprep.subr.bf16.mxu0 0
    %1189 = vmatpush1.bf16.msra.mxu0 0
    %1190 = vmatprep.subr.bf16.mxu0 0
    %1191 = vmatpush1.bf16.msra.mxu0 0
    %1192 = vmatprep.subr.bf16.mxu0 0
    %1193 = vmatpush1.bf16.msra.mxu0 0
    %1194 = vmatprep.subr.bf16.mxu0 0
    %1195 = vmatpush1.bf16.msra.mxu0 0
    %1196 = vmatprep.subr.bf16.mxu0 0
    %1197 = vmatpush1.bf16.msra.mxu0 0
    %1198 = vmatprep.subr.bf16.mxu0 0
    %1199 = vmatpush1.bf16.msra.mxu0 0
    %1200 = vmatprep.subr.bf16.mxu0 0
    %1201 = vmatpush1.bf16.msra.mxu0 0
    %1202 = vmatprep.subr.bf16.mxu0 0
    %1203 = vmatpush1.bf16.msra.mxu0 0
    %1204 = vmatprep.subr.bf16.mxu0 0
    %1205 = vmatpush1.bf16.msra.mxu0 0
    %1206 = vmatprep.subr.bf16.mxu0 0
    %1207 = vmatpush1.bf16.msra.mxu0 0
    %1208 = vmatprep.subr.bf16.mxu0 0
    %1209 = vmatpush1.bf16.msra.mxu0 0
    %1210 = vmatprep.subr.bf16.mxu0 0
    %1211 = vmatpush1.bf16.msra.mxu0 0
    %1212 = vmatprep.subr.bf16.mxu0 0
    %1213 = vmatpush1.bf16.msra.mxu0 0
    %1214 = vmatprep.subr.bf16.mxu0 0
    %1215 = vmatpush1.bf16.msra.mxu0 0
    %1216 = vmatprep.mubr.bf16.mxu0 0
    %1217 = vmatmul.mubr.bf16.gmra.mrb[0].mxu0 %v1142
    %v1218 = vpop.f32.mrb[0].mxu0
    %v1219 = vadd.f32 %v1179, %v1218
    %v1220 = vpop.f32.mrb[0].mxu0
    %v1221 = vpop.f32.mrb[0].mxu0
    %v1222 = vpop.f32.mrb[0].mxu0
    %1223 = vdwg.mxu0
    %v1224 = vmax.f32 %v1219, 0.0
    %v1225 = vpack.c.bf16 %v989, %v989
    %v1226 = vpack.c.bf16 %v992, %v992
    %v1227 = vpack.c.bf16 %v962, %v962
    %v1229 = vsel %vm889, %v1227, 0
    %1231 = vmatprep.subr.bf16.mxu0 0
    %1232 = vmatpush1.bf16.msra.mxu0 %v1105
    %1233 = vmatprep.subr.bf16.mxu0 0
    %1234 = vmatpush1.bf16.msra.mxu0 %v1106
    %1235 = vmatprep.subr.bf16.mxu0 0
    %1236 = vmatpush1.bf16.msra.mxu0 %v1107
    %1237 = vmatprep.subr.bf16.mxu0 0
    %1238 = vmatpush1.bf16.msra.mxu0 %v1108
    %1239 = vmatprep.subr.bf16.mxu0 0
    %1240 = vmatpush1.bf16.msra.mxu0 %v1109
    %1241 = vmatprep.subr.bf16.mxu0 0
    %1242 = vmatpush1.bf16.msra.mxu0 %v1110
    %1243 = vmatprep.subr.bf16.mxu0 0
    %1244 = vmatpush1.bf16.msra.mxu0 %v1111
    %1245 = vmatprep.subr.bf16.mxu0 0
    %1246 = vmatpush1.bf16.msra.mxu0 %v1112
    %1247 = vmatprep.subr.bf16.mxu0 0
    %1248 = vmatpush1.bf16.msra.mxu0 %v1113
    %1249 = vmatprep.subr.bf16.mxu0 0
    %1250 = vmatpush1.bf16.msra.mxu0 %v1114
    %1251 = vmatprep.subr.bf16.mxu0 0
    %1252 = vmatpush1.bf16.msra.mxu0 %v1115
    %1253 = vmatprep.subr.bf16.mxu0 0
    %1254 = vmatpush1.bf16.msra.mxu0 %v1116
    %1255 = vmatprep.subr.bf16.mxu0 0
    %1256 = vmatpush1.bf16.msra.mxu0 %v1117
    %1257 = vmatprep.subr.bf16.mxu0 0
    %1258 = vmatpush1.bf16.msra.mxu0 %v1118
    %1259 = vmatprep.subr.bf16.mxu0 0
    %1260 = vmatpush1.bf16.msra.mxu0 %v1119
    %1261 = vmatprep.subr.bf16.mxu0 0
    %1262 = vmatpush1.bf16.msra.mxu0 %v1120
    %1263 = vmatprep.mubr.bf16.mxu0 %v1226
    %1264 = vmatmul.mubr.bf16.gmra.mrb[0].mxu0 %v1225
    %v1265 = vpop.f32.mrb[0].mxu0
    %v1266 = vadd.f32 %v993, %v1265
    %v1267 = vpop.f32.mrb[0].mxu0
    %v1268 = vpop.f32.mrb[0].mxu0
    %v1269 = vpop.f32.mrb[0].mxu0
    %1270 = vdwg.mxu0
    %1271 = vmatprep.subr.bf16.mxu0 0
    %1272 = vmatpush1.bf16.msra.mxu0 %v1121
    %1273 = vmatprep.subr.bf16.mxu0 0
    %1274 = vmatpush1.bf16.msra.mxu0 %v1122
    %1275 = vmatprep.subr.bf16.mxu0 0
    %1276 = vmatpush1.bf16.msra.mxu0 0
    %1277 = vmatprep.subr.bf16.mxu0 0
    %1278 = vmatpush1.bf16.msra.mxu0 0
    %1279 = vmatprep.subr.bf16.mxu0 0
    %1280 = vmatpush1.bf16.msra.mxu0 0
    %1281 = vmatprep.subr.bf16.mxu0 0
    %1282 = vmatpush1.bf16.msra.mxu0 0
    %1283 = vmatprep.subr.bf16.mxu0 0
    %1284 = vmatpush1.bf16.msra.mxu0 0
    %1285 = vmatprep.subr.bf16.mxu0 0
    %1286 = vmatpush1.bf16.msra.mxu0 0
    %1287 = vmatprep.subr.bf16.mxu0 0
    %1288 = vmatpush1.bf16.msra.mxu0 0
    %1289 = vmatprep.subr.bf16.mxu0 0
    %1290 = vmatpush1.bf16.msra.mxu0 0
    %1291 = vmatprep.subr.bf16.mxu0 0
    %1292 = vmatpush1.bf16.msra.mxu0 0
    %1293 = vmatprep.subr.bf16.mxu0 0
    %1294 = vmatpush1.bf16.msra.mxu0 0
    %1295 = vmatprep.subr.bf16.mxu0 0
    %1296 = vmatpush1.bf16.msra.mxu0 0
    %1297 = vmatprep.subr.bf16.mxu0 0
    %1298 = vmatpush1.bf16.msra.mxu0 0
    %1299 = vmatprep.subr.bf16.mxu0 0
    %1300 = vmatpush1.bf16.msra.mxu0 0
    %1301 = vmatprep.subr.bf16.mxu0 0
    %1302 = vmatpush1.bf16.msra.mxu0 0
    %1303 = vmatprep.mubr.bf16.mxu0 0
    %1304 = vmatmul.mubr.bf16.gmra.mrb[0].mxu0 %v1229
    %v1305 = vpop.f32.mrb[0].mxu0
    %v1306 = vadd.f32 %v1266, %v1305
    %v1307 = vpop.f32.mrb[0].mxu0
    %v1308 = vpop.f32.mrb[0].mxu0
    %v1309 = vpop.f32.mrb[0].mxu0
    %1310 = vdwg.mxu0
    %v1311 = vmax.f32 %v1306, 0.0
    %1313 = vrot.lane.b32.xlu0 %v1311, 64
    %v1314 = vpop.permute.xlu0 %1313
    %v1316 = vsel %vm938, %v1224, %v1314
    %v1317 = vpack.c.bf16 %v1316, %v1316
    %v1318 = vld [vmem:[%s10] sm:$0xf]
    %v1319 = vld [vmem:[%s10 + $0x4] sm:$0xf]
    %v1320 = vld [vmem:[%s10 + $0x8] sm:$0xf]
    %v1321 = vld [vmem:[%s10 + $0xc] sm:$0xf]
    %v1322 = vld [vmem:[%s10 + $0x10] sm:$0xf]
    %v1323 = vld [vmem:[%s10 + $0x14] sm:$0xf]
    %v1324 = vld [vmem:[%s10 + $0x18] sm:$0xf]
    %v1325 = vld [vmem:[%s10 + $0x1c] sm:$0xf]
    %v1326 = vld [vmem:[%s10 + $0x20] sm:$0xf]
    %v1327 = vld [vmem:[%s10 + $0x24] sm:$0xf]
    %v1328 = vld [vmem:[%s10 + $0x28] sm:$0xf]
    %v1329 = vld [vmem:[%s10 + $0x2c] sm:$0xf]
    %v1330 = vld [vmem:[%s10 + $0x30] sm:$0xf]
    %v1331 = vld [vmem:[%s10 + $0x34] sm:$0xf]
    %v1332 = vld [vmem:[%s10 + $0x38] sm:$0xf]
    %v1333 = vld [vmem:[%s10 + $0x3c] sm:$0xf]
    %v1334 = vld [vmem:[%s14 + $0x3] ss:$0 sm:$0xff]
    %v1351 = vunpack.c.l.b16 %v1318
    %v1352 = vunpack.c.l.b16 %v1319
    %v1353 = vunpack.c.l.b16 %v1320
    %v1354 = vunpack.c.l.b16 %v1321
    %v1355 = vunpack.c.l.b16 %v1322
    %v1356 = vunpack.c.l.b16 %v1323
    %v1357 = vunpack.c.l.b16 %v1324
    %v1358 = vunpack.c.l.b16 %v1325
    %v1359 = vunpack.c.l.b16 %v1326
    %v1360 = vunpack.c.l.b16 %v1327
    %v1361 = vunpack.c.l.b16 %v1328
    %v1362 = vunpack.c.l.b16 %v1329
    %v1363 = vunpack.c.l.b16 %v1330
    %v1364 = vunpack.c.l.b16 %v1331
    %v1365 = vunpack.c.l.b16 %v1332
    %v1366 = vunpack.c.l.b16 %v1333
    %v1367 = vpack.c.b16 %v1352, %v1351
    %v1368 = vpack.c.b16 %v1354, %v1353
    %v1369 = vpack.c.b16 %v1356, %v1355
    %v1370 = vpack.c.b16 %v1358, %v1357
    %v1371 = vpack.c.b16 %v1360, %v1359
    %v1372 = vpack.c.b16 %v1362, %v1361
    %v1373 = vpack.c.b16 %v1364, %v1363
    %v1374 = vpack.c.b16 %v1366, %v1365
    %1383 = vmatprep.subr.bf16.mxu0 0
    %1384 = vmatpush1.bf16.msra.mxu0 %v1367
    %1385 = vmatprep.subr.bf16.mxu0 0
    %1386 = vmatpush1.bf16.msra.mxu0 %v1368
    %1387 = vmatprep.subr.bf16.mxu0 0
    %1388 = vmatpush1.bf16.msra.mxu0 %v1369
    %1389 = vmatprep.subr.bf16.mxu0 0
    %1390 = vmatpush1.bf16.msra.mxu0 %v1370
    %1391 = vmatprep.subr.bf16.mxu0 0
    %1392 = vmatpush1.bf16.msra.mxu0 %v1371
    %1393 = vmatprep.subr.bf16.mxu0 0
    %1394 = vmatpush1.bf16.msra.mxu0 %v1372
    %1395 = vmatprep.subr.bf16.mxu0 0
    %1396 = vmatpush1.bf16.msra.mxu0 %v1373
    %1397 = vmatprep.subr.bf16.mxu0 0
    %1398 = vmatpush1.bf16.msra.mxu0 %v1374
    %1399 = vmatprep.subr.bf16.mxu0 0
    %1400 = vmatpush1.bf16.msra.mxu0 0
    %1401 = vmatprep.subr.bf16.mxu0 0
    %1402 = vmatpush1.bf16.msra.mxu0 0
    %1403 = vmatprep.subr.bf16.mxu0 0
    %1404 = vmatpush1.bf16.msra.mxu0 0
    %1405 = vmatprep.subr.bf16.mxu0 0
    %1406 = vmatpush1.bf16.msra.mxu0 0
    %1407 = vmatprep.subr.bf16.mxu0 0
    %1408 = vmatpush1.bf16.msra.mxu0 0
    %1409 = vmatprep.subr.bf16.mxu0 0
    %1410 = vmatpush1.bf16.msra.mxu0 0
    %1411 = vmatprep.subr.bf16.mxu0 0
    %1412 = vmatpush1.bf16.msra.mxu0 0
    %1413 = vmatprep.subr.bf16.mxu0 0
    %1414 = vmatpush1.bf16.msra.mxu0 0
    %1415 = vmatprep.mubr.bf16.mxu0 0
    %1416 = vmatmul.mubr.bf16.gmra.mrb[0].mxu0 %v1317
    %v1417 = vpop.f32.mrb[0].mxu0
    %v1418 = vadd.f32 %v1334, %v1417
    %v1419 = vpop.f32.mrb[0].mxu0
    %v1420 = vpop.f32.mrb[0].mxu0
    %v1421 = vpop.f32.mrb[0].mxu0
    %1422 = vdwg.mxu0
    %v1423 = vpack.c.bf16 %v1418, %v1418
    %v1424 = vld [vmem:[%s11] sm:$0xf]
    %v1425 = vld [vmem:[%s11 + $0x4] sm:$0xf]
    %v1426 = vld [vmem:[%s11 + $0x8] sm:$0xf]
    %v1427 = vld [vmem:[%s11 + $0xc] sm:$0xf]
    %v1428 = vld [vmem:[%s11 + $0x10] sm:$0xf]
    %v1429 = vld [vmem:[%s11 + $0x14] sm:$0xf]
    %v1430 = vld [vmem:[%s11 + $0x18] sm:$0xf]
    %v1431 = vld [vmem:[%s11 + $0x1c] sm:$0xf]
    %v1432 = vld [vmem:[%s11 + $0x20] sm:$0xf]
    %v1433 = vld [vmem:[%s11 + $0x24] sm:$0xf]
    %v1434 = vld [vmem:[%s11 + $0x28] sm:$0xf]
    %v1435 = vld [vmem:[%s11 + $0x2c] sm:$0xf]
    %v1436 = vld [vmem:[%s11 + $0x30] sm:$0xf]
    %v1437 = vld [vmem:[%s11 + $0x34] sm:$0xf]
    %v1438 = vld [vmem:[%s11 + $0x38] sm:$0xf]
    %v1439 = vld [vmem:[%s11 + $0x3c] sm:$0xf]
    %v1456 = vunpack.c.l.b16 %v1424
    %v1457 = vunpack.c.l.b16 %v1425
    %v1458 = vunpack.c.l.b16 %v1426
    %v1459 = vunpack.c.l.b16 %v1427
    %v1460 = vunpack.c.l.b16 %v1428
    %v1461 = vunpack.c.l.b16 %v1429
    %v1462 = vunpack.c.l.b16 %v1430
    %v1463 = vunpack.c.l.b16 %v1431
    %v1464 = vunpack.c.l.b16 %v1432
    %v1465 = vunpack.c.l.b16 %v1433
    %v1466 = vunpack.c.l.b16 %v1434
    %v1467 = vunpack.c.l.b16 %v1435
    %v1468 = vunpack.c.l.b16 %v1436
    %v1469 = vunpack.c.l.b16 %v1437
    %v1470 = vunpack.c.l.b16 %v1438
    %v1471 = vunpack.c.l.b16 %v1439
    %v1472 = vpack.c.b16 %v1457, %v1456
    %v1473 = vpack.c.b16 %v1459, %v1458
    %v1474 = vpack.c.b16 %v1461, %v1460
    %v1475 = vpack.c.b16 %v1463, %v1462
    %v1476 = vpack.c.b16 %v1465, %v1464
    %v1477 = vpack.c.b16 %v1467, %v1466
    %v1478 = vpack.c.b16 %v1469, %v1468
    %v1479 = vpack.c.b16 %v1471, %v1470
    %1488 = vmatprep.subr.bf16.mxu0 0
    %1489 = vmatpush1.bf16.msra.mxu0 %v1472
    %1490 = vmatprep.subr.bf16.mxu0 0
    %1491 = vmatpush1.bf16.msra.mxu0 %v1473
    %1492 = vmatprep.subr.bf16.mxu0 0
    %1493 = vmatpush1.bf16.msra.mxu0 %v1474
    %1494 = vmatprep.subr.bf16.mxu0 0
    %1495 = vmatpush1.bf16.msra.mxu0 %v1475
    %1496 = vmatprep.subr.bf16.mxu0 0
    %1497 = vmatpush1.bf16.msra.mxu0 %v1476
    %1498 = vmatprep.subr.bf16.mxu0 0
    %1499 = vmatpush1.bf16.msra.mxu0 %v1477
    %1500 = vmatprep.subr.bf16.mxu0 0
    %1501 = vmatpush1.bf16.msra.mxu0 %v1478
    %1502 = vmatprep.subr.bf16.mxu0 0
    %1503 = vmatpush1.bf16.msra.mxu0 %v1479
    %1504 = vmatprep.subr.bf16.mxu0 0
    %1505 = vmatpush1.bf16.msra.mxu0 0
    %1506 = vmatprep.subr.bf16.mxu0 0
    %1507 = vmatpush1.bf16.msra.mxu0 0
    %1508 = vmatprep.subr.bf16.mxu0 0
    %1509 = vmatpush1.bf16.msra.mxu0 0
    %1510 = vmatprep.subr.bf16.mxu0 0
    %1511 = vmatpush1.bf16.msra.mxu0 0
    %1512 = vmatprep.subr.bf16.mxu0 0
    %1513 = vmatpush1.bf16.msra.mxu0 0
    %1514 = vmatprep.subr.bf16.mxu0 0
    %1515 = vmatpush1.bf16.msra.mxu0 0
    %1516 = vmatprep.subr.bf16.mxu0 0
    %1517 = vmatpush1.bf16.msra.mxu0 0
    %1518 = vmatprep.subr.bf16.mxu0 0
    %1519 = vmatpush1.bf16.msra.mxu0 0
    %1520 = vmatprep.mubr.bf16.mxu0 0
    %1521 = vmatmul.mubr.bf16.gmra.mrb[0].mxu0 %v1423
    %v1522 = vpop.f32.mrb[0].mxu0
    %v1523 = vadd.f32 %v1418, %v1522
    %v1524 = vpop.f32.mrb[0].mxu0
    %v1525 = vpop.f32.mrb[0].mxu0
    %v1526 = vpop.f32.mrb[0].mxu0
    %1527 = vdwg.mxu0
    %v1528 = vld [vmem:[%s14 + $0x6] ss:$0 sm:$0xff]
    %v1529 = vld [vmem:[%s14 + $0x7] ss:$0 sm:$0xff]
    %v1530 = vsel %vm566, %v1523, 0.0
    %1531 = vadd.xlane.f32.xlu0 %v1530
    %v1532 = vpop.xlane.xlu0 %1531
    %v1533 = vrcp.pop 128.0
    %v1534 = vmul.f32 %v1532, %v1533
    %v1535 = vsub.f32 %v1523, %v1534
    %v1536 = vmul.f32 %v1535, %v1535
    %v1537 = vsel %vm566, %v1536, 0.0
    %1538 = vadd.xlane.f32.xlu0 %v1537
    %v1539 = vpop.xlane.xlu0 %1538
    %v1540 = vmul.f32 %v1539, %v1533
    %v1541 = vadd.f32 %v1540, 1e-06
    %v1542 = vrsqrt.pop %v1541
    %v1543 = vmul.f32 %v1535, %v1542
    %v1544 = vmul.f32 %v1543, %v1528
    %v1545 = vadd.f32 %v1544, %v1529
    %v1546 = vpack.c.bf16 %v1545, %v1545
    %v1547 = vld [vmem:[%s12] sm:$0xff]
    %v1548 = vld [vmem:[%s12 + $0x8] sm:$0xff]
    %v1549 = vld [vmem:[%s12 + $0x10] sm:$0xff]
    %v1550 = vld [vmem:[%s12 + $0x18] sm:$0xff]
    %v1551 = vld [vmem:[%s12 + $0x20] sm:$0xff]
    %v1552 = vld [vmem:[%s12 + $0x28] sm:$0xff]
    %v1553 = vld [vmem:[%s12 + $0x30] sm:$0xff]
    %v1554 = vld [vmem:[%s12 + $0x38] sm:$0xff]
    %v1555 = vld [vmem:[%s12 + $0x40] sm:$0xff]
    %v1556 = vld [vmem:[%s12 + $0x48] sm:$0xff]
    %v1557 = vld [vmem:[%s12 + $0x50] sm:$0xff]
    %v1558 = vld [vmem:[%s12 + $0x58] sm:$0xff]
    %v1559 = vld [vmem:[%s12 + $0x60] sm:$0xff]
    %v1560 = vld [vmem:[%s12 + $0x68] sm:$0xff]
    %v1561 = vld [vmem:[%s12 + $0x70] sm:$0xff]
    %v1562 = vld [vmem:[%s12 + $0x78] sm:$0xff]
    %s1563 = scalar_lea.vmem %s14, 16
    %v1564 = vld [vmem:[%s1563] ss:$8 sm:$0x3]
    %v1566 = vlaneseq
    %v1567 = vshrl.u32 %v1566, 7
    %v1568 = vsub.s32 0, %v1567
    %v1569 = vrot.slane %v1564, %v1568
    %v1570 = vlaneseq
    %v1571 = vshrl.u32 %v1570, 7
    %v1572 = vsub.s32 1, %v1571
    %v1573 = vrot.slane %v1564, %v1572
    %v1592 = vunpack.c.l.b16 %v1547
    %v1593 = vunpack.c.h.b16 %v1547
    %v1594 = vunpack.c.l.b16 %v1548
    %v1595 = vunpack.c.h.b16 %v1548
    %v1596 = vunpack.c.l.b16 %v1549
    %v1597 = vunpack.c.h.b16 %v1549
    %v1598 = vunpack.c.l.b16 %v1550
    %v1599 = vunpack.c.h.b16 %v1550
    %v1600 = vunpack.c.l.b16 %v1551
    %v1601 = vunpack.c.h.b16 %v1551
    %v1602 = vunpack.c.l.b16 %v1552
    %v1603 = vunpack.c.h.b16 %v1552
    %v1604 = vunpack.c.l.b16 %v1553
    %v1605 = vunpack.c.h.b16 %v1553
    %v1606 = vunpack.c.l.b16 %v1554
    %v1607 = vunpack.c.h.b16 %v1554
    %v1608 = vunpack.c.l.b16 %v1555
    %v1609 = vunpack.c.h.b16 %v1555
    %v1610 = vunpack.c.l.b16 %v1556
    %v1611 = vunpack.c.h.b16 %v1556
    %v1612 = vunpack.c.l.b16 %v1557
    %v1613 = vunpack.c.h.b16 %v1557
    %v1614 = vunpack.c.l.b16 %v1558
    %v1615 = vunpack.c.h.b16 %v1558
    %v1616 = vunpack.c.l.b16 %v1559
    %v1617 = vunpack.c.h.b16 %v1559
    %v1618 = vunpack.c.l.b16 %v1560
    %v1619 = vunpack.c.h.b16 %v1560
    %v1620 = vunpack.c.l.b16 %v1561
    %v1621 = vunpack.c.h.b16 %v1561
    %v1622 = vunpack.c.l.b16 %v1562
    %v1623 = vunpack.c.h.b16 %v1562
    %v1624 = vpack.c.b16 %v1594, %v1592
    %v1625 = vpack.c.b16 %v1595, %v1593
    %v1626 = vpack.c.b16 %v1598, %v1596
    %v1627 = vpack.c.b16 %v1599, %v1597
    %v1628 = vpack.c.b16 %v1602, %v1600
    %v1629 = vpack.c.b16 %v1603, %v1601
    %v1630 = vpack.c.b16 %v1606, %v1604
    %v1631 = vpack.c.b16 %v1607, %v1605
    %v1632 = vpack.c.b16 %v1610, %v1608
    %v1633 = vpack.c.b16 %v1611, %v1609
    %v1634 = vpack.c.b16 %v1614, %v1612
    %v1635 = vpack.c.b16 %v1615, %v1613
    %v1636 = vpack.c.b16 %v1618, %v1616
    %v1637 = vpack.c.b16 %v1619, %v1617
    %v1638 = vpack.c.b16 %v1622, %v1620
    %v1639 = vpack.c.b16 %v1623, %v1621
    %1656 = vmatprep.subr.bf16.mxu0 %v1625
    %1657 = vmatpush1.bf16.msra.mxu0 %v1624
    %1658 = vmatprep.subr.bf16.mxu0 %v1627
    %1659 = vmatpush1.bf16.msra.mxu0 %v1626
    %1660 = vmatprep.subr.bf16.mxu0 %v1629
    %1661 = vmatpush1.bf16.msra.mxu0 %v1628
    %1662 = vmatprep.subr.bf16.mxu0 %v1631
    %1663 = vmatpush1.bf16.msra.mxu0 %v1630
    %1664 = vmatprep.subr.bf16.mxu0 %v1633
    %1665 = vmatpush1.bf16.msra.mxu0 %v1632
    %1666 = vmatprep.subr.bf16.mxu0 %v1635
    %1667 = vmatpush1.bf16.msra.mxu0 %v1634
    %1668 = vmatprep.subr.bf16.mxu0 %v1637
    %1669 = vmatpush1.bf16.msra.mxu0 %v1636
    %1670 = vmatprep.subr.bf16.mxu0 %v1639
    %1671 = vmatpush1.bf16.msra.mxu0 %v1638
    %1672 = vmatprep.subr.bf16.mxu0 0
    %1673 = vmatpush1.bf16.msra.mxu0 0
    %1674 = vmatprep.subr.bf16.mxu0 0
    %1675 = vmatpush1.bf16.msra.mxu0 0
    %1676 = vmatprep.subr.bf16.mxu0 0
    %1677 = vmatpush1.bf16.msra.mxu0 0
    %1678 = vmatprep.subr.bf16.mxu0 0
    %1679 = vmatpush1.bf16.msra.mxu0 0
    %1680 = vmatprep.subr.bf16.mxu0 0
    %1681 = vmatpush1.bf16.msra.mxu0 0
    %1682 = vmatprep.subr.bf16.mxu0 0
    %1683 = vmatpush1.bf16.msra.mxu0 0
    %1684 = vmatprep.subr.bf16.mxu0 0
    %1685 = vmatpush1.bf16.msra.mxu0 0
    %1686 = vmatprep.subr.bf16.mxu0 0
    %1687 = vmatpush1.bf16.msra.mxu0 0
    %1688 = vmatprep.mubr.bf16.mxu0 0
    %1689 = vmatmul.mubr.bf16.gmra.mrb[0].mxu0 %v1546
    %v1690 = vpop.f32.mrb[0].mxu0
    %v1691 = vadd.f32 %v1569, %v1690
    %v1692 = vpop.f32.mrb[0].mxu0
    %v1693 = vadd.f32 %v1573, %v1692
    %v1694 = vpop.f32.mrb[0].mxu0
    %v1695 = vpop.f32.mrb[0].mxu0
    %1696 = vdwg.mxu0
    %v1697 = vmul.f32 %v1691, 0.5
    %v1698 = vmul.f32 %v1693, 0.5
    %v1699 = vmul.f32 %v1691, 0.70710677
    %v1700 = vmul.f32 %v1693, 0.70710677
    %v1701 = vand.u32 2147483647, %v1699
    %v1702 = vand.u32 2147483647, %v1700
    %v1703 = vmul.f32 %v1701, 0.3275911
    %v1704 = vmul.f32 %v1702, 0.3275911
    %v1705 = vadd.f32 %v1703, 1.0
    %v1706 = vadd.f32 %v1704, 1.0
    %v1707 = vrcp.pop %v1705
    %v1708 = vmul.f32 1.0, %v1707
    %v1709 = vrcp.pop %v1706
    %v1710 = vmul.f32 1.0, %v1709
    %v1711 = vmul.f32 %v1708, 1.0614054
    %v1712 = vmul.f32 %v1710, 1.0614054
    %v1713 = vadd.f32 %v1711, -1.4531521
    %v1714 = vadd.f32 %v1712, -1.4531521
    %v1715 = vmul.f32 %v1713, %v1708
    %v1716 = vmul.f32 %v1714, %v1710
    %v1717 = vadd.f32 %v1715, 1.4214138
    %v1718 = vadd.f32 %v1716, 1.4214138
    %v1719 = vmul.f32 %v1717, %v1708
    %v1720 = vmul.f32 %v1718, %v1710
    %v1721 = vadd.f32 %v1719, -0.28449672
    %v1722 = vadd.f32 %v1720, -0.28449672
    %v1723 = vmul.f32 %v1721, %v1708
    %v1724 = vmul.f32 %v1722, %v1710
    %v1725 = vadd.f32 %v1723, 0.2548296
    %v1726 = vadd.f32 %v1724, 0.2548296
    %v1727 = vmul.f32 %v1725, %v1708
    %v1728 = vmul.f32 %v1726, %v1710
    %v1729 = vsub.f32 0.0, %v1701
    %v1730 = vsub.f32 0.0, %v1702
    %v1731 = vmul.f32 %v1729, %v1701
    %v1732 = vmul.f32 %v1730, %v1702
    %v1733 = vmul.f32 %v1731, 1.442695
    %v1734 = vpow.pop %v1733
    %v1735 = vmul.f32 %v1732, 1.442695
    %v1736 = vpow.pop %v1735
    %v1737 = vmul.f32 %v1727, %v1734
    %v1738 = vmul.f32 %v1728, %v1736
    %v1739 = vsub.f32 1.0, %v1737
    %v1740 = vsub.f32 1.0, %v1738
    %vm1741 = vcmp.lt.f32.partialorder %v1699, 0.0
    %vm1742 = vcmp.lt.f32.partialorder %v1700, 0.0
    %v1743 = vsub.f32 0.0, %v1739
    %v1744 = vsub.f32 0.0, %v1740
    %v1745 = vsel %vm1741, %v1743, %v1739
    %v1746 = vsel %vm1742, %v1744, %v1740
    %v1747 = vadd.f32 %v1745, 1.0
    %v1748 = vadd.f32 %v1746, 1.0
    %v1749 = vmul.f32 %v1697, %v1747
    %v1750 = vmul.f32 %v1698, %v1748
    %v1751 = vpack.c.bf16 %v1749, %v1749
    %v1752 = vpack.c.bf16 %v1750, %v1750
    %v1753 = vld [vmem:[%s13] sm:$0xf]
    %v1754 = vld [vmem:[%s13 + $0x4] sm:$0xf]
    %v1755 = vld [vmem:[%s13 + $0x8] sm:$0xf]
    %v1756 = vld [vmem:[%s13 + $0xc] sm:$0xf]
    %v1757 = vld [vmem:[%s13 + $0x10] sm:$0xf]
    %v1758 = vld [vmem:[%s13 + $0x14] sm:$0xf]
    %v1759 = vld [vmem:[%s13 + $0x18] sm:$0xf]
    %v1760 = vld [vmem:[%s13 + $0x1c] sm:$0xf]
    %v1761 = vld [vmem:[%s13 + $0x20] sm:$0xf]
    %v1762 = vld [vmem:[%s13 + $0x24] sm:$0xf]
    %v1763 = vld [vmem:[%s13 + $0x28] sm:$0xf]
    %v1764 = vld [vmem:[%s13 + $0x2c] sm:$0xf]
    %v1765 = vld [vmem:[%s13 + $0x30] sm:$0xf]
    %v1766 = vld [vmem:[%s13 + $0x34] sm:$0xf]
    %v1767 = vld [vmem:[%s13 + $0x38] sm:$0xf]
    %v1768 = vld [vmem:[%s13 + $0x3c] sm:$0xf]
    %v1769 = vld [vmem:[%s13 + $0x40] sm:$0xf]
    %v1770 = vld [vmem:[%s13 + $0x44] sm:$0xf]
    %v1771 = vld [vmem:[%s13 + $0x48] sm:$0xf]
    %v1772 = vld [vmem:[%s13 + $0x4c] sm:$0xf]
    %v1773 = vld [vmem:[%s13 + $0x50] sm:$0xf]
    %v1774 = vld [vmem:[%s13 + $0x54] sm:$0xf]
    %v1775 = vld [vmem:[%s13 + $0x58] sm:$0xf]
    %v1776 = vld [vmem:[%s13 + $0x5c] sm:$0xf]
    %v1777 = vld [vmem:[%s13 + $0x60] sm:$0xf]
    %v1778 = vld [vmem:[%s13 + $0x64] sm:$0xf]
    %v1779 = vld [vmem:[%s13 + $0x68] sm:$0xf]
    %v1780 = vld [vmem:[%s13 + $0x6c] sm:$0xf]
    %v1781 = vld [vmem:[%s13 + $0x70] sm:$0xf]
    %v1782 = vld [vmem:[%s13 + $0x74] sm:$0xf]
    %v1783 = vld [vmem:[%s13 + $0x78] sm:$0xf]
    %v1784 = vld [vmem:[%s13 + $0x7c] sm:$0xf]
    %v1785 = vld [vmem:[%s14 + $0x11] ss:$0 sm:$0xff]
    %v1818 = vunpack.c.l.b16 %v1753
    %v1819 = vunpack.c.l.b16 %v1754
    %v1820 = vunpack.c.l.b16 %v1755
    %v1821 = vunpack.c.l.b16 %v1756
    %v1822 = vunpack.c.l.b16 %v1757
    %v1823 = vunpack.c.l.b16 %v1758
    %v1824 = vunpack.c.l.b16 %v1759
    %v1825 = vunpack.c.l.b16 %v1760
    %v1826 = vunpack.c.l.b16 %v1761
    %v1827 = vunpack.c.l.b16 %v1762
    %v1828 = vunpack.c.l.b16 %v1763
    %v1829 = vunpack.c.l.b16 %v1764
    %v1830 = vunpack.c.l.b16 %v1765
    %v1831 = vunpack.c.l.b16 %v1766
    %v1832 = vunpack.c.l.b16 %v1767
    %v1833 = vunpack.c.l.b16 %v1768
    %v1834 = vunpack.c.l.b16 %v1769
    %v1835 = vunpack.c.l.b16 %v1770
    %v1836 = vunpack.c.l.b16 %v1771
    %v1837 = vunpack.c.l.b16 %v1772
    %v1838 = vunpack.c.l.b16 %v1773
    %v1839 = vunpack.c.l.b16 %v1774
    %v1840 = vunpack.c.l.b16 %v1775
    %v1841 = vunpack.c.l.b16 %v1776
    %v1842 = vunpack.c.l.b16 %v1777
    %v1843 = vunpack.c.l.b16 %v1778
    %v1844 = vunpack.c.l.b16 %v1779
    %v1845 = vunpack.c.l.b16 %v1780
    %v1846 = vunpack.c.l.b16 %v1781
    %v1847 = vunpack.c.l.b16 %v1782
    %v1848 = vunpack.c.l.b16 %v1783
    %v1849 = vunpack.c.l.b16 %v1784
    %v1850 = vpack.c.b16 %v1819, %v1818
    %v1851 = vpack.c.b16 %v1821, %v1820
    %v1852 = vpack.c.b16 %v1823, %v1822
    %v1853 = vpack.c.b16 %v1825, %v1824
    %v1854 = vpack.c.b16 %v1827, %v1826
    %v1855 = vpack.c.b16 %v1829, %v1828
    %v1856 = vpack.c.b16 %v1831, %v1830
    %v1857 = vpack.c.b16 %v1833, %v1832
    %v1858 = vpack.c.b16 %v1835, %v1834
    %v1859 = vpack.c.b16 %v1837, %v1836
    %v1860 = vpack.c.b16 %v1839, %v1838
    %v1861 = vpack.c.b16 %v1841, %v1840
    %v1862 = vpack.c.b16 %v1843, %v1842
    %v1863 = vpack.c.b16 %v1845, %v1844
    %v1864 = vpack.c.b16 %v1847, %v1846
    %v1865 = vpack.c.b16 %v1849, %v1848
    %1882 = vmatprep.subr.bf16.mxu0 0
    %1883 = vmatpush1.bf16.msra.mxu0 %v1850
    %1884 = vmatprep.subr.bf16.mxu0 0
    %1885 = vmatpush1.bf16.msra.mxu0 %v1851
    %1886 = vmatprep.subr.bf16.mxu0 0
    %1887 = vmatpush1.bf16.msra.mxu0 %v1852
    %1888 = vmatprep.subr.bf16.mxu0 0
    %1889 = vmatpush1.bf16.msra.mxu0 %v1853
    %1890 = vmatprep.subr.bf16.mxu0 0
    %1891 = vmatpush1.bf16.msra.mxu0 %v1854
    %1892 = vmatprep.subr.bf16.mxu0 0
    %1893 = vmatpush1.bf16.msra.mxu0 %v1855
    %1894 = vmatprep.subr.bf16.mxu0 0
    %1895 = vmatpush1.bf16.msra.mxu0 %v1856
    %1896 = vmatprep.subr.bf16.mxu0 0
    %1897 = vmatpush1.bf16.msra.mxu0 %v1857
    %1898 = vmatprep.subr.bf16.mxu0 0
    %1899 = vmatpush1.bf16.msra.mxu0 %v1858
    %1900 = vmatprep.subr.bf16.mxu0 0
    %1901 = vmatpush1.bf16.msra.mxu0 %v1859
    %1902 = vmatprep.subr.bf16.mxu0 0
    %1903 = vmatpush1.bf16.msra.mxu0 %v1860
    %1904 = vmatprep.subr.bf16.mxu0 0
    %1905 = vmatpush1.bf16.msra.mxu0 %v1861
    %1906 = vmatprep.subr.bf16.mxu0 0
    %1907 = vmatpush1.bf16.msra.mxu0 %v1862
    %1908 = vmatprep.subr.bf16.mxu0 0
    %1909 = vmatpush1.bf16.msra.mxu0 %v1863
    %1910 = vmatprep.subr.bf16.mxu0 0
    %1911 = vmatpush1.bf16.msra.mxu0 %v1864
    %1912 = vmatprep.subr.bf16.mxu0 0
    %1913 = vmatpush1.bf16.msra.mxu0 %v1865
    %1914 = vmatprep.mubr.bf16.mxu0 %v1752
    %1915 = vmatmul.mubr.bf16.gmra.mrb[0].mxu0 %v1751
    %v1916 = vpop.f32.mrb[0].mxu0
    %v1917 = vadd.f32 %v1785, %v1916
    %v1918 = vpop.f32.mrb[0].mxu0
    %v1919 = vpop.f32.mrb[0].mxu0
    %v1920 = vpop.f32.mrb[0].mxu0
    %1921 = vdwg.mxu0
    %v1922 = vadd.f32 %v1917, %v1545
    %v1923 = vld [vmem:[%s14 + $0x12] ss:$0 sm:$0xff]
    %v1924 = vld [vmem:[%s14 + $0x13] ss:$0 sm:$0xff]
    %v1925 = vsel %vm566, %v1922, 0.0
    %1926 = vadd.xlane.f32.xlu0 %v1925
    %v1927 = vpop.xlane.xlu0 %1926
    %v1928 = vmul.f32 %v1927, %v1533
    %v1929 = vsub.f32 %v1922, %v1928
    %v1930 = vmul.f32 %v1929, %v1929
    %v1931 = vsel %vm566, %v1930, 0.0
    %1932 = vadd.xlane.f32.xlu0 %v1931
    %v1933 = vpop.xlane.xlu0 %1932
    %v1934 = vmul.f32 %v1933, %v1533
    %v1935 = vadd.f32 %v1934, 1e-06
    %v1936 = vrsqrt.pop %v1935
    %v1937 = vmul.f32 %v1929, %v1936
    %v1938 = vmul.f32 %v1937, %v1923
    %v1939 = vadd.f32 %v1938, %v1924
    %v1940 = vpack.c.bf16 %v1939, %v1939
    %s1941 = scalar_lea.vmem %s11, 64
    %v1942 = vld [vmem:[%s1941] sm:$0xf]
    %v1943 = vld [vmem:[%s1941 + $0x4] sm:$0xf]
    %v1944 = vld [vmem:[%s1941 + $0x8] sm:$0xf]
    %v1945 = vld [vmem:[%s1941 + $0xc] sm:$0xf]
    %v1946 = vld [vmem:[%s1941 + $0x10] sm:$0xf]
    %v1947 = vld [vmem:[%s1941 + $0x14] sm:$0xf]
    %v1948 = vld [vmem:[%s1941 + $0x18] sm:$0xf]
    %v1949 = vld [vmem:[%s1941 + $0x1c] sm:$0xf]
    %v1950 = vld [vmem:[%s1941 + $0x20] sm:$0xf]
    %v1951 = vld [vmem:[%s1941 + $0x24] sm:$0xf]
    %v1952 = vld [vmem:[%s1941 + $0x28] sm:$0xf]
    %v1953 = vld [vmem:[%s1941 + $0x2c] sm:$0xf]
    %v1954 = vld [vmem:[%s1941 + $0x30] sm:$0xf]
    %v1955 = vld [vmem:[%s1941 + $0x34] sm:$0xf]
    %v1956 = vld [vmem:[%s1941 + $0x38] sm:$0xf]
    %v1957 = vld [vmem:[%s1941 + $0x3c] sm:$0xf]
    %v1974 = vunpack.c.l.b16 %v1942
    %v1975 = vunpack.c.l.b16 %v1943
    %v1976 = vunpack.c.l.b16 %v1944
    %v1977 = vunpack.c.l.b16 %v1945
    %v1978 = vunpack.c.l.b16 %v1946
    %v1979 = vunpack.c.l.b16 %v1947
    %v1980 = vunpack.c.l.b16 %v1948
    %v1981 = vunpack.c.l.b16 %v1949
    %v1982 = vunpack.c.l.b16 %v1950
    %v1983 = vunpack.c.l.b16 %v1951
    %v1984 = vunpack.c.l.b16 %v1952
    %v1985 = vunpack.c.l.b16 %v1953
    %v1986 = vunpack.c.l.b16 %v1954
    %v1987 = vunpack.c.l.b16 %v1955
    %v1988 = vunpack.c.l.b16 %v1956
    %v1989 = vunpack.c.l.b16 %v1957
    %v1990 = vpack.c.b16 %v1975, %v1974
    %v1991 = vpack.c.b16 %v1977, %v1976
    %v1992 = vpack.c.b16 %v1979, %v1978
    %v1993 = vpack.c.b16 %v1981, %v1980
    %v1994 = vpack.c.b16 %v1983, %v1982
    %v1995 = vpack.c.b16 %v1985, %v1984
    %v1996 = vpack.c.b16 %v1987, %v1986
    %v1997 = vpack.c.b16 %v1989, %v1988
    %2006 = vmatprep.subr.bf16.mxu0 0
    %2007 = vmatpush1.bf16.msra.mxu0 %v1990
    %2008 = vmatprep.subr.bf16.mxu0 0
    %2009 = vmatpush1.bf16.msra.mxu0 %v1991
    %2010 = vmatprep.subr.bf16.mxu0 0
    %2011 = vmatpush1.bf16.msra.mxu0 %v1992
    %2012 = vmatprep.subr.bf16.mxu0 0
    %2013 = vmatpush1.bf16.msra.mxu0 %v1993
    %2014 = vmatprep.subr.bf16.mxu0 0
    %2015 = vmatpush1.bf16.msra.mxu0 %v1994
    %2016 = vmatprep.subr.bf16.mxu0 0
    %2017 = vmatpush1.bf16.msra.mxu0 %v1995
    %2018 = vmatprep.subr.bf16.mxu0 0
    %2019 = vmatpush1.bf16.msra.mxu0 %v1996
    %2020 = vmatprep.subr.bf16.mxu0 0
    %2021 = vmatpush1.bf16.msra.mxu0 %v1997
    %2022 = vmatprep.subr.bf16.mxu0 0
    %2023 = vmatpush1.bf16.msra.mxu0 0
    %2024 = vmatprep.subr.bf16.mxu0 0
    %2025 = vmatpush1.bf16.msra.mxu0 0
    %2026 = vmatprep.subr.bf16.mxu0 0
    %2027 = vmatpush1.bf16.msra.mxu0 0
    %2028 = vmatprep.subr.bf16.mxu0 0
    %2029 = vmatpush1.bf16.msra.mxu0 0
    %2030 = vmatprep.subr.bf16.mxu0 0
    %2031 = vmatpush1.bf16.msra.mxu0 0
    %2032 = vmatprep.subr.bf16.mxu0 0
    %2033 = vmatpush1.bf16.msra.mxu0 0
    %2034 = vmatprep.subr.bf16.mxu0 0
    %2035 = vmatpush1.bf16.msra.mxu0 0
    %2036 = vmatprep.subr.bf16.mxu0 0
    %2037 = vmatpush1.bf16.msra.mxu0 0
    %2038 = vmatprep.mubr.bf16.mxu0 0
    %2039 = vmatmul.mubr.bf16.gmra.mrb[0].mxu0 %v1940
    %v2040 = vpop.f32.mrb[0].mxu0
    %v2041 = vadd.f32 %v1939, %v2040
    %v2042 = vpop.f32.mrb[0].mxu0
    %v2043 = vpop.f32.mrb[0].mxu0
    %v2044 = vpop.f32.mrb[0].mxu0
    %2045 = vdwg.mxu0
    %v2046 = vld [vmem:[%s14 + $0x14] ss:$0 sm:$0xff]
    %v2047 = vld [vmem:[%s14 + $0x15] ss:$0 sm:$0xff]
    %v2048 = vsel %vm566, %v2041, 0.0
    %2049 = vadd.xlane.f32.xlu0 %v2048
    %v2050 = vpop.xlane.xlu0 %2049
    %v2051 = vmul.f32 %v2050, %v1533
    %v2052 = vsub.f32 %v2041, %v2051
    %v2053 = vmul.f32 %v2052, %v2052
    %v2054 = vsel %vm566, %v2053, 0.0
    %2055 = vadd.xlane.f32.xlu0 %v2054
    %v2056 = vpop.xlane.xlu0 %2055
    %v2057 = vmul.f32 %v2056, %v1533
    %v2058 = vadd.f32 %v2057, 1e-06
    %v2059 = vrsqrt.pop %v2058
    %v2060 = vmul.f32 %v2052, %v2059
    %v2061 = vmul.f32 %v2060, %v2046
    %v2062 = vadd.f32 %v2061, %v2047
    %v2063 = vpack.c.bf16 %v2062, %v2062
    %s2064 = scalar_lea.vmem %s12, 128
    %v2065 = vld [vmem:[%s2064] sm:$0xff]
    %v2066 = vld [vmem:[%s2064 + $0x8] sm:$0xff]
    %v2067 = vld [vmem:[%s2064 + $0x10] sm:$0xff]
    %v2068 = vld [vmem:[%s2064 + $0x18] sm:$0xff]
    %v2069 = vld [vmem:[%s2064 + $0x20] sm:$0xff]
    %v2070 = vld [vmem:[%s2064 + $0x28] sm:$0xff]
    %v2071 = vld [vmem:[%s2064 + $0x30] sm:$0xff]
    %v2072 = vld [vmem:[%s2064 + $0x38] sm:$0xff]
    %v2073 = vld [vmem:[%s2064 + $0x40] sm:$0xff]
    %v2074 = vld [vmem:[%s2064 + $0x48] sm:$0xff]
    %v2075 = vld [vmem:[%s2064 + $0x50] sm:$0xff]
    %v2076 = vld [vmem:[%s2064 + $0x58] sm:$0xff]
    %v2077 = vld [vmem:[%s2064 + $0x60] sm:$0xff]
    %v2078 = vld [vmem:[%s2064 + $0x68] sm:$0xff]
    %v2079 = vld [vmem:[%s2064 + $0x70] sm:$0xff]
    %v2080 = vld [vmem:[%s2064 + $0x78] sm:$0xff]
    %s2081 = scalar_lea.vmem %s14, 22
    %v2082 = vld [vmem:[%s2081] ss:$8 sm:$0x3]
    %v2084 = vlaneseq
    %v2085 = vshrl.u32 %v2084, 7
    %v2086 = vsub.s32 0, %v2085
    %v2087 = vrot.slane %v2082, %v2086
    %v2088 = vlaneseq
    %v2089 = vshrl.u32 %v2088, 7
    %v2090 = vsub.s32 1, %v2089
    %v2091 = vrot.slane %v2082, %v2090
    %v2110 = vunpack.c.l.b16 %v2065
    %v2111 = vunpack.c.h.b16 %v2065
    %v2112 = vunpack.c.l.b16 %v2066
    %v2113 = vunpack.c.h.b16 %v2066
    %v2114 = vunpack.c.l.b16 %v2067
    %v2115 = vunpack.c.h.b16 %v2067
    %v2116 = vunpack.c.l.b16 %v2068
    %v2117 = vunpack.c.h.b16 %v2068
    %v2118 = vunpack.c.l.b16 %v2069
    %v2119 = vunpack.c.h.b16 %v2069
    %v2120 = vunpack.c.l.b16 %v2070
    %v2121 = vunpack.c.h.b16 %v2070
    %v2122 = vunpack.c.l.b16 %v2071
    %v2123 = vunpack.c.h.b16 %v2071
    %v2124 = vunpack.c.l.b16 %v2072
    %v2125 = vunpack.c.h.b16 %v2072
    %v2126 = vunpack.c.l.b16 %v2073
    %v2127 = vunpack.c.h.b16 %v2073
    %v2128 = vunpack.c.l.b16 %v2074
    %v2129 = vunpack.c.h.b16 %v2074
    %v2130 = vunpack.c.l.b16 %v2075
    %v2131 = vunpack.c.h.b16 %v2075
    %v2132 = vunpack.c.l.b16 %v2076
    %v2133 = vunpack.c.h.b16 %v2076
    %v2134 = vunpack.c.l.b16 %v2077
    %v2135 = vunpack.c.h.b16 %v2077
    %v2136 = vunpack.c.l.b16 %v2078
    %v2137 = vunpack.c.h.b16 %v2078
    %v2138 = vunpack.c.l.b16 %v2079
    %v2139 = vunpack.c.h.b16 %v2079
    %v2140 = vunpack.c.l.b16 %v2080
    %v2141 = vunpack.c.h.b16 %v2080
    %v2142 = vpack.c.b16 %v2112, %v2110
    %v2143 = vpack.c.b16 %v2113, %v2111
    %v2144 = vpack.c.b16 %v2116, %v2114
    %v2145 = vpack.c.b16 %v2117, %v2115
    %v2146 = vpack.c.b16 %v2120, %v2118
    %v2147 = vpack.c.b16 %v2121, %v2119
    %v2148 = vpack.c.b16 %v2124, %v2122
    %v2149 = vpack.c.b16 %v2125, %v2123
    %v2150 = vpack.c.b16 %v2128, %v2126
    %v2151 = vpack.c.b16 %v2129, %v2127
    %v2152 = vpack.c.b16 %v2132, %v2130
    %v2153 = vpack.c.b16 %v2133, %v2131
    %v2154 = vpack.c.b16 %v2136, %v2134
    %v2155 = vpack.c.b16 %v2137, %v2135
    %v2156 = vpack.c.b16 %v2140, %v2138
    %v2157 = vpack.c.b16 %v2141, %v2139
    %2174 = vmatprep.subr.bf16.mxu0 %v2143
    %2175 = vmatpush1.bf16.msra.mxu0 %v2142
    %2176 = vmatprep.subr.bf16.mxu0 %v2145
    %2177 = vmatpush1.bf16.msra.mxu0 %v2144
    %2178 = vmatprep.subr.bf16.mxu0 %v2147
    %2179 = vmatpush1.bf16.msra.mxu0 %v2146
    %2180 = vmatprep.subr.bf16.mxu0 %v2149
    %2181 = vmatpush1.bf16.msra.mxu0 %v2148
    %2182 = vmatprep.subr.bf16.mxu0 %v2151
    %2183 = vmatpush1.bf16.msra.mxu0 %v2150
    %2184 = vmatprep.subr.bf16.mxu0 %v2153
    %2185 = vmatpush1.bf16.msra.mxu0 %v2152
    %2186 = vmatprep.subr.bf16.mxu0 %v2155
    %2187 = vmatpush1.bf16.msra.mxu0 %v2154
    %2188 = vmatprep.subr.bf16.mxu0 %v2157
    %2189 = vmatpush1.bf16.msra.mxu0 %v2156
    %2190 = vmatprep.subr.bf16.mxu0 0
    %2191 = vmatpush1.bf16.msra.mxu0 0
    %2192 = vmatprep.subr.bf16.mxu0 0
    %2193 = vmatpush1.bf16.msra.mxu0 0
    %2194 = vmatprep.subr.bf16.mxu0 0
    %2195 = vmatpush1.bf16.msra.mxu0 0
    %2196 = vmatprep.subr.bf16.mxu0 0
    %2197 = vmatpush1.bf16.msra.mxu0 0
    %2198 = vmatprep.subr.bf16.mxu0 0
    %2199 = vmatpush1.bf16.msra.mxu0 0
    %2200 = vmatprep.subr.bf16.mxu0 0
    %2201 = vmatpush1.bf16.msra.mxu0 0
    %2202 = vmatprep.subr.bf16.mxu0 0
    %2203 = vmatpush1.bf16.msra.mxu0 0
    %2204 = vmatprep.subr.bf16.mxu0 0
    %2205 = vmatpush1.bf16.msra.mxu0 0
    %2206 = vmatprep.mubr.bf16.mxu0 0
    %2207 = vmatmul.mubr.bf16.gmra.mrb[0].mxu0 %v2063
    %v2208 = vpop.f32.mrb[0].mxu0
    %v2209 = vadd.f32 %v2087, %v2208
    %v2210 = vpop.f32.mrb[0].mxu0
    %v2211 = vadd.f32 %v2091, %v2210
    %v2212 = vpop.f32.mrb[0].mxu0
    %v2213 = vpop.f32.mrb[0].mxu0
    %2214 = vdwg.mxu0
    %v2215 = vmul.f32 %v2209, 0.5
    %v2216 = vmul.f32 %v2211, 0.5
    %v2217 = vmul.f32 %v2209, 0.70710677
    %v2218 = vmul.f32 %v2211, 0.70710677
    %v2219 = vand.u32 2147483647, %v2217
    %v2220 = vand.u32 2147483647, %v2218
    %v2221 = vmul.f32 %v2219, 0.3275911
    %v2222 = vmul.f32 %v2220, 0.3275911
    %v2223 = vadd.f32 %v2221, 1.0
    %v2224 = vadd.f32 %v2222, 1.0
    %v2225 = vrcp.pop %v2223
    %v2226 = vmul.f32 1.0, %v2225
    %v2227 = vrcp.pop %v2224
    %v2228 = vmul.f32 1.0, %v2227
    %v2229 = vmul.f32 %v2226, 1.0614054
    %v2230 = vmul.f32 %v2228, 1.0614054
    %v2231 = vadd.f32 %v2229, -1.4531521
    %v2232 = vadd.f32 %v2230, -1.4531521
    %v2233 = vmul.f32 %v2231, %v2226
    %v2234 = vmul.f32 %v2232, %v2228
    %v2235 = vadd.f32 %v2233, 1.4214138
    %v2236 = vadd.f32 %v2234, 1.4214138
    %v2237 = vmul.f32 %v2235, %v2226
    %v2238 = vmul.f32 %v2236, %v2228
    %v2239 = vadd.f32 %v2237, -0.28449672
    %v2240 = vadd.f32 %v2238, -0.28449672
    %v2241 = vmul.f32 %v2239, %v2226
    %v2242 = vmul.f32 %v2240, %v2228
    %v2243 = vadd.f32 %v2241, 0.2548296
    %v2244 = vadd.f32 %v2242, 0.2548296
    %v2245 = vmul.f32 %v2243, %v2226
    %v2246 = vmul.f32 %v2244, %v2228
    %v2247 = vsub.f32 0.0, %v2219
    %v2248 = vsub.f32 0.0, %v2220
    %v2249 = vmul.f32 %v2247, %v2219
    %v2250 = vmul.f32 %v2248, %v2220
    %v2251 = vmul.f32 %v2249, 1.442695
    %v2252 = vpow.pop %v2251
    %v2253 = vmul.f32 %v2250, 1.442695
    %v2254 = vpow.pop %v2253
    %v2255 = vmul.f32 %v2245, %v2252
    %v2256 = vmul.f32 %v2246, %v2254
    %v2257 = vsub.f32 1.0, %v2255
    %v2258 = vsub.f32 1.0, %v2256
    %vm2259 = vcmp.lt.f32.partialorder %v2217, 0.0
    %vm2260 = vcmp.lt.f32.partialorder %v2218, 0.0
    %v2261 = vsub.f32 0.0, %v2257
    %v2262 = vsub.f32 0.0, %v2258
    %v2263 = vsel %vm2259, %v2261, %v2257
    %v2264 = vsel %vm2260, %v2262, %v2258
    %v2265 = vadd.f32 %v2263, 1.0
    %v2266 = vadd.f32 %v2264, 1.0
    %v2267 = vmul.f32 %v2215, %v2265
    %v2268 = vmul.f32 %v2216, %v2266
    %v2269 = vpack.c.bf16 %v2267, %v2267
    %v2270 = vpack.c.bf16 %v2268, %v2268
    %s2271 = scalar_lea.vmem %s13, 128
    %v2272 = vld [vmem:[%s2271] sm:$0xf]
    %v2273 = vld [vmem:[%s2271 + $0x4] sm:$0xf]
    %v2274 = vld [vmem:[%s2271 + $0x8] sm:$0xf]
    %v2275 = vld [vmem:[%s2271 + $0xc] sm:$0xf]
    %v2276 = vld [vmem:[%s2271 + $0x10] sm:$0xf]
    %v2277 = vld [vmem:[%s2271 + $0x14] sm:$0xf]
    %v2278 = vld [vmem:[%s2271 + $0x18] sm:$0xf]
    %v2279 = vld [vmem:[%s2271 + $0x1c] sm:$0xf]
    %v2280 = vld [vmem:[%s2271 + $0x20] sm:$0xf]
    %v2281 = vld [vmem:[%s2271 + $0x24] sm:$0xf]
    %v2282 = vld [vmem:[%s2271 + $0x28] sm:$0xf]
    %v2283 = vld [vmem:[%s2271 + $0x2c] sm:$0xf]
    %v2284 = vld [vmem:[%s2271 + $0x30] sm:$0xf]
    %v2285 = vld [vmem:[%s2271 + $0x34] sm:$0xf]
    %v2286 = vld [vmem:[%s2271 + $0x38] sm:$0xf]
    %v2287 = vld [vmem:[%s2271 + $0x3c] sm:$0xf]
    %v2288 = vld [vmem:[%s2271 + $0x40] sm:$0xf]
    %v2289 = vld [vmem:[%s2271 + $0x44] sm:$0xf]
    %v2290 = vld [vmem:[%s2271 + $0x48] sm:$0xf]
    %v2291 = vld [vmem:[%s2271 + $0x4c] sm:$0xf]
    %v2292 = vld [vmem:[%s2271 + $0x50] sm:$0xf]
    %v2293 = vld [vmem:[%s2271 + $0x54] sm:$0xf]
    %v2294 = vld [vmem:[%s2271 + $0x58] sm:$0xf]
    %v2295 = vld [vmem:[%s2271 + $0x5c] sm:$0xf]
    %v2296 = vld [vmem:[%s2271 + $0x60] sm:$0xf]
    %v2297 = vld [vmem:[%s2271 + $0x64] sm:$0xf]
    %v2298 = vld [vmem:[%s2271 + $0x68] sm:$0xf]
    %v2299 = vld [vmem:[%s2271 + $0x6c] sm:$0xf]
    %v2300 = vld [vmem:[%s2271 + $0x70] sm:$0xf]
    %v2301 = vld [vmem:[%s2271 + $0x74] sm:$0xf]
    %v2302 = vld [vmem:[%s2271 + $0x78] sm:$0xf]
    %v2303 = vld [vmem:[%s2271 + $0x7c] sm:$0xf]
    %v2304 = vld [vmem:[%s14 + $0x17] ss:$0 sm:$0xff]
    %v2337 = vunpack.c.l.b16 %v2272
    %v2338 = vunpack.c.l.b16 %v2273
    %v2339 = vunpack.c.l.b16 %v2274
    %v2340 = vunpack.c.l.b16 %v2275
    %v2341 = vunpack.c.l.b16 %v2276
    %v2342 = vunpack.c.l.b16 %v2277
    %v2343 = vunpack.c.l.b16 %v2278
    %v2344 = vunpack.c.l.b16 %v2279
    %v2345 = vunpack.c.l.b16 %v2280
    %v2346 = vunpack.c.l.b16 %v2281
    %v2347 = vunpack.c.l.b16 %v2282
    %v2348 = vunpack.c.l.b16 %v2283
    %v2349 = vunpack.c.l.b16 %v2284
    %v2350 = vunpack.c.l.b16 %v2285
    %v2351 = vunpack.c.l.b16 %v2286
    %v2352 = vunpack.c.l.b16 %v2287
    %v2353 = vunpack.c.l.b16 %v2288
    %v2354 = vunpack.c.l.b16 %v2289
    %v2355 = vunpack.c.l.b16 %v2290
    %v2356 = vunpack.c.l.b16 %v2291
    %v2357 = vunpack.c.l.b16 %v2292
    %v2358 = vunpack.c.l.b16 %v2293
    %v2359 = vunpack.c.l.b16 %v2294
    %v2360 = vunpack.c.l.b16 %v2295
    %v2361 = vunpack.c.l.b16 %v2296
    %v2362 = vunpack.c.l.b16 %v2297
    %v2363 = vunpack.c.l.b16 %v2298
    %v2364 = vunpack.c.l.b16 %v2299
    %v2365 = vunpack.c.l.b16 %v2300
    %v2366 = vunpack.c.l.b16 %v2301
    %v2367 = vunpack.c.l.b16 %v2302
    %v2368 = vunpack.c.l.b16 %v2303
    %v2369 = vpack.c.b16 %v2338, %v2337
    %v2370 = vpack.c.b16 %v2340, %v2339
    %v2371 = vpack.c.b16 %v2342, %v2341
    %v2372 = vpack.c.b16 %v2344, %v2343
    %v2373 = vpack.c.b16 %v2346, %v2345
    %v2374 = vpack.c.b16 %v2348, %v2347
    %v2375 = vpack.c.b16 %v2350, %v2349
    %v2376 = vpack.c.b16 %v2352, %v2351
    %v2377 = vpack.c.b16 %v2354, %v2353
    %v2378 = vpack.c.b16 %v2356, %v2355
    %v2379 = vpack.c.b16 %v2358, %v2357
    %v2380 = vpack.c.b16 %v2360, %v2359
    %v2381 = vpack.c.b16 %v2362, %v2361
    %v2382 = vpack.c.b16 %v2364, %v2363
    %v2383 = vpack.c.b16 %v2366, %v2365
    %v2384 = vpack.c.b16 %v2368, %v2367
    %2401 = vmatprep.subr.bf16.mxu0 0
    %2402 = vmatpush1.bf16.msra.mxu0 %v2369
    %2403 = vmatprep.subr.bf16.mxu0 0
    %2404 = vmatpush1.bf16.msra.mxu0 %v2370
    %2405 = vmatprep.subr.bf16.mxu0 0
    %2406 = vmatpush1.bf16.msra.mxu0 %v2371
    %2407 = vmatprep.subr.bf16.mxu0 0
    %2408 = vmatpush1.bf16.msra.mxu0 %v2372
    %2409 = vmatprep.subr.bf16.mxu0 0
    %2410 = vmatpush1.bf16.msra.mxu0 %v2373
    %2411 = vmatprep.subr.bf16.mxu0 0
    %2412 = vmatpush1.bf16.msra.mxu0 %v2374
    %2413 = vmatprep.subr.bf16.mxu0 0
    %2414 = vmatpush1.bf16.msra.mxu0 %v2375
    %2415 = vmatprep.subr.bf16.mxu0 0
    %2416 = vmatpush1.bf16.msra.mxu0 %v2376
    %2417 = vmatprep.subr.bf16.mxu0 0
    %2418 = vmatpush1.bf16.msra.mxu0 %v2377
    %2419 = vmatprep.subr.bf16.mxu0 0
    %2420 = vmatpush1.bf16.msra.mxu0 %v2378
    %2421 = vmatprep.subr.bf16.mxu0 0
    %2422 = vmatpush1.bf16.msra.mxu0 %v2379
    %2423 = vmatprep.subr.bf16.mxu0 0
    %2424 = vmatpush1.bf16.msra.mxu0 %v2380
    %2425 = vmatprep.subr.bf16.mxu0 0
    %2426 = vmatpush1.bf16.msra.mxu0 %v2381
    %2427 = vmatprep.subr.bf16.mxu0 0
    %2428 = vmatpush1.bf16.msra.mxu0 %v2382
    %2429 = vmatprep.subr.bf16.mxu0 0
    %2430 = vmatpush1.bf16.msra.mxu0 %v2383
    %2431 = vmatprep.subr.bf16.mxu0 0
    %2432 = vmatpush1.bf16.msra.mxu0 %v2384
    %2433 = vmatprep.mubr.bf16.mxu0 %v2270
    %2434 = vmatmul.mubr.bf16.gmra.mrb[0].mxu0 %v2269
    %v2435 = vpop.f32.mrb[0].mxu0
    %v2436 = vadd.f32 %v2304, %v2435
    %v2437 = vpop.f32.mrb[0].mxu0
    %v2438 = vpop.f32.mrb[0].mxu0
    %v2439 = vpop.f32.mrb[0].mxu0
    %2440 = vdwg.mxu0
    %v2441 = vadd.f32 %v2436, %v2062
    %v2442 = vld [vmem:[%s14 + $0x20] ss:$0 sm:$0xff]
    %v2443 = vld [vmem:[%s14 + $0x21] ss:$0 sm:$0xff]
    %v2444 = vsel %vm566, %v2441, 0.0
    %2445 = vadd.xlane.f32.xlu0 %v2444
    %v2446 = vpop.xlane.xlu0 %2445
    %v2447 = vmul.f32 %v2446, %v1533
    %v2448 = vsub.f32 %v2441, %v2447
    %v2449 = vmul.f32 %v2448, %v2448
    %v2450 = vsel %vm566, %v2449, 0.0
    %2451 = vadd.xlane.f32.xlu0 %v2450
    %v2452 = vpop.xlane.xlu0 %2451
    %v2453 = vmul.f32 %v2452, %v1533
    %v2454 = vadd.f32 %v2453, 1e-06
    %v2455 = vrsqrt.pop %v2454
    %v2456 = vmul.f32 %v2448, %v2455
    %v2457 = vmul.f32 %v2456, %v2442
    %v2458 = vadd.f32 %v2457, %v2443
    %2459 = vst [vmem:[#allocation3] sm:$0x3] %v2458
    %v2460 = vld [vmem:[%s15] sm:$0xff]
    %v2461 = vld [vmem:[%s15 + $0x8] sm:$0xff]
    %v2462 = vld [vmem:[%s15 + $0x10] sm:$0xff]
    %v2463 = vld [vmem:[%s15 + $0x18] sm:$0xff]
    %v2464 = vld [vmem:[%s15 + $0x20] sm:$0xff]
    %v2465 = vld [vmem:[%s15 + $0x28] sm:$0xff]
    %v2466 = vld [vmem:[%s15 + $0x30] sm:$0xff]
    %v2467 = vld [vmem:[%s15 + $0x38] sm:$0xff]
    %v2468 = vld [vmem:[%s15 + $0x40] sm:$0xff]
    %v2469 = vld [vmem:[%s15 + $0x48] sm:$0xff]
    %v2470 = vld [vmem:[%s15 + $0x50] sm:$0xff]
    %v2471 = vld [vmem:[%s15 + $0x58] sm:$0xff]
    %v2472 = vld [vmem:[%s15 + $0x60] sm:$0xff]
    %v2473 = vld [vmem:[%s15 + $0x68] sm:$0xff]
    %v2474 = vld [vmem:[%s15 + $0x70] sm:$0xff]
    %v2475 = vld [vmem:[%s15 + $0x78] sm:$0xff]
    %v2476 = vld [vmem:[%s14 + $0x4] ss:$0 sm:$0xff]
    %2477 = vmatprep.subr.mxu0 0.0
    %2478 = vmatpush1.msra.mxu0 %v2460
    %2479 = vmatprep.subr.mxu0 0.0
    %2480 = vmatpush1.msra.mxu0 %v2461
    %2481 = vmatprep.subr.mxu0 0.0
    %2482 = vmatpush1.msra.mxu0 %v2462
    %2483 = vmatprep.subr.mxu0 0.0
    %2484 = vmatpush1.msra.mxu0 %v2463
    %2485 = vmatprep.subr.mxu0 0.0
    %2486 = vmatpush1.msra.mxu0 %v2464
    %2487 = vmatprep.subr.mxu0 0.0
    %2488 = vmatpush1.msra.mxu0 %v2465
    %2489 = vmatprep.subr.mxu0 0.0
    %2490 = vmatpush1.msra.mxu0 %v2466
    %2491 = vmatprep.subr.mxu0 0.0
    %2492 = vmatpush1.msra.mxu0 %v2467
    %2493 = vmatprep.subr.mxu0 0.0
    %2494 = vmatpush1.msra.mxu0 %v2468
    %2495 = vmatprep.subr.mxu0 0.0
    %2496 = vmatpush1.msra.mxu0 %v2469
    %2497 = vmatprep.subr.mxu0 0.0
    %2498 = vmatpush1.msra.mxu0 %v2470
    %2499 = vmatprep.subr.mxu0 0.0
    %2500 = vmatpush1.msra.mxu0 %v2471
    %2501 = vmatprep.subr.mxu0 0.0
    %2502 = vmatpush1.msra.mxu0 %v2472
    %2503 = vmatprep.subr.mxu0 0.0
    %2504 = vmatpush1.msra.mxu0 %v2473
    %2505 = vmatprep.subr.mxu0 0.0
    %2506 = vmatpush1.msra.mxu0 %v2474
    %2507 = vmatprep.subr.mxu0 0.0
    %2508 = vmatpush1.msra.mxu0 %v2475
    %2509 = vmatprep.subr.mxu0 0.0
    %2510 = vmatpush1.msra.mxu0 0.0
    %2511 = vmatprep.subr.mxu0 0.0
    %2512 = vmatpush1.msra.mxu0 0.0
    %2513 = vmatprep.subr.mxu0 0.0
    %2514 = vmatpush1.msra.mxu0 0.0
    %2515 = vmatprep.subr.mxu0 0.0
    %2516 = vmatpush1.msra.mxu0 0.0
    %2517 = vmatprep.subr.mxu0 0.0
    %2518 = vmatpush1.msra.mxu0 0.0
    %2519 = vmatprep.subr.mxu0 0.0
    %2520 = vmatpush1.msra.mxu0 0.0
    %2521 = vmatprep.subr.mxu0 0.0
    %2522 = vmatpush1.msra.mxu0 0.0
    %2523 = vmatprep.subr.mxu0 0.0
    %2524 = vmatpush1.msra.mxu0 0.0
    %2525 = vmatprep.subr.mxu0 0.0
    %2526 = vmatpush1.msra.mxu0 0.0
    %2527 = vmatprep.subr.mxu0 0.0
    %2528 = vmatpush1.msra.mxu0 0.0
    %2529 = vmatprep.subr.mxu0 0.0
    %2530 = vmatpush1.msra.mxu0 0.0
    %2531 = vmatprep.subr.mxu0 0.0
    %2532 = vmatpush1.msra.mxu0 0.0
    %2533 = vmatprep.subr.mxu0 0.0
    %2534 = vmatpush1.msra.mxu0 0.0
    %2535 = vmatprep.subr.mxu0 0.0
    %2536 = vmatpush1.msra.mxu0 0.0
    %2537 = vmatprep.subr.mxu0 0.0
    %2538 = vmatpush1.msra.mxu0 0.0
    %2539 = vmatprep.subr.mxu0 0.0
    %2540 = vmatpush1.msra.mxu0 0.0
    %2541 = vmatprep.mubr.f32.mxu0 0.0
    %2542 = vmatmul.mubr.f32.gmra.mrb[0].mxu0 %v2458
    %v2543 = vpop.f32.mrb[0].mxu0
    %v2544 = vadd.f32 %v2476, %v2543
    %v2545 = vpop.f32.mrb[0].mxu0
    %2546 = vdwg.mxu0
    %vm2547 = vcmask 17408
    %v2548 = vsel %vm2547, %v2544, -inf
    %2549 = vmax.xlane.f32.xlu0 %v2548
    %v2550 = vpop.xlane.xlu0 %2549
    %v2551 = vsub.f32 %v2544, %v2550
    %v2552 = vmul.f32 %v2551, 1.442695
    %v2553 = vpow.pop %v2552
    %v2554 = vsel %vm2547, %v2553, 0.0
    %2555 = vadd.xlane.f32.xlu0 %v2554
    %v2556 = vpop.xlane.xlu0 %2555
    %v2557 = vrcp.pop %v2556
    %v2558 = vmul.f32 %v2553, %v2557
    %2559 = vst.msk [vmem:[#allocation5] sm:$0x3] %vm2547, %v2558
    // Predicated region
    $region66: #{transformer_encoder_forward.1} parent=1 // pred_check
      _
    $region67: #{transformer_encoder_forward.1} parent=1 // pred_check_branch
      %2561 = sbr.rel (0) target = $region69
    $region68: #{transformer_encoder_forward.1} parent=1 // pred_region
      %s2563 = ssub.s32 32, 32
      %2564 = vsyncadd [#allocation4], %s2563
      %s2566 = sshll.u32 [#allocation3], 4
      %s2567 = int_to_ptr.vmem [resolvable:$true] %s2566
      %2569 = dma.vmem_to_hbm [thread:$0]  %s2567, 32, %s16, [#allocation4]
    $region69: #{transformer_encoder_forward.1} parent=1 // pred_fallthru
      _
    // Predicated region
    $region70: #{transformer_encoder_forward.1} parent=1 // pred_check
      _
    $region71: #{transformer_encoder_forward.1} parent=1 // pred_check_branch
      %2571 = sbr.rel (0) target = $region73
    $region72: #{transformer_encoder_forward.1} parent=1 // pred_region
      %s2573 = ssub.s32 32, 32
      %2574 = vsyncadd [#allocation6], %s2573
      %s2576 = sshll.u32 [#allocation5], 4
      %s2577 = int_to_ptr.vmem [resolvable:$true] %s2576
      %2579 = dma.vmem_to_hbm [thread:$0]  %s2577, 32, %s17, [#allocation6]
    $region73: #{transformer_encoder_forward.1} parent=1 // pred_fallthru
      _
    // Predicated region
    $region74: #{transformer_encoder_forward.1} parent=1 // pred_check
      _
    $region75: #{transformer_encoder_forward.1} parent=1 // pred_check_branch
      %2581 = sbr.rel (0) target = $region77
    $region76: #{transformer_encoder_forward.1} parent=1 // pred_region
      %2582 = dma.done [#allocation4], 32
    $region77: #{transformer_encoder_forward.1} parent=1 // pred_fallthru
      _
    // Predicated region
    $region78: #{transformer_encoder_forward.1} parent=1 // pred_check
      _
    $region79: #{transformer_encoder_forward.1} parent=1 // pred_check_branch
      %2584 = sbr.rel (0) target = $region81
    $region80: #{transformer_encoder_forward.1} parent=1 // pred_region
      %2585 = dma.done [#allocation6], 32
    $region81: #{transformer_encoder_forward.1} parent=1 // pred_fallthru
      _
    %2586 = vsyncpa [#allocation4], 1
    %2587 = vsyncpa [#allocation6], 1

</llo_original>
